<compile_context>
chip_gen: v7x
topology: tpu7x:2x2x1
jax: 0.10.0
libtpu: 0.0.40
codegen_flags: <defaults>
</compile_context>

<pallas_src>
import functools

import jax
import jax.numpy as jnp
from jax.experimental import pallas as pl
from jax.experimental.pallas import tpu as pltpu


def _round_up(v, m):
    return (v + m - 1) // m * m


def _pick_c_tile(C, HW, target_bytes=512 * 1024):
    """Largest multiple-of-8 divisor of C whose (c_tile, HW) f32 block fits the budget."""
    if C <= 8:
        return C
    budget = max(8, target_bytes // (HW * 4))
    best = 0
    ct = 8
    while ct <= C:
        if C % ct == 0 and ct <= budget:
            best = ct
        ct += 8
    if best == 0:
        # C has no multiple-of-8 divisor (rare) or nothing fits: fall back to the full
        # channel dim (block dim == array dim is always a legal BlockSpec).
        return C
    return best


def _spatial_attention_kernel(x_ref, w_ref, o_ref, sum_ref, max_ref, pad_ref,
                              *, ksize, pad, H, W):
    # x_ref  : (C_TILE, H*W)  lane-dense channel block of the current batch element
    # w_ref  : (2*k*k,)       conv weights (avg-channel pre-scaled by 1/C), SMEM
    # o_ref  : (H, Wl)        lane-dense output slab (Wl = round_up(W + pad, 128))
    # sum_ref: (1, H*W)       running channel sum (VMEM scratch, persists over C steps)
    # max_ref: (1, H*W)       running channel max
    # pad_ref: (2, H+2p, Wl)  padded conv input scratch (built on the last C step)
    c_step = pl.program_id(1)
    n_c = pl.num_programs(1)
    C_TILE = x_ref.shape[0]
    Wl = o_ref.shape[-1]

    @pl.when(c_step == 0)
    def _init():
        sum_ref[...] = jnp.zeros_like(sum_ref)
        max_ref[...] = jnp.full_like(max_ref, -jnp.inf)

    # ---- lane-dense channel reduction, 8 channels at a time ------------------------
    # The read-modify-write through the scratch refs bounds the live-vreg footprint
    # of each sub-chunk (a Python loop alone would not).
    for s in range(0, C_TILE, 8):
        n = min(8, C_TILE - s)
        blk = x_ref[pl.ds(s, n), :].astype(jnp.float32)                  # (n, HW)
        sum_ref[...] = sum_ref[...] + jnp.sum(blk, axis=0, keepdims=True)
        max_ref[...] = jnp.maximum(max_ref[...], jnp.max(blk, axis=0, keepdims=True))

    # ---- finalize: build padded maps, 7x7 conv, sigmoid (last C step only) ---------
    @pl.when(c_step == n_c - 1)
    def _finalize():
        # Zero only the top/bottom pad rows (full-lane, unmasked stores).  Interior
        # lanes >= W are left uninitialized in the scratch and are masked away below,
        # so no stale VMEM ever reaches the result (megacore-safe).
        zrow = jnp.zeros((pad, Wl), jnp.float32)
        for c in range(2):
            pad_ref[c, pl.ds(0, pad), :] = zrow
            pad_ref[c, pl.ds(pad + H, pad), :] = zrow

        # Scatter the two (H*W,) reduced maps into the (H, W) interior of the padded
        # scratch (H small row stores per map, once per batch element).  The 1/C mean
        # scale is already folded into the avg-channel weights.
        for h in range(H):
            pad_ref[0, pl.ds(pad + h, 1), pl.ds(0, W)] = sum_ref[pl.ds(0, 1), pl.ds(h * W, W)]
            pad_ref[1, pl.ds(pad + h, 1), pl.ds(0, W)] = max_ref[pl.ds(0, 1), pl.ds(h * W, W)]

        # Conv: row strips of 8 output rows keep all ksize per-kx accumulator chains
        # at ~1 vreg each (ILP across the VALU slots without spilling).  Per strip:
        #   stage 1: 2*k row-strip loads, 2*k*k SMEM-scalar x vector mul-adds
        #   stage 2: lane-mask (cols >= W -> 0), one pltpu.roll per kx (XLU), tree sum
        RS = 8
        for r0 in range(0, H, RS):
            rs = min(RS, H - r0)
            lane = jax.lax.broadcasted_iota(jnp.int32, (rs, Wl), 1)
            valid = lane < W
            kx_acc = [jnp.zeros((rs, Wl), jnp.float32) for _ in range(ksize)]
            for c in range(2):
                for ky in range(ksize):
                    strip = pad_ref[c, pl.ds(r0 + ky, rs), :]            # (rs, Wl)
                    for kx in range(ksize):
                        w_s = w_ref[(c * ksize + ky) * ksize + kx]       # SMEM scalar
                        kx_acc[kx] = kx_acc[kx] + w_s * strip
            total = jnp.zeros((rs, Wl), jnp.float32)
            for kx in range(ksize):
                # Masking before the roll reproduces zero-padded conv exactly:
                # wrapped / right-padding columns always read a zeroed lane.
                a = jnp.where(valid, kx_acc[kx], 0.0)
                shift = (pad - kx) % Wl
                if shift:
                    a = pltpu.roll(a, shift=shift, axis=1)
                total = total + a
            o_ref[pl.ds(r0, rs), :] = jax.nn.sigmoid(total)              # unmasked store


def spatial_attention(x, weight, kernel_size=7):
    """x: (N, C, H, W). weight: (1, 2, k, k). Returns (N, 1, H, W) float32."""
    assert kernel_size in (3, 7), "kernel size must be 3 or 7"
    pad = 3 if kernel_size == 7 else 1
    N, C, H, W = x.shape
    HW = H * W
    Wl = _round_up(W + pad, 128)          # lane-dense compute / output width
    Hp = H + 2 * pad

    c_tile = _pick_c_tile(C, HW)
    n_c = C // c_tile

    # Fold the 1/C mean scale into the avg-channel taps; flatten for SMEM scalars.
    w2 = weight.reshape(2, kernel_size, kernel_size).astype(jnp.float32)
    scale = jnp.array([1.0 / C, 1.0], jnp.float32).reshape(2, 1, 1)
    w_flat = (w2 * scale).reshape(-1)     # (2*k*k,)

    # Lane-dense view of the input (free, contiguous reshape).
    x_flat = x.reshape(N, C, HW)

    kernel = functools.partial(_spatial_attention_kernel,
                               ksize=kernel_size, pad=pad, H=H, W=W)

    out_padded = pl.pallas_call(
        kernel,
        out_shape=jax.ShapeDtypeStruct((N, H, Wl), jnp.float32),
        grid_spec=pltpu.PrefetchScalarGridSpec(
            num_scalar_prefetch=0,
            grid=(N, n_c),                # C (reduction) axis last
            in_specs=[
                pl.BlockSpec((None, c_tile, HW), lambda b, c: (b, c, 0)),
                pl.BlockSpec(memory_space=pltpu.MemorySpace.SMEM),
            ],
            out_specs=pl.BlockSpec((None, H, Wl), lambda b, c: (b, 0, 0)),
            scratch_shapes=[
                pltpu.VMEM((1, HW), jnp.float32),      # channel-sum accumulator
                pltpu.VMEM((1, HW), jnp.float32),      # channel-max accumulator
                pltpu.VMEM((2, Hp, Wl), jnp.float32),  # padded conv input
            ],
        ),
        compiler_params=pltpu.CompilerParams(
            dimension_semantics=("parallel", "arbitrary"),
            vmem_limit_bytes=48 * 1024 * 1024,
        ),
    )(x_flat, w_flat)

    # Drop junk lanes >= W and restore the (N, 1, H, W) NCHW shape.
    return out_padded[:, None, :, :W]


def _reference(x, weight, kernel_size=7):
    """Plain-JAX reference matching the PyTorch forward."""
    pad = 3 if kernel_size == 7 else 1
    avg_out = jnp.mean(x, axis=1, keepdims=True)
    max_out = jnp.max(x, axis=1, keepdims=True)
    feat = jnp.concatenate([avg_out, max_out], axis=1)          # (N, 2, H, W)
    y = jax.lax.conv_general_dilated(
        feat, weight, window_strides=(1, 1),
        padding=[(pad, pad), (pad, pad)],
        dimension_numbers=("NCHW", "OIHW", "NCHW"),
    )
    return jax.nn.sigmoid(y)


if __name__ == "__main__":
    key = jax.random.PRNGKey(0)
    kx, kw = jax.random.split(key)

    N, C, H, W = 2, 4, 16, 16
    kernel_size = 7

    x = jax.random.normal(kx, (N, C, H, W), dtype=jnp.float32)
    # Deterministic conv weight (matches Conv2d(2, 1, 7, bias=False) shape).
    fan_in = 2 * kernel_size * kernel_size
    bound = 1.0 / (fan_in ** 0.5)
    weight = jax.random.uniform(
        kw, (1, 2, kernel_size, kernel_size),
        minval=-bound, maxval=bound, dtype=jnp.float32)

    out = spatial_attention(x, weight, kernel_size)
    out = jax.block_until_ready(out)

    ref = jax.block_until_ready(_reference(x, weight, kernel_size))
    assert out.shape == (N, 1, H, W)
    assert jnp.allclose(out, ref, atol=1e-5, rtol=1e-5), float(jnp.max(jnp.abs(out - ref)))

    print("KERNEL_OK")
</pallas_src>

<mosaic_0001>
module attributes {stable_mosaic.version = 11 : i64} {
  func.func @_spatial_attention_kernel(%arg0: i32, %arg1: i32, %arg2: memref<1x4x256xf32, #tpu.memory_space<vmem>>, %arg3: memref<98xf32, #tpu.memory_space<smem>>, %arg4: memref<1x16x128xf32, #tpu.memory_space<vmem>>, %arg5: memref<1x256xf32, #tpu.memory_space<vmem>>, %arg6: memref<1x256xf32, #tpu.memory_space<vmem>>, %arg7: memref<2x22x128xf32, #tpu.memory_space<vmem>>) attributes {dimension_semantics = [#tpu.dimension_semantics<parallel>, #tpu.dimension_semantics<arbitrary>], iteration_bounds = array<i64: 2, 1>, scalar_prefetch = 0 : i64, scratch_operands = 3 : i64, tpu.core_type = #tpu.core_type<tc>, window_params = [{transform_indices = @transform_0, window_bounds = array<i64: 1, 4, 256>}, {transform_indices = @transform_1, window_bounds = array<i64: 98>}, {transform_indices = @transform_2, window_bounds = array<i64: 1, 16, 128>}]} {
    %c0_i32 = arith.constant 0 : i32
    %0 = arith.cmpi eq, %arg1, %c0_i32 : i32
    %1 = arith.extui %0 : i1 to i32
    %c0_i32_0 = arith.constant 0 : i32
    %2 = arith.cmpi ne, %1, %c0_i32_0 : i32
    scf.if %2 {
      %cst_14 = arith.constant 0.000000e+00 : f32
      %18 = vector.broadcast %cst_14 : f32 to vector<1x256xf32>
      %c0_15 = arith.constant 0 : index
      %c0_16 = arith.constant 0 : index
      %19 = vector.load %arg5[%c0_15, %c0_16] : memref<1x256xf32, #tpu.memory_space<vmem>>, vector<1x256xf32>
      tpu.vector_store %arg5[%c0_15, %c0_16], %18 {strides = array<i32>} : memref<1x256xf32, #tpu.memory_space<vmem>>, vector<1x256xf32>,
      %cst_17 = arith.constant 0xFF800000 : f32
      %20 = vector.broadcast %cst_17 : f32 to vector<1x256xf32>
      %c0_18 = arith.constant 0 : index
      %c0_19 = arith.constant 0 : index
      %21 = vector.load %arg6[%c0_18, %c0_19] : memref<1x256xf32, #tpu.memory_space<vmem>>, vector<1x256xf32>
      tpu.vector_store %arg6[%c0_18, %c0_19], %20 {strides = array<i32>} : memref<1x256xf32, #tpu.memory_space<vmem>>, vector<1x256xf32>,
    } else {
    }
    %c0 = arith.constant 0 : index
    %c0_1 = arith.constant 0 : index
    %c0_2 = arith.constant 0 : index
    %3 = vector.load %arg2[%c0, %c0_1, %c0_2] : memref<1x4x256xf32, #tpu.memory_space<vmem>>, vector<1x4x256xf32>
    %4 = vector.shape_cast %3 : vector<1x4x256xf32> to vector<4x256xf32>
    %c0_3 = arith.constant 0 : index
    %c0_4 = arith.constant 0 : index
    %5 = vector.load %arg5[%c0_3, %c0_4] : memref<1x256xf32, #tpu.memory_space<vmem>>, vector<1x256xf32>
    %cst = arith.constant dense<0.000000e+00> : vector<256xf32>
    %6 = vector.multi_reduction <add>, %4, %cst [0] : vector<4x256xf32> to vector<256xf32>
    %7 = vector.shape_cast %6 : vector<256xf32> to vector<1x256xf32>
    %8 = arith.addf %5, %7 : vector<1x256xf32>
    %c0_5 = arith.constant 0 : index
    %c0_6 = arith.constant 0 : index
    %9 = vector.load %arg5[%c0_5, %c0_6] : memref<1x256xf32, #tpu.memory_space<vmem>>, vector<1x256xf32>
    tpu.vector_store %arg5[%c0_5, %c0_6], %8 {strides = array<i32>} : memref<1x256xf32, #tpu.memory_space<vmem>>, vector<1x256xf32>,
    %c0_7 = arith.constant 0 : index
    %c0_8 = arith.constant 0 : index
    %10 = vector.load %arg6[%c0_7, %c0_8] : memref<1x256xf32, #tpu.memory_space<vmem>>, vector<1x256xf32>
    %cst_9 = arith.constant dense<0xFF800000> : vector<256xf32>
    %11 = vector.multi_reduction <maximumf>, %4, %cst_9 [0] : vector<4x256xf32> to vector<256xf32>
    %12 = vector.shape_cast %11 : vector<256xf32> to vector<1x256xf32>
    %13 = arith.maximumf %10, %12 : vector<1x256xf32>
    %c0_10 = arith.constant 0 : index
    %c0_11 = arith.constant 0 : index
    %14 = vector.load %arg6[%c0_10, %c0_11] : memref<1x256xf32, #tpu.memory_space<vmem>>, vector<1x256xf32>
    tpu.vector_store %arg6[%c0_10, %c0_11], %13 {strides = array<i32>} : memref<1x256xf32, #tpu.memory_space<vmem>>, vector<1x256xf32>,
    %c0_i32_12 = arith.constant 0 : i32
    %15 = arith.cmpi eq, %arg1, %c0_i32_12 : i32
    %16 = arith.extui %15 : i1 to i32
    %c0_i32_13 = arith.constant 0 : i32
    %17 = arith.cmpi ne, %16, %c0_i32_13 : i32
    scf.if %17 {
      %cst_14 = arith.constant 0.000000e+00 : f32
      %18 = vector.broadcast %cst_14 : f32 to vector<3x128xf32>
      %c0_15 = arith.constant 0 : index
      %c0_16 = arith.constant 0 : index
      %c0_17 = arith.constant 0 : index
      %19 = vector.load %arg7[%c0_15, %c0_16, %c0_17] : memref<2x22x128xf32, #tpu.memory_space<vmem>>, vector<1x3x128xf32>
      %20 = vector.shape_cast %19 : vector<1x3x128xf32> to vector<3x128xf32>
      %21 = vector.shape_cast %18 : vector<3x128xf32> to vector<1x3x128xf32>
      tpu.vector_store %arg7[%c0_15, %c0_16, %c0_17], %21 {strides = array<i32>} : memref<2x22x128xf32, #tpu.memory_space<vmem>>, vector<1x3x128xf32>,
      %c0_18 = arith.constant 0 : index
      %c19 = arith.constant 19 : index
      %c0_19 = arith.constant 0 : index
      %22 = vector.load %arg7[%c0_18, %c19, %c0_19] : memref<2x22x128xf32, #tpu.memory_space<vmem>>, vector<1x3x128xf32>
      %23 = vector.shape_cast %22 : vector<1x3x128xf32> to vector<3x128xf32>
      %24 = vector.shape_cast %18 : vector<3x128xf32> to vector<1x3x128xf32>
      tpu.vector_store %arg7[%c0_18, %c19, %c0_19], %24 {strides = array<i32>} : memref<2x22x128xf32, #tpu.memory_space<vmem>>, vector<1x3x128xf32>,
      %c1 = arith.constant 1 : index
      %c0_20 = arith.constant 0 : index
      %c0_21 = arith.constant 0 : index
      %25 = vector.load %arg7[%c1, %c0_20, %c0_21] : memref<2x22x128xf32, #tpu.memory_space<vmem>>, vector<1x3x128xf32>
      %26 = vector.shape_cast %25 : vector<1x3x128xf32> to vector<3x128xf32>
      %27 = vector.shape_cast %18 : vector<3x128xf32> to vector<1x3x128xf32>
      tpu.vector_store %arg7[%c1, %c0_20, %c0_21], %27 {strides = array<i32>} : memref<2x22x128xf32, #tpu.memory_space<vmem>>, vector<1x3x128xf32>,
      %c1_22 = arith.constant 1 : index
      %c19_23 = arith.constant 19 : index
      %c0_24 = arith.constant 0 : index
      %28 = vector.load %arg7[%c1_22, %c19_23, %c0_24] : memref<2x22x128xf32, #tpu.memory_space<vmem>>, vector<1x3x128xf32>
      %29 = vector.shape_cast %28 : vector<1x3x128xf32> to vector<3x128xf32>
      %30 = vector.shape_cast %18 : vector<3x128xf32> to vector<1x3x128xf32>
      tpu.vector_store %arg7[%c1_22, %c19_23, %c0_24], %30 {strides = array<i32>} : memref<2x22x128xf32, #tpu.memory_space<vmem>>, vector<1x3x128xf32>,
      %c0_25 = arith.constant 0 : index
      %c0_26 = arith.constant 0 : index
      %31 = vector.load %arg5[%c0_25, %c0_26] : memref<1x256xf32, #tpu.memory_space<vmem>>, vector<1x16xf32>
      %c0_27 = arith.constant 0 : index
      %c3 = arith.constant 3 : index
      %c0_28 = arith.constant 0 : index
      %32 = vector.load %arg7[%c0_27, %c3, %c0_28] : memref<2x22x128xf32, #tpu.memory_space<vmem>>, vector<1x1x16xf32>
      %33 = vector.shape_cast %32 : vector<1x1x16xf32> to vector<1x16xf32>
      %34 = vector.shape_cast %31 : vector<1x16xf32> to vector<1x1x16xf32>
      tpu.vector_store %arg7[%c0_27, %c3, %c0_28], %34 {strides = array<i32>} : memref<2x22x128xf32, #tpu.memory_space<vmem>>, vector<1x1x16xf32>,
      %c0_29 = arith.constant 0 : index
      %c0_30 = arith.constant 0 : index
      %35 = vector.load %arg6[%c0_29, %c0_30] : memref<1x256xf32, #tpu.memory_space<vmem>>, vector<1x16xf32>
      %c1_31 = arith.constant 1 : index
      %c3_32 = arith.constant 3 : index
      %c0_33 = arith.constant 0 : index
      %36 = vector.load %arg7[%c1_31, %c3_32, %c0_33] : memref<2x22x128xf32, #tpu.memory_space<vmem>>, vector<1x1x16xf32>
      %37 = vector.shape_cast %36 : vector<1x1x16xf32> to vector<1x16xf32>
      %38 = vector.shape_cast %35 : vector<1x16xf32> to vector<1x1x16xf32>
      tpu.vector_store %arg7[%c1_31, %c3_32, %c0_33], %38 {strides = array<i32>} : memref<2x22x128xf32, #tpu.memory_space<vmem>>, vector<1x1x16xf32>,
      %c0_34 = arith.constant 0 : index
      %c16 = arith.constant 16 : index
      %39 = vector.load %arg5[%c0_34, %c16] : memref<1x256xf32, #tpu.memory_space<vmem>>, vector<1x16xf32>
      %c0_35 = arith.constant 0 : index
      %c4 = arith.constant 4 : index
      %c0_36 = arith.constant 0 : index
      %40 = vector.load %arg7[%c0_35, %c4, %c0_36] : memref<2x22x128xf32, #tpu.memory_space<vmem>>, vector<1x1x16xf32>
      %41 = vector.shape_cast %40 : vector<1x1x16xf32> to vector<1x16xf32>
      %42 = vector.shape_cast %39 : vector<1x16xf32> to vector<1x1x16xf32>
      tpu.vector_store %arg7[%c0_35, %c4, %c0_36], %42 {strides = array<i32>} : memref<2x22x128xf32, #tpu.memory_space<vmem>>, vector<1x1x16xf32>,
      %c0_37 = arith.constant 0 : index
      %c16_38 = arith.constant 16 : index
      %43 = vector.load %arg6[%c0_37, %c16_38] : memref<1x256xf32, #tpu.memory_space<vmem>>, vector<1x16xf32>
      %c1_39 = arith.constant 1 : index
      %c4_40 = arith.constant 4 : index
      %c0_41 = arith.constant 0 : index
      %44 = vector.load %arg7[%c1_39, %c4_40, %c0_41] : memref<2x22x128xf32, #tpu.memory_space<vmem>>, vector<1x1x16xf32>
      %45 = vector.shape_cast %44 : vector<1x1x16xf32> to vector<1x16xf32>
      %46 = vector.shape_cast %43 : vector<1x16xf32> to vector<1x1x16xf32>
      tpu.vector_store %arg7[%c1_39, %c4_40, %c0_41], %46 {strides = array<i32>} : memref<2x22x128xf32, #tpu.memory_space<vmem>>, vector<1x1x16xf32>,
      %c0_42 = arith.constant 0 : index
      %c32 = arith.constant 32 : index
      %47 = vector.load %arg5[%c0_42, %c32] : memref<1x256xf32, #tpu.memory_space<vmem>>, vector<1x16xf32>
      %c0_43 = arith.constant 0 : index
      %c5 = arith.constant 5 : index
      %c0_44 = arith.constant 0 : index
      %48 = vector.load %arg7[%c0_43, %c5, %c0_44] : memref<2x22x128xf32, #tpu.memory_space<vmem>>, vector<1x1x16xf32>
      %49 = vector.shape_cast %48 : vector<1x1x16xf32> to vector<1x16xf32>
      %50 = vector.shape_cast %47 : vector<1x16xf32> to vector<1x1x16xf32>
      tpu.vector_store %arg7[%c0_43, %c5, %c0_44], %50 {strides = array<i32>} : memref<2x22x128xf32, #tpu.memory_space<vmem>>, vector<1x1x16xf32>,
      %c0_45 = arith.constant 0 : index
      %c32_46 = arith.constant 32 : index
      %51 = vector.load %arg6[%c0_45, %c32_46] : memref<1x256xf32, #tpu.memory_space<vmem>>, vector<1x16xf32>
      %c1_47 = arith.constant 1 : index
      %c5_48 = arith.constant 5 : index
      %c0_49 = arith.constant 0 : index
      %52 = vector.load %arg7[%c1_47, %c5_48, %c0_49] : memref<2x22x128xf32, #tpu.memory_space<vmem>>, vector<1x1x16xf32>
      %53 = vector.shape_cast %52 : vector<1x1x16xf32> to vector<1x16xf32>
      %54 = vector.shape_cast %51 : vector<1x16xf32> to vector<1x1x16xf32>
      tpu.vector_store %arg7[%c1_47, %c5_48, %c0_49], %54 {strides = array<i32>} : memref<2x22x128xf32, #tpu.memory_space<vmem>>, vector<1x1x16xf32>,
      %c0_50 = arith.constant 0 : index
      %c48 = arith.constant 48 : index
      %55 = vector.load %arg5[%c0_50, %c48] : memref<1x256xf32, #tpu.memory_space<vmem>>, vector<1x16xf32>
      %c0_51 = arith.constant 0 : index
      %c6 = arith.constant 6 : index
      %c0_52 = arith.constant 0 : index
      %56 = vector.load %arg7[%c0_51, %c6, %c0_52] : memref<2x22x128xf32, #tpu.memory_space<vmem>>, vector<1x1x16xf32>
      %57 = vector.shape_cast %56 : vector<1x1x16xf32> to vector<1x16xf32>
      %58 = vector.shape_cast %55 : vector<1x16xf32> to vector<1x1x16xf32>
      tpu.vector_store %arg7[%c0_51, %c6, %c0_52], %58 {strides = array<i32>} : memref<2x22x128xf32, #tpu.memory_space<vmem>>, vector<1x1x16xf32>,
      %c0_53 = arith.constant 0 : index
      %c48_54 = arith.constant 48 : index
      %59 = vector.load %arg6[%c0_53, %c48_54] : memref<1x256xf32, #tpu.memory_space<vmem>>, vector<1x16xf32>
      %c1_55 = arith.constant 1 : index
      %c6_56 = arith.constant 6 : index
      %c0_57 = arith.constant 0 : index
      %60 = vector.load %arg7[%c1_55, %c6_56, %c0_57] : memref<2x22x128xf32, #tpu.memory_space<vmem>>, vector<1x1x16xf32>
      %61 = vector.shape_cast %60 : vector<1x1x16xf32> to vector<1x16xf32>
      %62 = vector.shape_cast %59 : vector<1x16xf32> to vector<1x1x16xf32>
      tpu.vector_store %arg7[%c1_55, %c6_56, %c0_57], %62 {strides = array<i32>} : memref<2x22x128xf32, #tpu.memory_space<vmem>>, vector<1x1x16xf32>,
      %c0_58 = arith.constant 0 : index
      %c64 = arith.constant 64 : index
      %63 = vector.load %arg5[%c0_58, %c64] : memref<1x256xf32, #tpu.memory_space<vmem>>, vector<1x16xf32>
      %c0_59 = arith.constant 0 : index
      %c7 = arith.constant 7 : index
      %c0_60 = arith.constant 0 : index
      %64 = vector.load %arg7[%c0_59, %c7, %c0_60] : memref<2x22x128xf32, #tpu.memory_space<vmem>>, vector<1x1x16xf32>
      %65 = vector.shape_cast %64 : vector<1x1x16xf32> to vector<1x16xf32>
      %66 = vector.shape_cast %63 : vector<1x16xf32> to vector<1x1x16xf32>
      tpu.vector_store %arg7[%c0_59, %c7, %c0_60], %66 {strides = array<i32>} : memref<2x22x128xf32, #tpu.memory_space<vmem>>, vector<1x1x16xf32>,
      %c0_61 = arith.constant 0 : index
      %c64_62 = arith.constant 64 : index
      %67 = vector.load %arg6[%c0_61, %c64_62] : memref<1x256xf32, #tpu.memory_space<vmem>>, vector<1x16xf32>
      %c1_63 = arith.constant 1 : index
      %c7_64 = arith.constant 7 : index
      %c0_65 = arith.constant 0 : index
      %68 = vector.load %arg7[%c1_63, %c7_64, %c0_65] : memref<2x22x128xf32, #tpu.memory_space<vmem>>, vector<1x1x16xf32>
      %69 = vector.shape_cast %68 : vector<1x1x16xf32> to vector<1x16xf32>
      %70 = vector.shape_cast %67 : vector<1x16xf32> to vector<1x1x16xf32>
      tpu.vector_store %arg7[%c1_63, %c7_64, %c0_65], %70 {strides = array<i32>} : memref<2x22x128xf32, #tpu.memory_space<vmem>>, vector<1x1x16xf32>,
      %c0_66 = arith.constant 0 : index
      %c80 = arith.constant 80 : index
      %71 = vector.load %arg5[%c0_66, %c80] : memref<1x256xf32, #tpu.memory_space<vmem>>, vector<1x16xf32>
      %c0_67 = arith.constant 0 : index
      %c8 = arith.constant 8 : index
      %c0_68 = arith.constant 0 : index
      %72 = vector.load %arg7[%c0_67, %c8, %c0_68] : memref<2x22x128xf32, #tpu.memory_space<vmem>>, vector<1x1x16xf32>
      %73 = vector.shape_cast %72 : vector<1x1x16xf32> to vector<1x16xf32>
      %74 = vector.shape_cast %71 : vector<1x16xf32> to vector<1x1x16xf32>
      tpu.vector_store %arg7[%c0_67, %c8, %c0_68], %74 {strides = array<i32>} : memref<2x22x128xf32, #tpu.memory_space<vmem>>, vector<1x1x16xf32>,
      %c0_69 = arith.constant 0 : index
      %c80_70 = arith.constant 80 : index
      %75 = vector.load %arg6[%c0_69, %c80_70] : memref<1x256xf32, #tpu.memory_space<vmem>>, vector<1x16xf32>
      %c1_71 = arith.constant 1 : index
      %c8_72 = arith.constant 8 : index
      %c0_73 = arith.constant 0 : index
      %76 = vector.load %arg7[%c1_71, %c8_72, %c0_73] : memref<2x22x128xf32, #tpu.memory_space<vmem>>, vector<1x1x16xf32>
      %77 = vector.shape_cast %76 : vector<1x1x16xf32> to vector<1x16xf32>
      %78 = vector.shape_cast %75 : vector<1x16xf32> to vector<1x1x16xf32>
      tpu.vector_store %arg7[%c1_71, %c8_72, %c0_73], %78 {strides = array<i32>} : memref<2x22x128xf32, #tpu.memory_space<vmem>>, vector<1x1x16xf32>,
      %c0_74 = arith.constant 0 : index
      %c96 = arith.constant 96 : index
      %79 = vector.load %arg5[%c0_74, %c96] : memref<1x256xf32, #tpu.memory_space<vmem>>, vector<1x16xf32>
      %c0_75 = arith.constant 0 : index
      %c9 = arith.constant 9 : index
      %c0_76 = arith.constant 0 : index
      %80 = vector.load %arg7[%c0_75, %c9, %c0_76] : memref<2x22x128xf32, #tpu.memory_space<vmem>>, vector<1x1x16xf32>
      %81 = vector.shape_cast %80 : vector<1x1x16xf32> to vector<1x16xf32>
      %82 = vector.shape_cast %79 : vector<1x16xf32> to vector<1x1x16xf32>
      tpu.vector_store %arg7[%c0_75, %c9, %c0_76], %82 {strides = array<i32>} : memref<2x22x128xf32, #tpu.memory_space<vmem>>, vector<1x1x16xf32>,
      %c0_77 = arith.constant 0 : index
      %c96_78 = arith.constant 96 : index
      %83 = vector.load %arg6[%c0_77, %c96_78] : memref<1x256xf32, #tpu.memory_space<vmem>>, vector<1x16xf32>
      %c1_79 = arith.constant 1 : index
      %c9_80 = arith.constant 9 : index
      %c0_81 = arith.constant 0 : index
      %84 = vector.load %arg7[%c1_79, %c9_80, %c0_81] : memref<2x22x128xf32, #tpu.memory_space<vmem>>, vector<1x1x16xf32>
      %85 = vector.shape_cast %84 : vector<1x1x16xf32> to vector<1x16xf32>
      %86 = vector.shape_cast %83 : vector<1x16xf32> to vector<1x1x16xf32>
      tpu.vector_store %arg7[%c1_79, %c9_80, %c0_81], %86 {strides = array<i32>} : memref<2x22x128xf32, #tpu.memory_space<vmem>>, vector<1x1x16xf32>,
      %c0_82 = arith.constant 0 : index
      %c112 = arith.constant 112 : index
      %87 = vector.load %arg5[%c0_82, %c112] : memref<1x256xf32, #tpu.memory_space<vmem>>, vector<1x16xf32>
      %c0_83 = arith.constant 0 : index
      %c10 = arith.constant 10 : index
      %c0_84 = arith.constant 0 : index
      %88 = vector.load %arg7[%c0_83, %c10, %c0_84] : memref<2x22x128xf32, #tpu.memory_space<vmem>>, vector<1x1x16xf32>
      %89 = vector.shape_cast %88 : vector<1x1x16xf32> to vector<1x16xf32>
      %90 = vector.shape_cast %87 : vector<1x16xf32> to vector<1x1x16xf32>
      tpu.vector_store %arg7[%c0_83, %c10, %c0_84], %90 {strides = array<i32>} : memref<2x22x128xf32, #tpu.memory_space<vmem>>, vector<1x1x16xf32>,
      %c0_85 = arith.constant 0 : index
      %c112_86 = arith.constant 112 : index
      %91 = vector.load %arg6[%c0_85, %c112_86] : memref<1x256xf32, #tpu.memory_space<vmem>>, vector<1x16xf32>
      %c1_87 = arith.constant 1 : index
      %c10_88 = arith.constant 10 : index
      %c0_89 = arith.constant 0 : index
      %92 = vector.load %arg7[%c1_87, %c10_88, %c0_89] : memref<2x22x128xf32, #tpu.memory_space<vmem>>, vector<1x1x16xf32>
      %93 = vector.shape_cast %92 : vector<1x1x16xf32> to vector<1x16xf32>
      %94 = vector.shape_cast %91 : vector<1x16xf32> to vector<1x1x16xf32>
      tpu.vector_store %arg7[%c1_87, %c10_88, %c0_89], %94 {strides = array<i32>} : memref<2x22x128xf32, #tpu.memory_space<vmem>>, vector<1x1x16xf32>,
      %c0_90 = arith.constant 0 : index
      %c128 = arith.constant 128 : index
      %95 = vector.load %arg5[%c0_90, %c128] : memref<1x256xf32, #tpu.memory_space<vmem>>, vector<1x16xf32>
      %c0_91 = arith.constant 0 : index
      %c11 = arith.constant 11 : index
      %c0_92 = arith.constant 0 : index
      %96 = vector.load %arg7[%c0_91, %c11, %c0_92] : memref<2x22x128xf32, #tpu.memory_space<vmem>>, vector<1x1x16xf32>
      %97 = vector.shape_cast %96 : vector<1x1x16xf32> to vector<1x16xf32>
      %98 = vector.shape_cast %95 : vector<1x16xf32> to vector<1x1x16xf32>
      tpu.vector_store %arg7[%c0_91, %c11, %c0_92], %98 {strides = array<i32>} : memref<2x22x128xf32, #tpu.memory_space<vmem>>, vector<1x1x16xf32>,
      %c0_93 = arith.constant 0 : index
      %c128_94 = arith.constant 128 : index
      %99 = vector.load %arg6[%c0_93, %c128_94] : memref<1x256xf32, #tpu.memory_space<vmem>>, vector<1x16xf32>
      %c1_95 = arith.constant 1 : index
      %c11_96 = arith.constant 11 : index
      %c0_97 = arith.constant 0 : index
      %100 = vector.load %arg7[%c1_95, %c11_96, %c0_97] : memref<2x22x128xf32, #tpu.memory_space<vmem>>, vector<1x1x16xf32>
      %101 = vector.shape_cast %100 : vector<1x1x16xf32> to vector<1x16xf32>
      %102 = vector.shape_cast %99 : vector<1x16xf32> to vector<1x1x16xf32>
      tpu.vector_store %arg7[%c1_95, %c11_96, %c0_97], %102 {strides = array<i32>} : memref<2x22x128xf32, #tpu.memory_space<vmem>>, vector<1x1x16xf32>,
      %c0_98 = arith.constant 0 : index
      %c144 = arith.constant 144 : index
      %103 = vector.load %arg5[%c0_98, %c144] : memref<1x256xf32, #tpu.memory_space<vmem>>, vector<1x16xf32>
      %c0_99 = arith.constant 0 : index
      %c12 = arith.constant 12 : index
      %c0_100 = arith.constant 0 : index
      %104 = vector.load %arg7[%c0_99, %c12, %c0_100] : memref<2x22x128xf32, #tpu.memory_space<vmem>>, vector<1x1x16xf32>
      %105 = vector.shape_cast %104 : vector<1x1x16xf32> to vector<1x16xf32>
      %106 = vector.shape_cast %103 : vector<1x16xf32> to vector<1x1x16xf32>
      tpu.vector_store %arg7[%c0_99, %c12, %c0_100], %106 {strides = array<i32>} : memref<2x22x128xf32, #tpu.memory_space<vmem>>, vector<1x1x16xf32>,
      %c0_101 = arith.constant 0 : index
      %c144_102 = arith.constant 144 : index
      %107 = vector.load %arg6[%c0_101, %c144_102] : memref<1x256xf32, #tpu.memory_space<vmem>>, vector<1x16xf32>
      %c1_103 = arith.constant 1 : index
      %c12_104 = arith.constant 12 : index
      %c0_105 = arith.constant 0 : index
      %108 = vector.load %arg7[%c1_103, %c12_104, %c0_105] : memref<2x22x128xf32, #tpu.memory_space<vmem>>, vector<1x1x16xf32>
      %109 = vector.shape_cast %108 : vector<1x1x16xf32> to vector<1x16xf32>
      %110 = vector.shape_cast %107 : vector<1x16xf32> to vector<1x1x16xf32>
      tpu.vector_store %arg7[%c1_103, %c12_104, %c0_105], %110 {strides = array<i32>} : memref<2x22x128xf32, #tpu.memory_space<vmem>>, vector<1x1x16xf32>,
      %c0_106 = arith.constant 0 : index
      %c160 = arith.constant 160 : index
      %111 = vector.load %arg5[%c0_106, %c160] : memref<1x256xf32, #tpu.memory_space<vmem>>, vector<1x16xf32>
      %c0_107 = arith.constant 0 : index
      %c13 = arith.constant 13 : index
      %c0_108 = arith.constant 0 : index
      %112 = vector.load %arg7[%c0_107, %c13, %c0_108] : memref<2x22x128xf32, #tpu.memory_space<vmem>>, vector<1x1x16xf32>
      %113 = vector.shape_cast %112 : vector<1x1x16xf32> to vector<1x16xf32>
      %114 = vector.shape_cast %111 : vector<1x16xf32> to vector<1x1x16xf32>
      tpu.vector_store %arg7[%c0_107, %c13, %c0_108], %114 {strides = array<i32>} : memref<2x22x128xf32, #tpu.memory_space<vmem>>, vector<1x1x16xf32>,
      %c0_109 = arith.constant 0 : index
      %c160_110 = arith.constant 160 : index
      %115 = vector.load %arg6[%c0_109, %c160_110] : memref<1x256xf32, #tpu.memory_space<vmem>>, vector<1x16xf32>
      %c1_111 = arith.constant 1 : index
      %c13_112 = arith.constant 13 : index
      %c0_113 = arith.constant 0 : index
      %116 = vector.load %arg7[%c1_111, %c13_112, %c0_113] : memref<2x22x128xf32, #tpu.memory_space<vmem>>, vector<1x1x16xf32>
      %117 = vector.shape_cast %116 : vector<1x1x16xf32> to vector<1x16xf32>
      %118 = vector.shape_cast %115 : vector<1x16xf32> to vector<1x1x16xf32>
      tpu.vector_store %arg7[%c1_111, %c13_112, %c0_113], %118 {strides = array<i32>} : memref<2x22x128xf32, #tpu.memory_space<vmem>>, vector<1x1x16xf32>,
      %c0_114 = arith.constant 0 : index
      %c176 = arith.constant 176 : index
      %119 = vector.load %arg5[%c0_114, %c176] : memref<1x256xf32, #tpu.memory_space<vmem>>, vector<1x16xf32>
      %c0_115 = arith.constant 0 : index
      %c14 = arith.constant 14 : index
      %c0_116 = arith.constant 0 : index
      %120 = vector.load %arg7[%c0_115, %c14, %c0_116] : memref<2x22x128xf32, #tpu.memory_space<vmem>>, vector<1x1x16xf32>
      %121 = vector.shape_cast %120 : vector<1x1x16xf32> to vector<1x16xf32>
      %122 = vector.shape_cast %119 : vector<1x16xf32> to vector<1x1x16xf32>
      tpu.vector_store %arg7[%c0_115, %c14, %c0_116], %122 {strides = array<i32>} : memref<2x22x128xf32, #tpu.memory_space<vmem>>, vector<1x1x16xf32>,
      %c0_117 = arith.constant 0 : index
      %c176_118 = arith.constant 176 : index
      %123 = vector.load %arg6[%c0_117, %c176_118] : memref<1x256xf32, #tpu.memory_space<vmem>>, vector<1x16xf32>
      %c1_119 = arith.constant 1 : index
      %c14_120 = arith.constant 14 : index
      %c0_121 = arith.constant 0 : index
      %124 = vector.load %arg7[%c1_119, %c14_120, %c0_121] : memref<2x22x128xf32, #tpu.memory_space<vmem>>, vector<1x1x16xf32>
      %125 = vector.shape_cast %124 : vector<1x1x16xf32> to vector<1x16xf32>
      %126 = vector.shape_cast %123 : vector<1x16xf32> to vector<1x1x16xf32>
      tpu.vector_store %arg7[%c1_119, %c14_120, %c0_121], %126 {strides = array<i32>} : memref<2x22x128xf32, #tpu.memory_space<vmem>>, vector<1x1x16xf32>,
      %c0_122 = arith.constant 0 : index
      %c192 = arith.constant 192 : index
      %127 = vector.load %arg5[%c0_122, %c192] : memref<1x256xf32, #tpu.memory_space<vmem>>, vector<1x16xf32>
      %c0_123 = arith.constant 0 : index
      %c15 = arith.constant 15 : index
      %c0_124 = arith.constant 0 : index
      %128 = vector.load %arg7[%c0_123, %c15, %c0_124] : memref<2x22x128xf32, #tpu.memory_space<vmem>>, vector<1x1x16xf32>
      %129 = vector.shape_cast %128 : vector<1x1x16xf32> to vector<1x16xf32>
      %130 = vector.shape_cast %127 : vector<1x16xf32> to vector<1x1x16xf32>
      tpu.vector_store %arg7[%c0_123, %c15, %c0_124], %130 {strides = array<i32>} : memref<2x22x128xf32, #tpu.memory_space<vmem>>, vector<1x1x16xf32>,
      %c0_125 = arith.constant 0 : index
      %c192_126 = arith.constant 192 : index
      %131 = vector.load %arg6[%c0_125, %c192_126] : memref<1x256xf32, #tpu.memory_space<vmem>>, vector<1x16xf32>
      %c1_127 = arith.constant 1 : index
      %c15_128 = arith.constant 15 : index
      %c0_129 = arith.constant 0 : index
      %132 = vector.load %arg7[%c1_127, %c15_128, %c0_129] : memref<2x22x128xf32, #tpu.memory_space<vmem>>, vector<1x1x16xf32>
      %133 = vector.shape_cast %132 : vector<1x1x16xf32> to vector<1x16xf32>
      %134 = vector.shape_cast %131 : vector<1x16xf32> to vector<1x1x16xf32>
      tpu.vector_store %arg7[%c1_127, %c15_128, %c0_129], %134 {strides = array<i32>} : memref<2x22x128xf32, #tpu.memory_space<vmem>>, vector<1x1x16xf32>,
      %c0_130 = arith.constant 0 : index
      %c208 = arith.constant 208 : index
      %135 = vector.load %arg5[%c0_130, %c208] : memref<1x256xf32, #tpu.memory_space<vmem>>, vector<1x16xf32>
      %c0_131 = arith.constant 0 : index
      %c16_132 = arith.constant 16 : index
      %c0_133 = arith.constant 0 : index
      %136 = vector.load %arg7[%c0_131, %c16_132, %c0_133] : memref<2x22x128xf32, #tpu.memory_space<vmem>>, vector<1x1x16xf32>
      %137 = vector.shape_cast %136 : vector<1x1x16xf32> to vector<1x16xf32>
      %138 = vector.shape_cast %135 : vector<1x16xf32> to vector<1x1x16xf32>
      tpu.vector_store %arg7[%c0_131, %c16_132, %c0_133], %138 {strides = array<i32>} : memref<2x22x128xf32, #tpu.memory_space<vmem>>, vector<1x1x16xf32>,
      %c0_134 = arith.constant 0 : index
      %c208_135 = arith.constant 208 : index
      %139 = vector.load %arg6[%c0_134, %c208_135] : memref<1x256xf32, #tpu.memory_space<vmem>>, vector<1x16xf32>
      %c1_136 = arith.constant 1 : index
      %c16_137 = arith.constant 16 : index
      %c0_138 = arith.constant 0 : index
      %140 = vector.load %arg7[%c1_136, %c16_137, %c0_138] : memref<2x22x128xf32, #tpu.memory_space<vmem>>, vector<1x1x16xf32>
      %141 = vector.shape_cast %140 : vector<1x1x16xf32> to vector<1x16xf32>
      %142 = vector.shape_cast %139 : vector<1x16xf32> to vector<1x1x16xf32>
      tpu.vector_store %arg7[%c1_136, %c16_137, %c0_138], %142 {strides = array<i32>} : memref<2x22x128xf32, #tpu.memory_space<vmem>>, vector<1x1x16xf32>,
      %c0_139 = arith.constant 0 : index
      %c224 = arith.constant 224 : index
      %143 = vector.load %arg5[%c0_139, %c224] : memref<1x256xf32, #tpu.memory_space<vmem>>, vector<1x16xf32>
      %c0_140 = arith.constant 0 : index
      %c17 = arith.constant 17 : index
      %c0_141 = arith.constant 0 : index
      %144 = vector.load %arg7[%c0_140, %c17, %c0_141] : memref<2x22x128xf32, #tpu.memory_space<vmem>>, vector<1x1x16xf32>
      %145 = vector.shape_cast %144 : vector<1x1x16xf32> to vector<1x16xf32>
      %146 = vector.shape_cast %143 : vector<1x16xf32> to vector<1x1x16xf32>
      tpu.vector_store %arg7[%c0_140, %c17, %c0_141], %146 {strides = array<i32>} : memref<2x22x128xf32, #tpu.memory_space<vmem>>, vector<1x1x16xf32>,
      %c0_142 = arith.constant 0 : index
      %c224_143 = arith.constant 224 : index
      %147 = vector.load %arg6[%c0_142, %c224_143] : memref<1x256xf32, #tpu.memory_space<vmem>>, vector<1x16xf32>
      %c1_144 = arith.constant 1 : index
      %c17_145 = arith.constant 17 : index
      %c0_146 = arith.constant 0 : index
      %148 = vector.load %arg7[%c1_144, %c17_145, %c0_146] : memref<2x22x128xf32, #tpu.memory_space<vmem>>, vector<1x1x16xf32>
      %149 = vector.shape_cast %148 : vector<1x1x16xf32> to vector<1x16xf32>
      %150 = vector.shape_cast %147 : vector<1x16xf32> to vector<1x1x16xf32>
      tpu.vector_store %arg7[%c1_144, %c17_145, %c0_146], %150 {strides = array<i32>} : memref<2x22x128xf32, #tpu.memory_space<vmem>>, vector<1x1x16xf32>,
      %c0_147 = arith.constant 0 : index
      %c240 = arith.constant 240 : index
      %151 = vector.load %arg5[%c0_147, %c240] : memref<1x256xf32, #tpu.memory_space<vmem>>, vector<1x16xf32>
      %c0_148 = arith.constant 0 : index
      %c18 = arith.constant 18 : index
      %c0_149 = arith.constant 0 : index
      %152 = vector.load %arg7[%c0_148, %c18, %c0_149] : memref<2x22x128xf32, #tpu.memory_space<vmem>>, vector<1x1x16xf32>
      %153 = vector.shape_cast %152 : vector<1x1x16xf32> to vector<1x16xf32>
      %154 = vector.shape_cast %151 : vector<1x16xf32> to vector<1x1x16xf32>
      tpu.vector_store %arg7[%c0_148, %c18, %c0_149], %154 {strides = array<i32>} : memref<2x22x128xf32, #tpu.memory_space<vmem>>, vector<1x1x16xf32>,
      %c0_150 = arith.constant 0 : index
      %c240_151 = arith.constant 240 : index
      %155 = vector.load %arg6[%c0_150, %c240_151] : memref<1x256xf32, #tpu.memory_space<vmem>>, vector<1x16xf32>
      %c1_152 = arith.constant 1 : index
      %c18_153 = arith.constant 18 : index
      %c0_154 = arith.constant 0 : index
      %156 = vector.load %arg7[%c1_152, %c18_153, %c0_154] : memref<2x22x128xf32, #tpu.memory_space<vmem>>, vector<1x1x16xf32>
      %157 = vector.shape_cast %156 : vector<1x1x16xf32> to vector<1x16xf32>
      %158 = vector.shape_cast %155 : vector<1x16xf32> to vector<1x1x16xf32>
      tpu.vector_store %arg7[%c1_152, %c18_153, %c0_154], %158 {strides = array<i32>} : memref<2x22x128xf32, #tpu.memory_space<vmem>>, vector<1x1x16xf32>,
      %159 = tpu.iota {dimensions = array<i32: 1>} : vector<8x128xi32>
      %c16_i32 = arith.constant 16 : i32
      %160 = vector.broadcast %c16_i32 : i32 to vector<8x128xi32>
      %161 = arith.cmpi slt, %159, %160 : vector<8x128xi32>
      %cst_155 = arith.constant 0.000000e+00 : f32
      %162 = vector.broadcast %cst_155 : f32 to vector<8x128xf32>
      %cst_156 = arith.constant 0.000000e+00 : f32
      %163 = vector.broadcast %cst_156 : f32 to vector<8x128xf32>
      %cst_157 = arith.constant 0.000000e+00 : f32
      %164 = vector.broadcast %cst_157 : f32 to vector<8x128xf32>
      %cst_158 = arith.constant 0.000000e+00 : f32
      %165 = vector.broadcast %cst_158 : f32 to vector<8x128xf32>
      %cst_159 = arith.constant 0.000000e+00 : f32
      %166 = vector.broadcast %cst_159 : f32 to vector<8x128xf32>
      %cst_160 = arith.constant 0.000000e+00 : f32
      %167 = vector.broadcast %cst_160 : f32 to vector<8x128xf32>
      %cst_161 = arith.constant 0.000000e+00 : f32
      %168 = vector.broadcast %cst_161 : f32 to vector<8x128xf32>
      %c0_162 = arith.constant 0 : index
      %c0_163 = arith.constant 0 : index
      %c0_164 = arith.constant 0 : index
      %169 = vector.load %arg7[%c0_162, %c0_163, %c0_164] : memref<2x22x128xf32, #tpu.memory_space<vmem>>, vector<1x8x128xf32>
      %170 = vector.shape_cast %169 : vector<1x8x128xf32> to vector<8x128xf32>
      %c0_165 = arith.constant 0 : index
      %171 = memref.load %arg3[%c0_165] : memref<98xf32, #tpu.memory_space<smem>>
      %172 = vector.broadcast %171 : f32 to vector<8x128xf32>
      %173 = arith.mulf %172, %170 : vector<8x128xf32>
      %174 = arith.addf %162, %173 : vector<8x128xf32>
      %c1_166 = arith.constant 1 : index
      %175 = memref.load %arg3[%c1_166] : memref<98xf32, #tpu.memory_space<smem>>
      %176 = vector.broadcast %175 : f32 to vector<8x128xf32>
      %177 = arith.mulf %176, %170 : vector<8x128xf32>
      %178 = arith.addf %163, %177 : vector<8x128xf32>
      %c2 = arith.constant 2 : index
      %179 = memref.load %arg3[%c2] : memref<98xf32, #tpu.memory_space<smem>>
      %180 = vector.broadcast %179 : f32 to vector<8x128xf32>
      %181 = arith.mulf %180, %170 : vector<8x128xf32>
      %182 = arith.addf %164, %181 : vector<8x128xf32>
      %c3_167 = arith.constant 3 : index
      %183 = memref.load %arg3[%c3_167] : memref<98xf32, #tpu.memory_space<smem>>
      %184 = vector.broadcast %183 : f32 to vector<8x128xf32>
      %185 = arith.mulf %184, %170 : vector<8x128xf32>
      %186 = arith.addf %165, %185 : vector<8x128xf32>
      %c4_168 = arith.constant 4 : index
      %187 = memref.load %arg3[%c4_168] : memref<98xf32, #tpu.memory_space<smem>>
      %188 = vector.broadcast %187 : f32 to vector<8x128xf32>
      %189 = arith.mulf %188, %170 : vector<8x128xf32>
      %190 = arith.addf %166, %189 : vector<8x128xf32>
      %c5_169 = arith.constant 5 : index
      %191 = memref.load %arg3[%c5_169] : memref<98xf32, #tpu.memory_space<smem>>
      %192 = vector.broadcast %191 : f32 to vector<8x128xf32>
      %193 = arith.mulf %192, %170 : vector<8x128xf32>
      %194 = arith.addf %167, %193 : vector<8x128xf32>
      %c6_170 = arith.constant 6 : index
      %195 = memref.load %arg3[%c6_170] : memref<98xf32, #tpu.memory_space<smem>>
      %196 = vector.broadcast %195 : f32 to vector<8x128xf32>
      %197 = arith.mulf %196, %170 : vector<8x128xf32>
      %198 = arith.addf %168, %197 : vector<8x128xf32>
      %c0_171 = arith.constant 0 : index
      %c1_172 = arith.constant 1 : index
      %c0_173 = arith.constant 0 : index
      %199 = vector.load %arg7[%c0_171, %c1_172, %c0_173] : memref<2x22x128xf32, #tpu.memory_space<vmem>>, vector<1x8x128xf32>
      %200 = vector.shape_cast %199 : vector<1x8x128xf32> to vector<8x128xf32>
      %c7_174 = arith.constant 7 : index
      %201 = memref.load %arg3[%c7_174] : memref<98xf32, #tpu.memory_space<smem>>
      %202 = vector.broadcast %201 : f32 to vector<8x128xf32>
      %203 = arith.mulf %202, %200 : vector<8x128xf32>
      %204 = arith.addf %174, %203 : vector<8x128xf32>
      %c8_175 = arith.constant 8 : index
      %205 = memref.load %arg3[%c8_175] : memref<98xf32, #tpu.memory_space<smem>>
      %206 = vector.broadcast %205 : f32 to vector<8x128xf32>
      %207 = arith.mulf %206, %200 : vector<8x128xf32>
      %208 = arith.addf %178, %207 : vector<8x128xf32>
      %c9_176 = arith.constant 9 : index
      %209 = memref.load %arg3[%c9_176] : memref<98xf32, #tpu.memory_space<smem>>
      %210 = vector.broadcast %209 : f32 to vector<8x128xf32>
      %211 = arith.mulf %210, %200 : vector<8x128xf32>
      %212 = arith.addf %182, %211 : vector<8x128xf32>
      %c10_177 = arith.constant 10 : index
      %213 = memref.load %arg3[%c10_177] : memref<98xf32, #tpu.memory_space<smem>>
      %214 = vector.broadcast %213 : f32 to vector<8x128xf32>
      %215 = arith.mulf %214, %200 : vector<8x128xf32>
      %216 = arith.addf %186, %215 : vector<8x128xf32>
      %c11_178 = arith.constant 11 : index
      %217 = memref.load %arg3[%c11_178] : memref<98xf32, #tpu.memory_space<smem>>
      %218 = vector.broadcast %217 : f32 to vector<8x128xf32>
      %219 = arith.mulf %218, %200 : vector<8x128xf32>
      %220 = arith.addf %190, %219 : vector<8x128xf32>
      %c12_179 = arith.constant 12 : index
      %221 = memref.load %arg3[%c12_179] : memref<98xf32, #tpu.memory_space<smem>>
      %222 = vector.broadcast %221 : f32 to vector<8x128xf32>
      %223 = arith.mulf %222, %200 : vector<8x128xf32>
      %224 = arith.addf %194, %223 : vector<8x128xf32>
      %c13_180 = arith.constant 13 : index
      %225 = memref.load %arg3[%c13_180] : memref<98xf32, #tpu.memory_space<smem>>
      %226 = vector.broadcast %225 : f32 to vector<8x128xf32>
      %227 = arith.mulf %226, %200 : vector<8x128xf32>
      %228 = arith.addf %198, %227 : vector<8x128xf32>
      %c0_181 = arith.constant 0 : index
      %c2_182 = arith.constant 2 : index
      %c0_183 = arith.constant 0 : index
      %229 = vector.load %arg7[%c0_181, %c2_182, %c0_183] : memref<2x22x128xf32, #tpu.memory_space<vmem>>, vector<1x8x128xf32>
      %230 = vector.shape_cast %229 : vector<1x8x128xf32> to vector<8x128xf32>
      %c14_184 = arith.constant 14 : index
      %231 = memref.load %arg3[%c14_184] : memref<98xf32, #tpu.memory_space<smem>>
      %232 = vector.broadcast %231 : f32 to vector<8x128xf32>
      %233 = arith.mulf %232, %230 : vector<8x128xf32>
      %234 = arith.addf %204, %233 : vector<8x128xf32>
      %c15_185 = arith.constant 15 : index
      %235 = memref.load %arg3[%c15_185] : memref<98xf32, #tpu.memory_space<smem>>
      %236 = vector.broadcast %235 : f32 to vector<8x128xf32>
      %237 = arith.mulf %236, %230 : vector<8x128xf32>
      %238 = arith.addf %208, %237 : vector<8x128xf32>
      %c16_186 = arith.constant 16 : index
      %239 = memref.load %arg3[%c16_186] : memref<98xf32, #tpu.memory_space<smem>>
      %240 = vector.broadcast %239 : f32 to vector<8x128xf32>
      %241 = arith.mulf %240, %230 : vector<8x128xf32>
      %242 = arith.addf %212, %241 : vector<8x128xf32>
      %c17_187 = arith.constant 17 : index
      %243 = memref.load %arg3[%c17_187] : memref<98xf32, #tpu.memory_space<smem>>
      %244 = vector.broadcast %243 : f32 to vector<8x128xf32>
      %245 = arith.mulf %244, %230 : vector<8x128xf32>
      %246 = arith.addf %216, %245 : vector<8x128xf32>
      %c18_188 = arith.constant 18 : index
      %247 = memref.load %arg3[%c18_188] : memref<98xf32, #tpu.memory_space<smem>>
      %248 = vector.broadcast %247 : f32 to vector<8x128xf32>
      %249 = arith.mulf %248, %230 : vector<8x128xf32>
      %250 = arith.addf %220, %249 : vector<8x128xf32>
      %c19_189 = arith.constant 19 : index
      %251 = memref.load %arg3[%c19_189] : memref<98xf32, #tpu.memory_space<smem>>
      %252 = vector.broadcast %251 : f32 to vector<8x128xf32>
      %253 = arith.mulf %252, %230 : vector<8x128xf32>
      %254 = arith.addf %224, %253 : vector<8x128xf32>
      %c20 = arith.constant 20 : index
      %255 = memref.load %arg3[%c20] : memref<98xf32, #tpu.memory_space<smem>>
      %256 = vector.broadcast %255 : f32 to vector<8x128xf32>
      %257 = arith.mulf %256, %230 : vector<8x128xf32>
      %258 = arith.addf %228, %257 : vector<8x128xf32>
      %c0_190 = arith.constant 0 : index
      %c3_191 = arith.constant 3 : index
      %c0_192 = arith.constant 0 : index
      %259 = vector.load %arg7[%c0_190, %c3_191, %c0_192] : memref<2x22x128xf32, #tpu.memory_space<vmem>>, vector<1x8x128xf32>
      %260 = vector.shape_cast %259 : vector<1x8x128xf32> to vector<8x128xf32>
      %c21 = arith.constant 21 : index
      %261 = memref.load %arg3[%c21] : memref<98xf32, #tpu.memory_space<smem>>
      %262 = vector.broadcast %261 : f32 to vector<8x128xf32>
      %263 = arith.mulf %262, %260 : vector<8x128xf32>
      %264 = arith.addf %234, %263 : vector<8x128xf32>
      %c22 = arith.constant 22 : index
      %265 = memref.load %arg3[%c22] : memref<98xf32, #tpu.memory_space<smem>>
      %266 = vector.broadcast %265 : f32 to vector<8x128xf32>
      %267 = arith.mulf %266, %260 : vector<8x128xf32>
      %268 = arith.addf %238, %267 : vector<8x128xf32>
      %c23 = arith.constant 23 : index
      %269 = memref.load %arg3[%c23] : memref<98xf32, #tpu.memory_space<smem>>
      %270 = vector.broadcast %269 : f32 to vector<8x128xf32>
      %271 = arith.mulf %270, %260 : vector<8x128xf32>
      %272 = arith.addf %242, %271 : vector<8x128xf32>
      %c24 = arith.constant 24 : index
      %273 = memref.load %arg3[%c24] : memref<98xf32, #tpu.memory_space<smem>>
      %274 = vector.broadcast %273 : f32 to vector<8x128xf32>
      %275 = arith.mulf %274, %260 : vector<8x128xf32>
      %276 = arith.addf %246, %275 : vector<8x128xf32>
      %c25 = arith.constant 25 : index
      %277 = memref.load %arg3[%c25] : memref<98xf32, #tpu.memory_space<smem>>
      %278 = vector.broadcast %277 : f32 to vector<8x128xf32>
      %279 = arith.mulf %278, %260 : vector<8x128xf32>
      %280 = arith.addf %250, %279 : vector<8x128xf32>
      %c26 = arith.constant 26 : index
      %281 = memref.load %arg3[%c26] : memref<98xf32, #tpu.memory_space<smem>>
      %282 = vector.broadcast %281 : f32 to vector<8x128xf32>
      %283 = arith.mulf %282, %260 : vector<8x128xf32>
      %284 = arith.addf %254, %283 : vector<8x128xf32>
      %c27 = arith.constant 27 : index
      %285 = memref.load %arg3[%c27] : memref<98xf32, #tpu.memory_space<smem>>
      %286 = vector.broadcast %285 : f32 to vector<8x128xf32>
      %287 = arith.mulf %286, %260 : vector<8x128xf32>
      %288 = arith.addf %258, %287 : vector<8x128xf32>
      %c0_193 = arith.constant 0 : index
      %c4_194 = arith.constant 4 : index
      %c0_195 = arith.constant 0 : index
      %289 = vector.load %arg7[%c0_193, %c4_194, %c0_195] : memref<2x22x128xf32, #tpu.memory_space<vmem>>, vector<1x8x128xf32>
      %290 = vector.shape_cast %289 : vector<1x8x128xf32> to vector<8x128xf32>
      %c28 = arith.constant 28 : index
      %291 = memref.load %arg3[%c28] : memref<98xf32, #tpu.memory_space<smem>>
      %292 = vector.broadcast %291 : f32 to vector<8x128xf32>
      %293 = arith.mulf %292, %290 : vector<8x128xf32>
      %294 = arith.addf %264, %293 : vector<8x128xf32>
      %c29 = arith.constant 29 : index
      %295 = memref.load %arg3[%c29] : memref<98xf32, #tpu.memory_space<smem>>
      %296 = vector.broadcast %295 : f32 to vector<8x128xf32>
      %297 = arith.mulf %296, %290 : vector<8x128xf32>
      %298 = arith.addf %268, %297 : vector<8x128xf32>
      %c30 = arith.constant 30 : index
      %299 = memref.load %arg3[%c30] : memref<98xf32, #tpu.memory_space<smem>>
      %300 = vector.broadcast %299 : f32 to vector<8x128xf32>
      %301 = arith.mulf %300, %290 : vector<8x128xf32>
      %302 = arith.addf %272, %301 : vector<8x128xf32>
      %c31 = arith.constant 31 : index
      %303 = memref.load %arg3[%c31] : memref<98xf32, #tpu.memory_space<smem>>
      %304 = vector.broadcast %303 : f32 to vector<8x128xf32>
      %305 = arith.mulf %304, %290 : vector<8x128xf32>
      %306 = arith.addf %276, %305 : vector<8x128xf32>
      %c32_196 = arith.constant 32 : index
      %307 = memref.load %arg3[%c32_196] : memref<98xf32, #tpu.memory_space<smem>>
      %308 = vector.broadcast %307 : f32 to vector<8x128xf32>
      %309 = arith.mulf %308, %290 : vector<8x128xf32>
      %310 = arith.addf %280, %309 : vector<8x128xf32>
      %c33 = arith.constant 33 : index
      %311 = memref.load %arg3[%c33] : memref<98xf32, #tpu.memory_space<smem>>
      %312 = vector.broadcast %311 : f32 to vector<8x128xf32>
      %313 = arith.mulf %312, %290 : vector<8x128xf32>
      %314 = arith.addf %284, %313 : vector<8x128xf32>
      %c34 = arith.constant 34 : index
      %315 = memref.load %arg3[%c34] : memref<98xf32, #tpu.memory_space<smem>>
      %316 = vector.broadcast %315 : f32 to vector<8x128xf32>
      %317 = arith.mulf %316, %290 : vector<8x128xf32>
      %318 = arith.addf %288, %317 : vector<8x128xf32>
      %c0_197 = arith.constant 0 : index
      %c5_198 = arith.constant 5 : index
      %c0_199 = arith.constant 0 : index
      %319 = vector.load %arg7[%c0_197, %c5_198, %c0_199] : memref<2x22x128xf32, #tpu.memory_space<vmem>>, vector<1x8x128xf32>
      %320 = vector.shape_cast %319 : vector<1x8x128xf32> to vector<8x128xf32>
      %c35 = arith.constant 35 : index
      %321 = memref.load %arg3[%c35] : memref<98xf32, #tpu.memory_space<smem>>
      %322 = vector.broadcast %321 : f32 to vector<8x128xf32>
      %323 = arith.mulf %322, %320 : vector<8x128xf32>
      %324 = arith.addf %294, %323 : vector<8x128xf32>
      %c36 = arith.constant 36 : index
      %325 = memref.load %arg3[%c36] : memref<98xf32, #tpu.memory_space<smem>>
      %326 = vector.broadcast %325 : f32 to vector<8x128xf32>
      %327 = arith.mulf %326, %320 : vector<8x128xf32>
      %328 = arith.addf %298, %327 : vector<8x128xf32>
      %c37 = arith.constant 37 : index
      %329 = memref.load %arg3[%c37] : memref<98xf32, #tpu.memory_space<smem>>
      %330 = vector.broadcast %329 : f32 to vector<8x128xf32>
      %331 = arith.mulf %330, %320 : vector<8x128xf32>
      %332 = arith.addf %302, %331 : vector<8x128xf32>
      %c38 = arith.constant 38 : index
      %333 = memref.load %arg3[%c38] : memref<98xf32, #tpu.memory_space<smem>>
      %334 = vector.broadcast %333 : f32 to vector<8x128xf32>
      %335 = arith.mulf %334, %320 : vector<8x128xf32>
      %336 = arith.addf %306, %335 : vector<8x128xf32>
      %c39 = arith.constant 39 : index
      %337 = memref.load %arg3[%c39] : memref<98xf32, #tpu.memory_space<smem>>
      %338 = vector.broadcast %337 : f32 to vector<8x128xf32>
      %339 = arith.mulf %338, %320 : vector<8x128xf32>
      %340 = arith.addf %310, %339 : vector<8x128xf32>
      %c40 = arith.constant 40 : index
      %341 = memref.load %arg3[%c40] : memref<98xf32, #tpu.memory_space<smem>>
      %342 = vector.broadcast %341 : f32 to vector<8x128xf32>
      %343 = arith.mulf %342, %320 : vector<8x128xf32>
      %344 = arith.addf %314, %343 : vector<8x128xf32>
      %c41 = arith.constant 41 : index
      %345 = memref.load %arg3[%c41] : memref<98xf32, #tpu.memory_space<smem>>
      %346 = vector.broadcast %345 : f32 to vector<8x128xf32>
      %347 = arith.mulf %346, %320 : vector<8x128xf32>
      %348 = arith.addf %318, %347 : vector<8x128xf32>
      %c0_200 = arith.constant 0 : index
      %c6_201 = arith.constant 6 : index
      %c0_202 = arith.constant 0 : index
      %349 = vector.load %arg7[%c0_200, %c6_201, %c0_202] : memref<2x22x128xf32, #tpu.memory_space<vmem>>, vector<1x8x128xf32>
      %350 = vector.shape_cast %349 : vector<1x8x128xf32> to vector<8x128xf32>
      %c42 = arith.constant 42 : index
      %351 = memref.load %arg3[%c42] : memref<98xf32, #tpu.memory_space<smem>>
      %352 = vector.broadcast %351 : f32 to vector<8x128xf32>
      %353 = arith.mulf %352, %350 : vector<8x128xf32>
      %354 = arith.addf %324, %353 : vector<8x128xf32>
      %c43 = arith.constant 43 : index
      %355 = memref.load %arg3[%c43] : memref<98xf32, #tpu.memory_space<smem>>
      %356 = vector.broadcast %355 : f32 to vector<8x128xf32>
      %357 = arith.mulf %356, %350 : vector<8x128xf32>
      %358 = arith.addf %328, %357 : vector<8x128xf32>
      %c44 = arith.constant 44 : index
      %359 = memref.load %arg3[%c44] : memref<98xf32, #tpu.memory_space<smem>>
      %360 = vector.broadcast %359 : f32 to vector<8x128xf32>
      %361 = arith.mulf %360, %350 : vector<8x128xf32>
      %362 = arith.addf %332, %361 : vector<8x128xf32>
      %c45 = arith.constant 45 : index
      %363 = memref.load %arg3[%c45] : memref<98xf32, #tpu.memory_space<smem>>
      %364 = vector.broadcast %363 : f32 to vector<8x128xf32>
      %365 = arith.mulf %364, %350 : vector<8x128xf32>
      %366 = arith.addf %336, %365 : vector<8x128xf32>
      %c46 = arith.constant 46 : index
      %367 = memref.load %arg3[%c46] : memref<98xf32, #tpu.memory_space<smem>>
      %368 = vector.broadcast %367 : f32 to vector<8x128xf32>
      %369 = arith.mulf %368, %350 : vector<8x128xf32>
      %370 = arith.addf %340, %369 : vector<8x128xf32>
      %c47 = arith.constant 47 : index
      %371 = memref.load %arg3[%c47] : memref<98xf32, #tpu.memory_space<smem>>
      %372 = vector.broadcast %371 : f32 to vector<8x128xf32>
      %373 = arith.mulf %372, %350 : vector<8x128xf32>
      %374 = arith.addf %344, %373 : vector<8x128xf32>
      %c48_203 = arith.constant 48 : index
      %375 = memref.load %arg3[%c48_203] : memref<98xf32, #tpu.memory_space<smem>>
      %376 = vector.broadcast %375 : f32 to vector<8x128xf32>
      %377 = arith.mulf %376, %350 : vector<8x128xf32>
      %378 = arith.addf %348, %377 : vector<8x128xf32>
      %c1_204 = arith.constant 1 : index
      %c0_205 = arith.constant 0 : index
      %c0_206 = arith.constant 0 : index
      %379 = vector.load %arg7[%c1_204, %c0_205, %c0_206] : memref<2x22x128xf32, #tpu.memory_space<vmem>>, vector<1x8x128xf32>
      %380 = vector.shape_cast %379 : vector<1x8x128xf32> to vector<8x128xf32>
      %c49 = arith.constant 49 : index
      %381 = memref.load %arg3[%c49] : memref<98xf32, #tpu.memory_space<smem>>
      %382 = vector.broadcast %381 : f32 to vector<8x128xf32>
      %383 = arith.mulf %382, %380 : vector<8x128xf32>
      %384 = arith.addf %354, %383 : vector<8x128xf32>
      %c50 = arith.constant 50 : index
      %385 = memref.load %arg3[%c50] : memref<98xf32, #tpu.memory_space<smem>>
      %386 = vector.broadcast %385 : f32 to vector<8x128xf32>
      %387 = arith.mulf %386, %380 : vector<8x128xf32>
      %388 = arith.addf %358, %387 : vector<8x128xf32>
      %c51 = arith.constant 51 : index
      %389 = memref.load %arg3[%c51] : memref<98xf32, #tpu.memory_space<smem>>
      %390 = vector.broadcast %389 : f32 to vector<8x128xf32>
      %391 = arith.mulf %390, %380 : vector<8x128xf32>
      %392 = arith.addf %362, %391 : vector<8x128xf32>
      %c52 = arith.constant 52 : index
      %393 = memref.load %arg3[%c52] : memref<98xf32, #tpu.memory_space<smem>>
      %394 = vector.broadcast %393 : f32 to vector<8x128xf32>
      %395 = arith.mulf %394, %380 : vector<8x128xf32>
      %396 = arith.addf %366, %395 : vector<8x128xf32>
      %c53 = arith.constant 53 : index
      %397 = memref.load %arg3[%c53] : memref<98xf32, #tpu.memory_space<smem>>
      %398 = vector.broadcast %397 : f32 to vector<8x128xf32>
      %399 = arith.mulf %398, %380 : vector<8x128xf32>
      %400 = arith.addf %370, %399 : vector<8x128xf32>
      %c54 = arith.constant 54 : index
      %401 = memref.load %arg3[%c54] : memref<98xf32, #tpu.memory_space<smem>>
      %402 = vector.broadcast %401 : f32 to vector<8x128xf32>
      %403 = arith.mulf %402, %380 : vector<8x128xf32>
      %404 = arith.addf %374, %403 : vector<8x128xf32>
      %c55 = arith.constant 55 : index
      %405 = memref.load %arg3[%c55] : memref<98xf32, #tpu.memory_space<smem>>
      %406 = vector.broadcast %405 : f32 to vector<8x128xf32>
      %407 = arith.mulf %406, %380 : vector<8x128xf32>
      %408 = arith.addf %378, %407 : vector<8x128xf32>
      %c1_207 = arith.constant 1 : index
      %c1_208 = arith.constant 1 : index
      %c0_209 = arith.constant 0 : index
      %409 = vector.load %arg7[%c1_207, %c1_208, %c0_209] : memref<2x22x128xf32, #tpu.memory_space<vmem>>, vector<1x8x128xf32>
      %410 = vector.shape_cast %409 : vector<1x8x128xf32> to vector<8x128xf32>
      %c56 = arith.constant 56 : index
      %411 = memref.load %arg3[%c56] : memref<98xf32, #tpu.memory_space<smem>>
      %412 = vector.broadcast %411 : f32 to vector<8x128xf32>
      %413 = arith.mulf %412, %410 : vector<8x128xf32>
      %414 = arith.addf %384, %413 : vector<8x128xf32>
      %c57 = arith.constant 57 : index
      %415 = memref.load %arg3[%c57] : memref<98xf32, #tpu.memory_space<smem>>
      %416 = vector.broadcast %415 : f32 to vector<8x128xf32>
      %417 = arith.mulf %416, %410 : vector<8x128xf32>
      %418 = arith.addf %388, %417 : vector<8x128xf32>
      %c58 = arith.constant 58 : index
      %419 = memref.load %arg3[%c58] : memref<98xf32, #tpu.memory_space<smem>>
      %420 = vector.broadcast %419 : f32 to vector<8x128xf32>
      %421 = arith.mulf %420, %410 : vector<8x128xf32>
      %422 = arith.addf %392, %421 : vector<8x128xf32>
      %c59 = arith.constant 59 : index
      %423 = memref.load %arg3[%c59] : memref<98xf32, #tpu.memory_space<smem>>
      %424 = vector.broadcast %423 : f32 to vector<8x128xf32>
      %425 = arith.mulf %424, %410 : vector<8x128xf32>
      %426 = arith.addf %396, %425 : vector<8x128xf32>
      %c60 = arith.constant 60 : index
      %427 = memref.load %arg3[%c60] : memref<98xf32, #tpu.memory_space<smem>>
      %428 = vector.broadcast %427 : f32 to vector<8x128xf32>
      %429 = arith.mulf %428, %410 : vector<8x128xf32>
      %430 = arith.addf %400, %429 : vector<8x128xf32>
      %c61 = arith.constant 61 : index
      %431 = memref.load %arg3[%c61] : memref<98xf32, #tpu.memory_space<smem>>
      %432 = vector.broadcast %431 : f32 to vector<8x128xf32>
      %433 = arith.mulf %432, %410 : vector<8x128xf32>
      %434 = arith.addf %404, %433 : vector<8x128xf32>
      %c62 = arith.constant 62 : index
      %435 = memref.load %arg3[%c62] : memref<98xf32, #tpu.memory_space<smem>>
      %436 = vector.broadcast %435 : f32 to vector<8x128xf32>
      %437 = arith.mulf %436, %410 : vector<8x128xf32>
      %438 = arith.addf %408, %437 : vector<8x128xf32>
      %c1_210 = arith.constant 1 : index
      %c2_211 = arith.constant 2 : index
      %c0_212 = arith.constant 0 : index
      %439 = vector.load %arg7[%c1_210, %c2_211, %c0_212] : memref<2x22x128xf32, #tpu.memory_space<vmem>>, vector<1x8x128xf32>
      %440 = vector.shape_cast %439 : vector<1x8x128xf32> to vector<8x128xf32>
      %c63 = arith.constant 63 : index
      %441 = memref.load %arg3[%c63] : memref<98xf32, #tpu.memory_space<smem>>
      %442 = vector.broadcast %441 : f32 to vector<8x128xf32>
      %443 = arith.mulf %442, %440 : vector<8x128xf32>
      %444 = arith.addf %414, %443 : vector<8x128xf32>
      %c64_213 = arith.constant 64 : index
      %445 = memref.load %arg3[%c64_213] : memref<98xf32, #tpu.memory_space<smem>>
      %446 = vector.broadcast %445 : f32 to vector<8x128xf32>
      %447 = arith.mulf %446, %440 : vector<8x128xf32>
      %448 = arith.addf %418, %447 : vector<8x128xf32>
      %c65 = arith.constant 65 : index
      %449 = memref.load %arg3[%c65] : memref<98xf32, #tpu.memory_space<smem>>
      %450 = vector.broadcast %449 : f32 to vector<8x128xf32>
      %451 = arith.mulf %450, %440 : vector<8x128xf32>
      %452 = arith.addf %422, %451 : vector<8x128xf32>
      %c66 = arith.constant 66 : index
      %453 = memref.load %arg3[%c66] : memref<98xf32, #tpu.memory_space<smem>>
      %454 = vector.broadcast %453 : f32 to vector<8x128xf32>
      %455 = arith.mulf %454, %440 : vector<8x128xf32>
      %456 = arith.addf %426, %455 : vector<8x128xf32>
      %c67 = arith.constant 67 : index
      %457 = memref.load %arg3[%c67] : memref<98xf32, #tpu.memory_space<smem>>
      %458 = vector.broadcast %457 : f32 to vector<8x128xf32>
      %459 = arith.mulf %458, %440 : vector<8x128xf32>
      %460 = arith.addf %430, %459 : vector<8x128xf32>
      %c68 = arith.constant 68 : index
      %461 = memref.load %arg3[%c68] : memref<98xf32, #tpu.memory_space<smem>>
      %462 = vector.broadcast %461 : f32 to vector<8x128xf32>
      %463 = arith.mulf %462, %440 : vector<8x128xf32>
      %464 = arith.addf %434, %463 : vector<8x128xf32>
      %c69 = arith.constant 69 : index
      %465 = memref.load %arg3[%c69] : memref<98xf32, #tpu.memory_space<smem>>
      %466 = vector.broadcast %465 : f32 to vector<8x128xf32>
      %467 = arith.mulf %466, %440 : vector<8x128xf32>
      %468 = arith.addf %438, %467 : vector<8x128xf32>
      %c1_214 = arith.constant 1 : index
      %c3_215 = arith.constant 3 : index
      %c0_216 = arith.constant 0 : index
      %469 = vector.load %arg7[%c1_214, %c3_215, %c0_216] : memref<2x22x128xf32, #tpu.memory_space<vmem>>, vector<1x8x128xf32>
      %470 = vector.shape_cast %469 : vector<1x8x128xf32> to vector<8x128xf32>
      %c70 = arith.constant 70 : index
      %471 = memref.load %arg3[%c70] : memref<98xf32, #tpu.memory_space<smem>>
      %472 = vector.broadcast %471 : f32 to vector<8x128xf32>
      %473 = arith.mulf %472, %470 : vector<8x128xf32>
      %474 = arith.addf %444, %473 : vector<8x128xf32>
      %c71 = arith.constant 71 : index
      %475 = memref.load %arg3[%c71] : memref<98xf32, #tpu.memory_space<smem>>
      %476 = vector.broadcast %475 : f32 to vector<8x128xf32>
      %477 = arith.mulf %476, %470 : vector<8x128xf32>
      %478 = arith.addf %448, %477 : vector<8x128xf32>
      %c72 = arith.constant 72 : index
      %479 = memref.load %arg3[%c72] : memref<98xf32, #tpu.memory_space<smem>>
      %480 = vector.broadcast %479 : f32 to vector<8x128xf32>
      %481 = arith.mulf %480, %470 : vector<8x128xf32>
      %482 = arith.addf %452, %481 : vector<8x128xf32>
      %c73 = arith.constant 73 : index
      %483 = memref.load %arg3[%c73] : memref<98xf32, #tpu.memory_space<smem>>
      %484 = vector.broadcast %483 : f32 to vector<8x128xf32>
      %485 = arith.mulf %484, %470 : vector<8x128xf32>
      %486 = arith.addf %456, %485 : vector<8x128xf32>
      %c74 = arith.constant 74 : index
      %487 = memref.load %arg3[%c74] : memref<98xf32, #tpu.memory_space<smem>>
      %488 = vector.broadcast %487 : f32 to vector<8x128xf32>
      %489 = arith.mulf %488, %470 : vector<8x128xf32>
      %490 = arith.addf %460, %489 : vector<8x128xf32>
      %c75 = arith.constant 75 : index
      %491 = memref.load %arg3[%c75] : memref<98xf32, #tpu.memory_space<smem>>
      %492 = vector.broadcast %491 : f32 to vector<8x128xf32>
      %493 = arith.mulf %492, %470 : vector<8x128xf32>
      %494 = arith.addf %464, %493 : vector<8x128xf32>
      %c76 = arith.constant 76 : index
      %495 = memref.load %arg3[%c76] : memref<98xf32, #tpu.memory_space<smem>>
      %496 = vector.broadcast %495 : f32 to vector<8x128xf32>
      %497 = arith.mulf %496, %470 : vector<8x128xf32>
      %498 = arith.addf %468, %497 : vector<8x128xf32>
      %c1_217 = arith.constant 1 : index
      %c4_218 = arith.constant 4 : index
      %c0_219 = arith.constant 0 : index
      %499 = vector.load %arg7[%c1_217, %c4_218, %c0_219] : memref<2x22x128xf32, #tpu.memory_space<vmem>>, vector<1x8x128xf32>
      %500 = vector.shape_cast %499 : vector<1x8x128xf32> to vector<8x128xf32>
      %c77 = arith.constant 77 : index
      %501 = memref.load %arg3[%c77] : memref<98xf32, #tpu.memory_space<smem>>
      %502 = vector.broadcast %501 : f32 to vector<8x128xf32>
      %503 = arith.mulf %502, %500 : vector<8x128xf32>
      %504 = arith.addf %474, %503 : vector<8x128xf32>
      %c78 = arith.constant 78 : index
      %505 = memref.load %arg3[%c78] : memref<98xf32, #tpu.memory_space<smem>>
      %506 = vector.broadcast %505 : f32 to vector<8x128xf32>
      %507 = arith.mulf %506, %500 : vector<8x128xf32>
      %508 = arith.addf %478, %507 : vector<8x128xf32>
      %c79 = arith.constant 79 : index
      %509 = memref.load %arg3[%c79] : memref<98xf32, #tpu.memory_space<smem>>
      %510 = vector.broadcast %509 : f32 to vector<8x128xf32>
      %511 = arith.mulf %510, %500 : vector<8x128xf32>
      %512 = arith.addf %482, %511 : vector<8x128xf32>
      %c80_220 = arith.constant 80 : index
      %513 = memref.load %arg3[%c80_220] : memref<98xf32, #tpu.memory_space<smem>>
      %514 = vector.broadcast %513 : f32 to vector<8x128xf32>
      %515 = arith.mulf %514, %500 : vector<8x128xf32>
      %516 = arith.addf %486, %515 : vector<8x128xf32>
      %c81 = arith.constant 81 : index
      %517 = memref.load %arg3[%c81] : memref<98xf32, #tpu.memory_space<smem>>
      %518 = vector.broadcast %517 : f32 to vector<8x128xf32>
      %519 = arith.mulf %518, %500 : vector<8x128xf32>
      %520 = arith.addf %490, %519 : vector<8x128xf32>
      %c82 = arith.constant 82 : index
      %521 = memref.load %arg3[%c82] : memref<98xf32, #tpu.memory_space<smem>>
      %522 = vector.broadcast %521 : f32 to vector<8x128xf32>
      %523 = arith.mulf %522, %500 : vector<8x128xf32>
      %524 = arith.addf %494, %523 : vector<8x128xf32>
      %c83 = arith.constant 83 : index
      %525 = memref.load %arg3[%c83] : memref<98xf32, #tpu.memory_space<smem>>
      %526 = vector.broadcast %525 : f32 to vector<8x128xf32>
      %527 = arith.mulf %526, %500 : vector<8x128xf32>
      %528 = arith.addf %498, %527 : vector<8x128xf32>
      %c1_221 = arith.constant 1 : index
      %c5_222 = arith.constant 5 : index
      %c0_223 = arith.constant 0 : index
      %529 = vector.load %arg7[%c1_221, %c5_222, %c0_223] : memref<2x22x128xf32, #tpu.memory_space<vmem>>, vector<1x8x128xf32>
      %530 = vector.shape_cast %529 : vector<1x8x128xf32> to vector<8x128xf32>
      %c84 = arith.constant 84 : index
      %531 = memref.load %arg3[%c84] : memref<98xf32, #tpu.memory_space<smem>>
      %532 = vector.broadcast %531 : f32 to vector<8x128xf32>
      %533 = arith.mulf %532, %530 : vector<8x128xf32>
      %534 = arith.addf %504, %533 : vector<8x128xf32>
      %c85 = arith.constant 85 : index
      %535 = memref.load %arg3[%c85] : memref<98xf32, #tpu.memory_space<smem>>
      %536 = vector.broadcast %535 : f32 to vector<8x128xf32>
      %537 = arith.mulf %536, %530 : vector<8x128xf32>
      %538 = arith.addf %508, %537 : vector<8x128xf32>
      %c86 = arith.constant 86 : index
      %539 = memref.load %arg3[%c86] : memref<98xf32, #tpu.memory_space<smem>>
      %540 = vector.broadcast %539 : f32 to vector<8x128xf32>
      %541 = arith.mulf %540, %530 : vector<8x128xf32>
      %542 = arith.addf %512, %541 : vector<8x128xf32>
      %c87 = arith.constant 87 : index
      %543 = memref.load %arg3[%c87] : memref<98xf32, #tpu.memory_space<smem>>
      %544 = vector.broadcast %543 : f32 to vector<8x128xf32>
      %545 = arith.mulf %544, %530 : vector<8x128xf32>
      %546 = arith.addf %516, %545 : vector<8x128xf32>
      %c88 = arith.constant 88 : index
      %547 = memref.load %arg3[%c88] : memref<98xf32, #tpu.memory_space<smem>>
      %548 = vector.broadcast %547 : f32 to vector<8x128xf32>
      %549 = arith.mulf %548, %530 : vector<8x128xf32>
      %550 = arith.addf %520, %549 : vector<8x128xf32>
      %c89 = arith.constant 89 : index
      %551 = memref.load %arg3[%c89] : memref<98xf32, #tpu.memory_space<smem>>
      %552 = vector.broadcast %551 : f32 to vector<8x128xf32>
      %553 = arith.mulf %552, %530 : vector<8x128xf32>
      %554 = arith.addf %524, %553 : vector<8x128xf32>
      %c90 = arith.constant 90 : index
      %555 = memref.load %arg3[%c90] : memref<98xf32, #tpu.memory_space<smem>>
      %556 = vector.broadcast %555 : f32 to vector<8x128xf32>
      %557 = arith.mulf %556, %530 : vector<8x128xf32>
      %558 = arith.addf %528, %557 : vector<8x128xf32>
      %c1_224 = arith.constant 1 : index
      %c6_225 = arith.constant 6 : index
      %c0_226 = arith.constant 0 : index
      %559 = vector.load %arg7[%c1_224, %c6_225, %c0_226] : memref<2x22x128xf32, #tpu.memory_space<vmem>>, vector<1x8x128xf32>
      %560 = vector.shape_cast %559 : vector<1x8x128xf32> to vector<8x128xf32>
      %c91 = arith.constant 91 : index
      %561 = memref.load %arg3[%c91] : memref<98xf32, #tpu.memory_space<smem>>
      %562 = vector.broadcast %561 : f32 to vector<8x128xf32>
      %563 = arith.mulf %562, %560 : vector<8x128xf32>
      %564 = arith.addf %534, %563 : vector<8x128xf32>
      %c92 = arith.constant 92 : index
      %565 = memref.load %arg3[%c92] : memref<98xf32, #tpu.memory_space<smem>>
      %566 = vector.broadcast %565 : f32 to vector<8x128xf32>
      %567 = arith.mulf %566, %560 : vector<8x128xf32>
      %568 = arith.addf %538, %567 : vector<8x128xf32>
      %c93 = arith.constant 93 : index
      %569 = memref.load %arg3[%c93] : memref<98xf32, #tpu.memory_space<smem>>
      %570 = vector.broadcast %569 : f32 to vector<8x128xf32>
      %571 = arith.mulf %570, %560 : vector<8x128xf32>
      %572 = arith.addf %542, %571 : vector<8x128xf32>
      %c94 = arith.constant 94 : index
      %573 = memref.load %arg3[%c94] : memref<98xf32, #tpu.memory_space<smem>>
      %574 = vector.broadcast %573 : f32 to vector<8x128xf32>
      %575 = arith.mulf %574, %560 : vector<8x128xf32>
      %576 = arith.addf %546, %575 : vector<8x128xf32>
      %c95 = arith.constant 95 : index
      %577 = memref.load %arg3[%c95] : memref<98xf32, #tpu.memory_space<smem>>
      %578 = vector.broadcast %577 : f32 to vector<8x128xf32>
      %579 = arith.mulf %578, %560 : vector<8x128xf32>
      %580 = arith.addf %550, %579 : vector<8x128xf32>
      %c96_227 = arith.constant 96 : index
      %581 = memref.load %arg3[%c96_227] : memref<98xf32, #tpu.memory_space<smem>>
      %582 = vector.broadcast %581 : f32 to vector<8x128xf32>
      %583 = arith.mulf %582, %560 : vector<8x128xf32>
      %584 = arith.addf %554, %583 : vector<8x128xf32>
      %c97 = arith.constant 97 : index
      %585 = memref.load %arg3[%c97] : memref<98xf32, #tpu.memory_space<smem>>
      %586 = vector.broadcast %585 : f32 to vector<8x128xf32>
      %587 = arith.mulf %586, %560 : vector<8x128xf32>
      %588 = arith.addf %558, %587 : vector<8x128xf32>
      %cst_228 = arith.constant 0.000000e+00 : f32
      %589 = vector.broadcast %cst_228 : f32 to vector<8x128xf32>
      %cst_229 = arith.constant 0.000000e+00 : f32
      %590 = vector.broadcast %cst_229 : f32 to vector<8x128xf32>
      %591 = arith.select %161, %564, %590 : vector<8x128xi1>, vector<8x128xf32>
      %c3_i32 = arith.constant 3 : i32
      %592 = tpu.dynamic_rotate %591 by %c3_i32 dim 1 : vector<8x128xf32>, i32 -> vector<8x128xf32>
      %593 = arith.addf %589, %592 : vector<8x128xf32>
      %cst_230 = arith.constant 0.000000e+00 : f32
      %594 = vector.broadcast %cst_230 : f32 to vector<8x128xf32>
      %595 = arith.select %161, %568, %594 : vector<8x128xi1>, vector<8x128xf32>
      %c2_i32 = arith.constant 2 : i32
      %596 = tpu.dynamic_rotate %595 by %c2_i32 dim 1 : vector<8x128xf32>, i32 -> vector<8x128xf32>
      %597 = arith.addf %593, %596 : vector<8x128xf32>
      %cst_231 = arith.constant 0.000000e+00 : f32
      %598 = vector.broadcast %cst_231 : f32 to vector<8x128xf32>
      %599 = arith.select %161, %572, %598 : vector<8x128xi1>, vector<8x128xf32>
      %c1_i32 = arith.constant 1 : i32
      %600 = tpu.dynamic_rotate %599 by %c1_i32 dim 1 : vector<8x128xf32>, i32 -> vector<8x128xf32>
      %601 = arith.addf %597, %600 : vector<8x128xf32>
      %cst_232 = arith.constant 0.000000e+00 : f32
      %602 = vector.broadcast %cst_232 : f32 to vector<8x128xf32>
      %603 = arith.select %161, %576, %602 : vector<8x128xi1>, vector<8x128xf32>
      %604 = arith.addf %601, %603 : vector<8x128xf32>
      %cst_233 = arith.constant 0.000000e+00 : f32
      %605 = vector.broadcast %cst_233 : f32 to vector<8x128xf32>
      %606 = arith.select %161, %580, %605 : vector<8x128xi1>, vector<8x128xf32>
      %c127_i32 = arith.constant 127 : i32
      %607 = tpu.dynamic_rotate %606 by %c127_i32 dim 1 : vector<8x128xf32>, i32 -> vector<8x128xf32>
      %608 = arith.addf %604, %607 : vector<8x128xf32>
      %cst_234 = arith.constant 0.000000e+00 : f32
      %609 = vector.broadcast %cst_234 : f32 to vector<8x128xf32>
      %610 = arith.select %161, %584, %609 : vector<8x128xi1>, vector<8x128xf32>
      %c126_i32 = arith.constant 126 : i32
      %611 = tpu.dynamic_rotate %610 by %c126_i32 dim 1 : vector<8x128xf32>, i32 -> vector<8x128xf32>
      %612 = arith.addf %608, %611 : vector<8x128xf32>
      %cst_235 = arith.constant 0.000000e+00 : f32
      %613 = vector.broadcast %cst_235 : f32 to vector<8x128xf32>
      %614 = arith.select %161, %588, %613 : vector<8x128xi1>, vector<8x128xf32>
      %c125_i32 = arith.constant 125 : i32
      %615 = tpu.dynamic_rotate %614 by %c125_i32 dim 1 : vector<8x128xf32>, i32 -> vector<8x128xf32>
      %616 = arith.addf %612, %615 : vector<8x128xf32>
      %617 = arith.negf %616 : vector<8x128xf32>
      %618 = math.exp %617 : vector<8x128xf32>
      %cst_236 = arith.constant 1.000000e+00 : f32
      %619 = vector.broadcast %cst_236 : f32 to vector<8x128xf32>
      %620 = arith.addf %619, %618 : vector<8x128xf32>
      %621 = arith.divf %619, %620 : vector<8x128xf32>
      %c0_237 = arith.constant 0 : index
      %c0_238 = arith.constant 0 : index
      %c0_239 = arith.constant 0 : index
      %622 = vector.load %arg4[%c0_237, %c0_238, %c0_239] : memref<1x16x128xf32, #tpu.memory_space<vmem>>, vector<1x8x128xf32>
      %623 = vector.shape_cast %622 : vector<1x8x128xf32> to vector<8x128xf32>
      %624 = vector.shape_cast %621 : vector<8x128xf32> to vector<1x8x128xf32>
      tpu.vector_store %arg4[%c0_237, %c0_238, %c0_239], %624 {strides = array<i32>} : memref<1x16x128xf32, #tpu.memory_space<vmem>>, vector<1x8x128xf32>,
      %625 = tpu.iota {dimensions = array<i32: 1>} : vector<8x128xi32>
      %c16_i32_240 = arith.constant 16 : i32
      %626 = vector.broadcast %c16_i32_240 : i32 to vector<8x128xi32>
      %627 = arith.cmpi slt, %625, %626 : vector<8x128xi32>
      %cst_241 = arith.constant 0.000000e+00 : f32
      %628 = vector.broadcast %cst_241 : f32 to vector<8x128xf32>
      %cst_242 = arith.constant 0.000000e+00 : f32
      %629 = vector.broadcast %cst_242 : f32 to vector<8x128xf32>
      %cst_243 = arith.constant 0.000000e+00 : f32
      %630 = vector.broadcast %cst_243 : f32 to vector<8x128xf32>
      %cst_244 = arith.constant 0.000000e+00 : f32
      %631 = vector.broadcast %cst_244 : f32 to vector<8x128xf32>
      %cst_245 = arith.constant 0.000000e+00 : f32
      %632 = vector.broadcast %cst_245 : f32 to vector<8x128xf32>
      %cst_246 = arith.constant 0.000000e+00 : f32
      %633 = vector.broadcast %cst_246 : f32 to vector<8x128xf32>
      %cst_247 = arith.constant 0.000000e+00 : f32
      %634 = vector.broadcast %cst_247 : f32 to vector<8x128xf32>
      %c0_248 = arith.constant 0 : index
      %c8_249 = arith.constant 8 : index
      %c0_250 = arith.constant 0 : index
      %635 = vector.load %arg7[%c0_248, %c8_249, %c0_250] : memref<2x22x128xf32, #tpu.memory_space<vmem>>, vector<1x8x128xf32>
      %636 = vector.shape_cast %635 : vector<1x8x128xf32> to vector<8x128xf32>
      %c0_251 = arith.constant 0 : index
      %637 = memref.load %arg3[%c0_251] : memref<98xf32, #tpu.memory_space<smem>>
      %638 = vector.broadcast %637 : f32 to vector<8x128xf32>
      %639 = arith.mulf %638, %636 : vector<8x128xf32>
      %640 = arith.addf %628, %639 : vector<8x128xf32>
      %c1_252 = arith.constant 1 : index
      %641 = memref.load %arg3[%c1_252] : memref<98xf32, #tpu.memory_space<smem>>
      %642 = vector.broadcast %641 : f32 to vector<8x128xf32>
      %643 = arith.mulf %642, %636 : vector<8x128xf32>
      %644 = arith.addf %629, %643 : vector<8x128xf32>
      %c2_253 = arith.constant 2 : index
      %645 = memref.load %arg3[%c2_253] : memref<98xf32, #tpu.memory_space<smem>>
      %646 = vector.broadcast %645 : f32 to vector<8x128xf32>
      %647 = arith.mulf %646, %636 : vector<8x128xf32>
      %648 = arith.addf %630, %647 : vector<8x128xf32>
      %c3_254 = arith.constant 3 : index
      %649 = memref.load %arg3[%c3_254] : memref<98xf32, #tpu.memory_space<smem>>
      %650 = vector.broadcast %649 : f32 to vector<8x128xf32>
      %651 = arith.mulf %650, %636 : vector<8x128xf32>
      %652 = arith.addf %631, %651 : vector<8x128xf32>
      %c4_255 = arith.constant 4 : index
      %653 = memref.load %arg3[%c4_255] : memref<98xf32, #tpu.memory_space<smem>>
      %654 = vector.broadcast %653 : f32 to vector<8x128xf32>
      %655 = arith.mulf %654, %636 : vector<8x128xf32>
      %656 = arith.addf %632, %655 : vector<8x128xf32>
      %c5_256 = arith.constant 5 : index
      %657 = memref.load %arg3[%c5_256] : memref<98xf32, #tpu.memory_space<smem>>
      %658 = vector.broadcast %657 : f32 to vector<8x128xf32>
      %659 = arith.mulf %658, %636 : vector<8x128xf32>
      %660 = arith.addf %633, %659 : vector<8x128xf32>
      %c6_257 = arith.constant 6 : index
      %661 = memref.load %arg3[%c6_257] : memref<98xf32, #tpu.memory_space<smem>>
      %662 = vector.broadcast %661 : f32 to vector<8x128xf32>
      %663 = arith.mulf %662, %636 : vector<8x128xf32>
      %664 = arith.addf %634, %663 : vector<8x128xf32>
      %c0_258 = arith.constant 0 : index
      %c9_259 = arith.constant 9 : index
      %c0_260 = arith.constant 0 : index
      %665 = vector.load %arg7[%c0_258, %c9_259, %c0_260] : memref<2x22x128xf32, #tpu.memory_space<vmem>>, vector<1x8x128xf32>
      %666 = vector.shape_cast %665 : vector<1x8x128xf32> to vector<8x128xf32>
      %c7_261 = arith.constant 7 : index
      %667 = memref.load %arg3[%c7_261] : memref<98xf32, #tpu.memory_space<smem>>
      %668 = vector.broadcast %667 : f32 to vector<8x128xf32>
      %669 = arith.mulf %668, %666 : vector<8x128xf32>
      %670 = arith.addf %640, %669 : vector<8x128xf32>
      %c8_262 = arith.constant 8 : index
      %671 = memref.load %arg3[%c8_262] : memref<98xf32, #tpu.memory_space<smem>>
      %672 = vector.broadcast %671 : f32 to vector<8x128xf32>
      %673 = arith.mulf %672, %666 : vector<8x128xf32>
      %674 = arith.addf %644, %673 : vector<8x128xf32>
      %c9_263 = arith.constant 9 : index
      %675 = memref.load %arg3[%c9_263] : memref<98xf32, #tpu.memory_space<smem>>
      %676 = vector.broadcast %675 : f32 to vector<8x128xf32>
      %677 = arith.mulf %676, %666 : vector<8x128xf32>
      %678 = arith.addf %648, %677 : vector<8x128xf32>
      %c10_264 = arith.constant 10 : index
      %679 = memref.load %arg3[%c10_264] : memref<98xf32, #tpu.memory_space<smem>>
      %680 = vector.broadcast %679 : f32 to vector<8x128xf32>
      %681 = arith.mulf %680, %666 : vector<8x128xf32>
      %682 = arith.addf %652, %681 : vector<8x128xf32>
      %c11_265 = arith.constant 11 : index
      %683 = memref.load %arg3[%c11_265] : memref<98xf32, #tpu.memory_space<smem>>
      %684 = vector.broadcast %683 : f32 to vector<8x128xf32>
      %685 = arith.mulf %684, %666 : vector<8x128xf32>
      %686 = arith.addf %656, %685 : vector<8x128xf32>
      %c12_266 = arith.constant 12 : index
      %687 = memref.load %arg3[%c12_266] : memref<98xf32, #tpu.memory_space<smem>>
      %688 = vector.broadcast %687 : f32 to vector<8x128xf32>
      %689 = arith.mulf %688, %666 : vector<8x128xf32>
      %690 = arith.addf %660, %689 : vector<8x128xf32>
      %c13_267 = arith.constant 13 : index
      %691 = memref.load %arg3[%c13_267] : memref<98xf32, #tpu.memory_space<smem>>
      %692 = vector.broadcast %691 : f32 to vector<8x128xf32>
      %693 = arith.mulf %692, %666 : vector<8x128xf32>
      %694 = arith.addf %664, %693 : vector<8x128xf32>
      %c0_268 = arith.constant 0 : index
      %c10_269 = arith.constant 10 : index
      %c0_270 = arith.constant 0 : index
      %695 = vector.load %arg7[%c0_268, %c10_269, %c0_270] : memref<2x22x128xf32, #tpu.memory_space<vmem>>, vector<1x8x128xf32>
      %696 = vector.shape_cast %695 : vector<1x8x128xf32> to vector<8x128xf32>
      %c14_271 = arith.constant 14 : index
      %697 = memref.load %arg3[%c14_271] : memref<98xf32, #tpu.memory_space<smem>>
      %698 = vector.broadcast %697 : f32 to vector<8x128xf32>
      %699 = arith.mulf %698, %696 : vector<8x128xf32>
      %700 = arith.addf %670, %699 : vector<8x128xf32>
      %c15_272 = arith.constant 15 : index
      %701 = memref.load %arg3[%c15_272] : memref<98xf32, #tpu.memory_space<smem>>
      %702 = vector.broadcast %701 : f32 to vector<8x128xf32>
      %703 = arith.mulf %702, %696 : vector<8x128xf32>
      %704 = arith.addf %674, %703 : vector<8x128xf32>
      %c16_273 = arith.constant 16 : index
      %705 = memref.load %arg3[%c16_273] : memref<98xf32, #tpu.memory_space<smem>>
      %706 = vector.broadcast %705 : f32 to vector<8x128xf32>
      %707 = arith.mulf %706, %696 : vector<8x128xf32>
      %708 = arith.addf %678, %707 : vector<8x128xf32>
      %c17_274 = arith.constant 17 : index
      %709 = memref.load %arg3[%c17_274] : memref<98xf32, #tpu.memory_space<smem>>
      %710 = vector.broadcast %709 : f32 to vector<8x128xf32>
      %711 = arith.mulf %710, %696 : vector<8x128xf32>
      %712 = arith.addf %682, %711 : vector<8x128xf32>
      %c18_275 = arith.constant 18 : index
      %713 = memref.load %arg3[%c18_275] : memref<98xf32, #tpu.memory_space<smem>>
      %714 = vector.broadcast %713 : f32 to vector<8x128xf32>
      %715 = arith.mulf %714, %696 : vector<8x128xf32>
      %716 = arith.addf %686, %715 : vector<8x128xf32>
      %c19_276 = arith.constant 19 : index
      %717 = memref.load %arg3[%c19_276] : memref<98xf32, #tpu.memory_space<smem>>
      %718 = vector.broadcast %717 : f32 to vector<8x128xf32>
      %719 = arith.mulf %718, %696 : vector<8x128xf32>
      %720 = arith.addf %690, %719 : vector<8x128xf32>
      %c20_277 = arith.constant 20 : index
      %721 = memref.load %arg3[%c20_277] : memref<98xf32, #tpu.memory_space<smem>>
      %722 = vector.broadcast %721 : f32 to vector<8x128xf32>
      %723 = arith.mulf %722, %696 : vector<8x128xf32>
      %724 = arith.addf %694, %723 : vector<8x128xf32>
      %c0_278 = arith.constant 0 : index
      %c11_279 = arith.constant 11 : index
      %c0_280 = arith.constant 0 : index
      %725 = vector.load %arg7[%c0_278, %c11_279, %c0_280] : memref<2x22x128xf32, #tpu.memory_space<vmem>>, vector<1x8x128xf32>
      %726 = vector.shape_cast %725 : vector<1x8x128xf32> to vector<8x128xf32>
      %c21_281 = arith.constant 21 : index
      %727 = memref.load %arg3[%c21_281] : memref<98xf32, #tpu.memory_space<smem>>
      %728 = vector.broadcast %727 : f32 to vector<8x128xf32>
      %729 = arith.mulf %728, %726 : vector<8x128xf32>
      %730 = arith.addf %700, %729 : vector<8x128xf32>
      %c22_282 = arith.constant 22 : index
      %731 = memref.load %arg3[%c22_282] : memref<98xf32, #tpu.memory_space<smem>>
      %732 = vector.broadcast %731 : f32 to vector<8x128xf32>
      %733 = arith.mulf %732, %726 : vector<8x128xf32>
      %734 = arith.addf %704, %733 : vector<8x128xf32>
      %c23_283 = arith.constant 23 : index
      %735 = memref.load %arg3[%c23_283] : memref<98xf32, #tpu.memory_space<smem>>
      %736 = vector.broadcast %735 : f32 to vector<8x128xf32>
      %737 = arith.mulf %736, %726 : vector<8x128xf32>
      %738 = arith.addf %708, %737 : vector<8x128xf32>
      %c24_284 = arith.constant 24 : index
      %739 = memref.load %arg3[%c24_284] : memref<98xf32, #tpu.memory_space<smem>>
      %740 = vector.broadcast %739 : f32 to vector<8x128xf32>
      %741 = arith.mulf %740, %726 : vector<8x128xf32>
      %742 = arith.addf %712, %741 : vector<8x128xf32>
      %c25_285 = arith.constant 25 : index
      %743 = memref.load %arg3[%c25_285] : memref<98xf32, #tpu.memory_space<smem>>
      %744 = vector.broadcast %743 : f32 to vector<8x128xf32>
      %745 = arith.mulf %744, %726 : vector<8x128xf32>
      %746 = arith.addf %716, %745 : vector<8x128xf32>
      %c26_286 = arith.constant 26 : index
      %747 = memref.load %arg3[%c26_286] : memref<98xf32, #tpu.memory_space<smem>>
      %748 = vector.broadcast %747 : f32 to vector<8x128xf32>
      %749 = arith.mulf %748, %726 : vector<8x128xf32>
      %750 = arith.addf %720, %749 : vector<8x128xf32>
      %c27_287 = arith.constant 27 : index
      %751 = memref.load %arg3[%c27_287] : memref<98xf32, #tpu.memory_space<smem>>
      %752 = vector.broadcast %751 : f32 to vector<8x128xf32>
      %753 = arith.mulf %752, %726 : vector<8x128xf32>
      %754 = arith.addf %724, %753 : vector<8x128xf32>
      %c0_288 = arith.constant 0 : index
      %c12_289 = arith.constant 12 : index
      %c0_290 = arith.constant 0 : index
      %755 = vector.load %arg7[%c0_288, %c12_289, %c0_290] : memref<2x22x128xf32, #tpu.memory_space<vmem>>, vector<1x8x128xf32>
      %756 = vector.shape_cast %755 : vector<1x8x128xf32> to vector<8x128xf32>
      %c28_291 = arith.constant 28 : index
      %757 = memref.load %arg3[%c28_291] : memref<98xf32, #tpu.memory_space<smem>>
      %758 = vector.broadcast %757 : f32 to vector<8x128xf32>
      %759 = arith.mulf %758, %756 : vector<8x128xf32>
      %760 = arith.addf %730, %759 : vector<8x128xf32>
      %c29_292 = arith.constant 29 : index
      %761 = memref.load %arg3[%c29_292] : memref<98xf32, #tpu.memory_space<smem>>
      %762 = vector.broadcast %761 : f32 to vector<8x128xf32>
      %763 = arith.mulf %762, %756 : vector<8x128xf32>
      %764 = arith.addf %734, %763 : vector<8x128xf32>
      %c30_293 = arith.constant 30 : index
      %765 = memref.load %arg3[%c30_293] : memref<98xf32, #tpu.memory_space<smem>>
      %766 = vector.broadcast %765 : f32 to vector<8x128xf32>
      %767 = arith.mulf %766, %756 : vector<8x128xf32>
      %768 = arith.addf %738, %767 : vector<8x128xf32>
      %c31_294 = arith.constant 31 : index
      %769 = memref.load %arg3[%c31_294] : memref<98xf32, #tpu.memory_space<smem>>
      %770 = vector.broadcast %769 : f32 to vector<8x128xf32>
      %771 = arith.mulf %770, %756 : vector<8x128xf32>
      %772 = arith.addf %742, %771 : vector<8x128xf32>
      %c32_295 = arith.constant 32 : index
      %773 = memref.load %arg3[%c32_295] : memref<98xf32, #tpu.memory_space<smem>>
      %774 = vector.broadcast %773 : f32 to vector<8x128xf32>
      %775 = arith.mulf %774, %756 : vector<8x128xf32>
      %776 = arith.addf %746, %775 : vector<8x128xf32>
      %c33_296 = arith.constant 33 : index
      %777 = memref.load %arg3[%c33_296] : memref<98xf32, #tpu.memory_space<smem>>
      %778 = vector.broadcast %777 : f32 to vector<8x128xf32>
      %779 = arith.mulf %778, %756 : vector<8x128xf32>
      %780 = arith.addf %750, %779 : vector<8x128xf32>
      %c34_297 = arith.constant 34 : index
      %781 = memref.load %arg3[%c34_297] : memref<98xf32, #tpu.memory_space<smem>>
      %782 = vector.broadcast %781 : f32 to vector<8x128xf32>
      %783 = arith.mulf %782, %756 : vector<8x128xf32>
      %784 = arith.addf %754, %783 : vector<8x128xf32>
      %c0_298 = arith.constant 0 : index
      %c13_299 = arith.constant 13 : index
      %c0_300 = arith.constant 0 : index
      %785 = vector.load %arg7[%c0_298, %c13_299, %c0_300] : memref<2x22x128xf32, #tpu.memory_space<vmem>>, vector<1x8x128xf32>
      %786 = vector.shape_cast %785 : vector<1x8x128xf32> to vector<8x128xf32>
      %c35_301 = arith.constant 35 : index
      %787 = memref.load %arg3[%c35_301] : memref<98xf32, #tpu.memory_space<smem>>
      %788 = vector.broadcast %787 : f32 to vector<8x128xf32>
      %789 = arith.mulf %788, %786 : vector<8x128xf32>
      %790 = arith.addf %760, %789 : vector<8x128xf32>
      %c36_302 = arith.constant 36 : index
      %791 = memref.load %arg3[%c36_302] : memref<98xf32, #tpu.memory_space<smem>>
      %792 = vector.broadcast %791 : f32 to vector<8x128xf32>
      %793 = arith.mulf %792, %786 : vector<8x128xf32>
      %794 = arith.addf %764, %793 : vector<8x128xf32>
      %c37_303 = arith.constant 37 : index
      %795 = memref.load %arg3[%c37_303] : memref<98xf32, #tpu.memory_space<smem>>
      %796 = vector.broadcast %795 : f32 to vector<8x128xf32>
      %797 = arith.mulf %796, %786 : vector<8x128xf32>
      %798 = arith.addf %768, %797 : vector<8x128xf32>
      %c38_304 = arith.constant 38 : index
      %799 = memref.load %arg3[%c38_304] : memref<98xf32, #tpu.memory_space<smem>>
      %800 = vector.broadcast %799 : f32 to vector<8x128xf32>
      %801 = arith.mulf %800, %786 : vector<8x128xf32>
      %802 = arith.addf %772, %801 : vector<8x128xf32>
      %c39_305 = arith.constant 39 : index
      %803 = memref.load %arg3[%c39_305] : memref<98xf32, #tpu.memory_space<smem>>
      %804 = vector.broadcast %803 : f32 to vector<8x128xf32>
      %805 = arith.mulf %804, %786 : vector<8x128xf32>
      %806 = arith.addf %776, %805 : vector<8x128xf32>
      %c40_306 = arith.constant 40 : index
      %807 = memref.load %arg3[%c40_306] : memref<98xf32, #tpu.memory_space<smem>>
      %808 = vector.broadcast %807 : f32 to vector<8x128xf32>
      %809 = arith.mulf %808, %786 : vector<8x128xf32>
      %810 = arith.addf %780, %809 : vector<8x128xf32>
      %c41_307 = arith.constant 41 : index
      %811 = memref.load %arg3[%c41_307] : memref<98xf32, #tpu.memory_space<smem>>
      %812 = vector.broadcast %811 : f32 to vector<8x128xf32>
      %813 = arith.mulf %812, %786 : vector<8x128xf32>
      %814 = arith.addf %784, %813 : vector<8x128xf32>
      %c0_308 = arith.constant 0 : index
      %c14_309 = arith.constant 14 : index
      %c0_310 = arith.constant 0 : index
      %815 = vector.load %arg7[%c0_308, %c14_309, %c0_310] : memref<2x22x128xf32, #tpu.memory_space<vmem>>, vector<1x8x128xf32>
      %816 = vector.shape_cast %815 : vector<1x8x128xf32> to vector<8x128xf32>
      %c42_311 = arith.constant 42 : index
      %817 = memref.load %arg3[%c42_311] : memref<98xf32, #tpu.memory_space<smem>>
      %818 = vector.broadcast %817 : f32 to vector<8x128xf32>
      %819 = arith.mulf %818, %816 : vector<8x128xf32>
      %820 = arith.addf %790, %819 : vector<8x128xf32>
      %c43_312 = arith.constant 43 : index
      %821 = memref.load %arg3[%c43_312] : memref<98xf32, #tpu.memory_space<smem>>
      %822 = vector.broadcast %821 : f32 to vector<8x128xf32>
      %823 = arith.mulf %822, %816 : vector<8x128xf32>
      %824 = arith.addf %794, %823 : vector<8x128xf32>
      %c44_313 = arith.constant 44 : index
      %825 = memref.load %arg3[%c44_313] : memref<98xf32, #tpu.memory_space<smem>>
      %826 = vector.broadcast %825 : f32 to vector<8x128xf32>
      %827 = arith.mulf %826, %816 : vector<8x128xf32>
      %828 = arith.addf %798, %827 : vector<8x128xf32>
      %c45_314 = arith.constant 45 : index
      %829 = memref.load %arg3[%c45_314] : memref<98xf32, #tpu.memory_space<smem>>
      %830 = vector.broadcast %829 : f32 to vector<8x128xf32>
      %831 = arith.mulf %830, %816 : vector<8x128xf32>
      %832 = arith.addf %802, %831 : vector<8x128xf32>
      %c46_315 = arith.constant 46 : index
      %833 = memref.load %arg3[%c46_315] : memref<98xf32, #tpu.memory_space<smem>>
      %834 = vector.broadcast %833 : f32 to vector<8x128xf32>
      %835 = arith.mulf %834, %816 : vector<8x128xf32>
      %836 = arith.addf %806, %835 : vector<8x128xf32>
      %c47_316 = arith.constant 47 : index
      %837 = memref.load %arg3[%c47_316] : memref<98xf32, #tpu.memory_space<smem>>
      %838 = vector.broadcast %837 : f32 to vector<8x128xf32>
      %839 = arith.mulf %838, %816 : vector<8x128xf32>
      %840 = arith.addf %810, %839 : vector<8x128xf32>
      %c48_317 = arith.constant 48 : index
      %841 = memref.load %arg3[%c48_317] : memref<98xf32, #tpu.memory_space<smem>>
      %842 = vector.broadcast %841 : f32 to vector<8x128xf32>
      %843 = arith.mulf %842, %816 : vector<8x128xf32>
      %844 = arith.addf %814, %843 : vector<8x128xf32>
      %c1_318 = arith.constant 1 : index
      %c8_319 = arith.constant 8 : index
      %c0_320 = arith.constant 0 : index
      %845 = vector.load %arg7[%c1_318, %c8_319, %c0_320] : memref<2x22x128xf32, #tpu.memory_space<vmem>>, vector<1x8x128xf32>
      %846 = vector.shape_cast %845 : vector<1x8x128xf32> to vector<8x128xf32>
      %c49_321 = arith.constant 49 : index
      %847 = memref.load %arg3[%c49_321] : memref<98xf32, #tpu.memory_space<smem>>
      %848 = vector.broadcast %847 : f32 to vector<8x128xf32>
      %849 = arith.mulf %848, %846 : vector<8x128xf32>
      %850 = arith.addf %820, %849 : vector<8x128xf32>
      %c50_322 = arith.constant 50 : index
      %851 = memref.load %arg3[%c50_322] : memref<98xf32, #tpu.memory_space<smem>>
      %852 = vector.broadcast %851 : f32 to vector<8x128xf32>
      %853 = arith.mulf %852, %846 : vector<8x128xf32>
      %854 = arith.addf %824, %853 : vector<8x128xf32>
      %c51_323 = arith.constant 51 : index
      %855 = memref.load %arg3[%c51_323] : memref<98xf32, #tpu.memory_space<smem>>
      %856 = vector.broadcast %855 : f32 to vector<8x128xf32>
      %857 = arith.mulf %856, %846 : vector<8x128xf32>
      %858 = arith.addf %828, %857 : vector<8x128xf32>
      %c52_324 = arith.constant 52 : index
      %859 = memref.load %arg3[%c52_324] : memref<98xf32, #tpu.memory_space<smem>>
      %860 = vector.broadcast %859 : f32 to vector<8x128xf32>
      %861 = arith.mulf %860, %846 : vector<8x128xf32>
      %862 = arith.addf %832, %861 : vector<8x128xf32>
      %c53_325 = arith.constant 53 : index
      %863 = memref.load %arg3[%c53_325] : memref<98xf32, #tpu.memory_space<smem>>
      %864 = vector.broadcast %863 : f32 to vector<8x128xf32>
      %865 = arith.mulf %864, %846 : vector<8x128xf32>
      %866 = arith.addf %836, %865 : vector<8x128xf32>
      %c54_326 = arith.constant 54 : index
      %867 = memref.load %arg3[%c54_326] : memref<98xf32, #tpu.memory_space<smem>>
      %868 = vector.broadcast %867 : f32 to vector<8x128xf32>
      %869 = arith.mulf %868, %846 : vector<8x128xf32>
      %870 = arith.addf %840, %869 : vector<8x128xf32>
      %c55_327 = arith.constant 55 : index
      %871 = memref.load %arg3[%c55_327] : memref<98xf32, #tpu.memory_space<smem>>
      %872 = vector.broadcast %871 : f32 to vector<8x128xf32>
      %873 = arith.mulf %872, %846 : vector<8x128xf32>
      %874 = arith.addf %844, %873 : vector<8x128xf32>
      %c1_328 = arith.constant 1 : index
      %c9_329 = arith.constant 9 : index
      %c0_330 = arith.constant 0 : index
      %875 = vector.load %arg7[%c1_328, %c9_329, %c0_330] : memref<2x22x128xf32, #tpu.memory_space<vmem>>, vector<1x8x128xf32>
      %876 = vector.shape_cast %875 : vector<1x8x128xf32> to vector<8x128xf32>
      %c56_331 = arith.constant 56 : index
      %877 = memref.load %arg3[%c56_331] : memref<98xf32, #tpu.memory_space<smem>>
      %878 = vector.broadcast %877 : f32 to vector<8x128xf32>
      %879 = arith.mulf %878, %876 : vector<8x128xf32>
      %880 = arith.addf %850, %879 : vector<8x128xf32>
      %c57_332 = arith.constant 57 : index
      %881 = memref.load %arg3[%c57_332] : memref<98xf32, #tpu.memory_space<smem>>
      %882 = vector.broadcast %881 : f32 to vector<8x128xf32>
      %883 = arith.mulf %882, %876 : vector<8x128xf32>
      %884 = arith.addf %854, %883 : vector<8x128xf32>
      %c58_333 = arith.constant 58 : index
      %885 = memref.load %arg3[%c58_333] : memref<98xf32, #tpu.memory_space<smem>>
      %886 = vector.broadcast %885 : f32 to vector<8x128xf32>
      %887 = arith.mulf %886, %876 : vector<8x128xf32>
      %888 = arith.addf %858, %887 : vector<8x128xf32>
      %c59_334 = arith.constant 59 : index
      %889 = memref.load %arg3[%c59_334] : memref<98xf32, #tpu.memory_space<smem>>
      %890 = vector.broadcast %889 : f32 to vector<8x128xf32>
      %891 = arith.mulf %890, %876 : vector<8x128xf32>
      %892 = arith.addf %862, %891 : vector<8x128xf32>
      %c60_335 = arith.constant 60 : index
      %893 = memref.load %arg3[%c60_335] : memref<98xf32, #tpu.memory_space<smem>>
      %894 = vector.broadcast %893 : f32 to vector<8x128xf32>
      %895 = arith.mulf %894, %876 : vector<8x128xf32>
      %896 = arith.addf %866, %895 : vector<8x128xf32>
      %c61_336 = arith.constant 61 : index
      %897 = memref.load %arg3[%c61_336] : memref<98xf32, #tpu.memory_space<smem>>
      %898 = vector.broadcast %897 : f32 to vector<8x128xf32>
      %899 = arith.mulf %898, %876 : vector<8x128xf32>
      %900 = arith.addf %870, %899 : vector<8x128xf32>
      %c62_337 = arith.constant 62 : index
      %901 = memref.load %arg3[%c62_337] : memref<98xf32, #tpu.memory_space<smem>>
      %902 = vector.broadcast %901 : f32 to vector<8x128xf32>
      %903 = arith.mulf %902, %876 : vector<8x128xf32>
      %904 = arith.addf %874, %903 : vector<8x128xf32>
      %c1_338 = arith.constant 1 : index
      %c10_339 = arith.constant 10 : index
      %c0_340 = arith.constant 0 : index
      %905 = vector.load %arg7[%c1_338, %c10_339, %c0_340] : memref<2x22x128xf32, #tpu.memory_space<vmem>>, vector<1x8x128xf32>
      %906 = vector.shape_cast %905 : vector<1x8x128xf32> to vector<8x128xf32>
      %c63_341 = arith.constant 63 : index
      %907 = memref.load %arg3[%c63_341] : memref<98xf32, #tpu.memory_space<smem>>
      %908 = vector.broadcast %907 : f32 to vector<8x128xf32>
      %909 = arith.mulf %908, %906 : vector<8x128xf32>
      %910 = arith.addf %880, %909 : vector<8x128xf32>
      %c64_342 = arith.constant 64 : index
      %911 = memref.load %arg3[%c64_342] : memref<98xf32, #tpu.memory_space<smem>>
      %912 = vector.broadcast %911 : f32 to vector<8x128xf32>
      %913 = arith.mulf %912, %906 : vector<8x128xf32>
      %914 = arith.addf %884, %913 : vector<8x128xf32>
      %c65_343 = arith.constant 65 : index
      %915 = memref.load %arg3[%c65_343] : memref<98xf32, #tpu.memory_space<smem>>
      %916 = vector.broadcast %915 : f32 to vector<8x128xf32>
      %917 = arith.mulf %916, %906 : vector<8x128xf32>
      %918 = arith.addf %888, %917 : vector<8x128xf32>
      %c66_344 = arith.constant 66 : index
      %919 = memref.load %arg3[%c66_344] : memref<98xf32, #tpu.memory_space<smem>>
      %920 = vector.broadcast %919 : f32 to vector<8x128xf32>
      %921 = arith.mulf %920, %906 : vector<8x128xf32>
      %922 = arith.addf %892, %921 : vector<8x128xf32>
      %c67_345 = arith.constant 67 : index
      %923 = memref.load %arg3[%c67_345] : memref<98xf32, #tpu.memory_space<smem>>
      %924 = vector.broadcast %923 : f32 to vector<8x128xf32>
      %925 = arith.mulf %924, %906 : vector<8x128xf32>
      %926 = arith.addf %896, %925 : vector<8x128xf32>
      %c68_346 = arith.constant 68 : index
      %927 = memref.load %arg3[%c68_346] : memref<98xf32, #tpu.memory_space<smem>>
      %928 = vector.broadcast %927 : f32 to vector<8x128xf32>
      %929 = arith.mulf %928, %906 : vector<8x128xf32>
      %930 = arith.addf %900, %929 : vector<8x128xf32>
      %c69_347 = arith.constant 69 : index
      %931 = memref.load %arg3[%c69_347] : memref<98xf32, #tpu.memory_space<smem>>
      %932 = vector.broadcast %931 : f32 to vector<8x128xf32>
      %933 = arith.mulf %932, %906 : vector<8x128xf32>
      %934 = arith.addf %904, %933 : vector<8x128xf32>
      %c1_348 = arith.constant 1 : index
      %c11_349 = arith.constant 11 : index
      %c0_350 = arith.constant 0 : index
      %935 = vector.load %arg7[%c1_348, %c11_349, %c0_350] : memref<2x22x128xf32, #tpu.memory_space<vmem>>, vector<1x8x128xf32>
      %936 = vector.shape_cast %935 : vector<1x8x128xf32> to vector<8x128xf32>
      %c70_351 = arith.constant 70 : index
      %937 = memref.load %arg3[%c70_351] : memref<98xf32, #tpu.memory_space<smem>>
      %938 = vector.broadcast %937 : f32 to vector<8x128xf32>
      %939 = arith.mulf %938, %936 : vector<8x128xf32>
      %940 = arith.addf %910, %939 : vector<8x128xf32>
      %c71_352 = arith.constant 71 : index
      %941 = memref.load %arg3[%c71_352] : memref<98xf32, #tpu.memory_space<smem>>
      %942 = vector.broadcast %941 : f32 to vector<8x128xf32>
      %943 = arith.mulf %942, %936 : vector<8x128xf32>
      %944 = arith.addf %914, %943 : vector<8x128xf32>
      %c72_353 = arith.constant 72 : index
      %945 = memref.load %arg3[%c72_353] : memref<98xf32, #tpu.memory_space<smem>>
      %946 = vector.broadcast %945 : f32 to vector<8x128xf32>
      %947 = arith.mulf %946, %936 : vector<8x128xf32>
      %948 = arith.addf %918, %947 : vector<8x128xf32>
      %c73_354 = arith.constant 73 : index
      %949 = memref.load %arg3[%c73_354] : memref<98xf32, #tpu.memory_space<smem>>
      %950 = vector.broadcast %949 : f32 to vector<8x128xf32>
      %951 = arith.mulf %950, %936 : vector<8x128xf32>
      %952 = arith.addf %922, %951 : vector<8x128xf32>
      %c74_355 = arith.constant 74 : index
      %953 = memref.load %arg3[%c74_355] : memref<98xf32, #tpu.memory_space<smem>>
      %954 = vector.broadcast %953 : f32 to vector<8x128xf32>
      %955 = arith.mulf %954, %936 : vector<8x128xf32>
      %956 = arith.addf %926, %955 : vector<8x128xf32>
      %c75_356 = arith.constant 75 : index
      %957 = memref.load %arg3[%c75_356] : memref<98xf32, #tpu.memory_space<smem>>
      %958 = vector.broadcast %957 : f32 to vector<8x128xf32>
      %959 = arith.mulf %958, %936 : vector<8x128xf32>
      %960 = arith.addf %930, %959 : vector<8x128xf32>
      %c76_357 = arith.constant 76 : index
      %961 = memref.load %arg3[%c76_357] : memref<98xf32, #tpu.memory_space<smem>>
      %962 = vector.broadcast %961 : f32 to vector<8x128xf32>
      %963 = arith.mulf %962, %936 : vector<8x128xf32>
      %964 = arith.addf %934, %963 : vector<8x128xf32>
      %c1_358 = arith.constant 1 : index
      %c12_359 = arith.constant 12 : index
      %c0_360 = arith.constant 0 : index
      %965 = vector.load %arg7[%c1_358, %c12_359, %c0_360] : memref<2x22x128xf32, #tpu.memory_space<vmem>>, vector<1x8x128xf32>
      %966 = vector.shape_cast %965 : vector<1x8x128xf32> to vector<8x128xf32>
      %c77_361 = arith.constant 77 : index
      %967 = memref.load %arg3[%c77_361] : memref<98xf32, #tpu.memory_space<smem>>
      %968 = vector.broadcast %967 : f32 to vector<8x128xf32>
      %969 = arith.mulf %968, %966 : vector<8x128xf32>
      %970 = arith.addf %940, %969 : vector<8x128xf32>
      %c78_362 = arith.constant 78 : index
      %971 = memref.load %arg3[%c78_362] : memref<98xf32, #tpu.memory_space<smem>>
      %972 = vector.broadcast %971 : f32 to vector<8x128xf32>
      %973 = arith.mulf %972, %966 : vector<8x128xf32>
      %974 = arith.addf %944, %973 : vector<8x128xf32>
      %c79_363 = arith.constant 79 : index
      %975 = memref.load %arg3[%c79_363] : memref<98xf32, #tpu.memory_space<smem>>
      %976 = vector.broadcast %975 : f32 to vector<8x128xf32>
      %977 = arith.mulf %976, %966 : vector<8x128xf32>
      %978 = arith.addf %948, %977 : vector<8x128xf32>
      %c80_364 = arith.constant 80 : index
      %979 = memref.load %arg3[%c80_364] : memref<98xf32, #tpu.memory_space<smem>>
      %980 = vector.broadcast %979 : f32 to vector<8x128xf32>
      %981 = arith.mulf %980, %966 : vector<8x128xf32>
      %982 = arith.addf %952, %981 : vector<8x128xf32>
      %c81_365 = arith.constant 81 : index
      %983 = memref.load %arg3[%c81_365] : memref<98xf32, #tpu.memory_space<smem>>
      %984 = vector.broadcast %983 : f32 to vector<8x128xf32>
      %985 = arith.mulf %984, %966 : vector<8x128xf32>
      %986 = arith.addf %956, %985 : vector<8x128xf32>
      %c82_366 = arith.constant 82 : index
      %987 = memref.load %arg3[%c82_366] : memref<98xf32, #tpu.memory_space<smem>>
      %988 = vector.broadcast %987 : f32 to vector<8x128xf32>
      %989 = arith.mulf %988, %966 : vector<8x128xf32>
      %990 = arith.addf %960, %989 : vector<8x128xf32>
      %c83_367 = arith.constant 83 : index
      %991 = memref.load %arg3[%c83_367] : memref<98xf32, #tpu.memory_space<smem>>
      %992 = vector.broadcast %991 : f32 to vector<8x128xf32>
      %993 = arith.mulf %992, %966 : vector<8x128xf32>
      %994 = arith.addf %964, %993 : vector<8x128xf32>
      %c1_368 = arith.constant 1 : index
      %c13_369 = arith.constant 13 : index
      %c0_370 = arith.constant 0 : index
      %995 = vector.load %arg7[%c1_368, %c13_369, %c0_370] : memref<2x22x128xf32, #tpu.memory_space<vmem>>, vector<1x8x128xf32>
      %996 = vector.shape_cast %995 : vector<1x8x128xf32> to vector<8x128xf32>
      %c84_371 = arith.constant 84 : index
      %997 = memref.load %arg3[%c84_371] : memref<98xf32, #tpu.memory_space<smem>>
      %998 = vector.broadcast %997 : f32 to vector<8x128xf32>
      %999 = arith.mulf %998, %996 : vector<8x128xf32>
      %1000 = arith.addf %970, %999 : vector<8x128xf32>
      %c85_372 = arith.constant 85 : index
      %1001 = memref.load %arg3[%c85_372] : memref<98xf32, #tpu.memory_space<smem>>
      %1002 = vector.broadcast %1001 : f32 to vector<8x128xf32>
      %1003 = arith.mulf %1002, %996 : vector<8x128xf32>
      %1004 = arith.addf %974, %1003 : vector<8x128xf32>
      %c86_373 = arith.constant 86 : index
      %1005 = memref.load %arg3[%c86_373] : memref<98xf32, #tpu.memory_space<smem>>
      %1006 = vector.broadcast %1005 : f32 to vector<8x128xf32>
      %1007 = arith.mulf %1006, %996 : vector<8x128xf32>
      %1008 = arith.addf %978, %1007 : vector<8x128xf32>
      %c87_374 = arith.constant 87 : index
      %1009 = memref.load %arg3[%c87_374] : memref<98xf32, #tpu.memory_space<smem>>
      %1010 = vector.broadcast %1009 : f32 to vector<8x128xf32>
      %1011 = arith.mulf %1010, %996 : vector<8x128xf32>
      %1012 = arith.addf %982, %1011 : vector<8x128xf32>
      %c88_375 = arith.constant 88 : index
      %1013 = memref.load %arg3[%c88_375] : memref<98xf32, #tpu.memory_space<smem>>
      %1014 = vector.broadcast %1013 : f32 to vector<8x128xf32>
      %1015 = arith.mulf %1014, %996 : vector<8x128xf32>
      %1016 = arith.addf %986, %1015 : vector<8x128xf32>
      %c89_376 = arith.constant 89 : index
      %1017 = memref.load %arg3[%c89_376] : memref<98xf32, #tpu.memory_space<smem>>
      %1018 = vector.broadcast %1017 : f32 to vector<8x128xf32>
      %1019 = arith.mulf %1018, %996 : vector<8x128xf32>
      %1020 = arith.addf %990, %1019 : vector<8x128xf32>
      %c90_377 = arith.constant 90 : index
      %1021 = memref.load %arg3[%c90_377] : memref<98xf32, #tpu.memory_space<smem>>
      %1022 = vector.broadcast %1021 : f32 to vector<8x128xf32>
      %1023 = arith.mulf %1022, %996 : vector<8x128xf32>
      %1024 = arith.addf %994, %1023 : vector<8x128xf32>
      %c1_378 = arith.constant 1 : index
      %c14_379 = arith.constant 14 : index
      %c0_380 = arith.constant 0 : index
      %1025 = vector.load %arg7[%c1_378, %c14_379, %c0_380] : memref<2x22x128xf32, #tpu.memory_space<vmem>>, vector<1x8x128xf32>
      %1026 = vector.shape_cast %1025 : vector<1x8x128xf32> to vector<8x128xf32>
      %c91_381 = arith.constant 91 : index
      %1027 = memref.load %arg3[%c91_381] : memref<98xf32, #tpu.memory_space<smem>>
      %1028 = vector.broadcast %1027 : f32 to vector<8x128xf32>
      %1029 = arith.mulf %1028, %1026 : vector<8x128xf32>
      %1030 = arith.addf %1000, %1029 : vector<8x128xf32>
      %c92_382 = arith.constant 92 : index
      %1031 = memref.load %arg3[%c92_382] : memref<98xf32, #tpu.memory_space<smem>>
      %1032 = vector.broadcast %1031 : f32 to vector<8x128xf32>
      %1033 = arith.mulf %1032, %1026 : vector<8x128xf32>
      %1034 = arith.addf %1004, %1033 : vector<8x128xf32>
      %c93_383 = arith.constant 93 : index
      %1035 = memref.load %arg3[%c93_383] : memref<98xf32, #tpu.memory_space<smem>>
      %1036 = vector.broadcast %1035 : f32 to vector<8x128xf32>
      %1037 = arith.mulf %1036, %1026 : vector<8x128xf32>
      %1038 = arith.addf %1008, %1037 : vector<8x128xf32>
      %c94_384 = arith.constant 94 : index
      %1039 = memref.load %arg3[%c94_384] : memref<98xf32, #tpu.memory_space<smem>>
      %1040 = vector.broadcast %1039 : f32 to vector<8x128xf32>
      %1041 = arith.mulf %1040, %1026 : vector<8x128xf32>
      %1042 = arith.addf %1012, %1041 : vector<8x128xf32>
      %c95_385 = arith.constant 95 : index
      %1043 = memref.load %arg3[%c95_385] : memref<98xf32, #tpu.memory_space<smem>>
      %1044 = vector.broadcast %1043 : f32 to vector<8x128xf32>
      %1045 = arith.mulf %1044, %1026 : vector<8x128xf32>
      %1046 = arith.addf %1016, %1045 : vector<8x128xf32>
      %c96_386 = arith.constant 96 : index
      %1047 = memref.load %arg3[%c96_386] : memref<98xf32, #tpu.memory_space<smem>>
      %1048 = vector.broadcast %1047 : f32 to vector<8x128xf32>
      %1049 = arith.mulf %1048, %1026 : vector<8x128xf32>
      %1050 = arith.addf %1020, %1049 : vector<8x128xf32>
      %c97_387 = arith.constant 97 : index
      %1051 = memref.load %arg3[%c97_387] : memref<98xf32, #tpu.memory_space<smem>>
      %1052 = vector.broadcast %1051 : f32 to vector<8x128xf32>
      %1053 = arith.mulf %1052, %1026 : vector<8x128xf32>
      %1054 = arith.addf %1024, %1053 : vector<8x128xf32>
      %cst_388 = arith.constant 0.000000e+00 : f32
      %1055 = vector.broadcast %cst_388 : f32 to vector<8x128xf32>
      %cst_389 = arith.constant 0.000000e+00 : f32
      %1056 = vector.broadcast %cst_389 : f32 to vector<8x128xf32>
      %1057 = arith.select %627, %1030, %1056 : vector<8x128xi1>, vector<8x128xf32>
      %c3_i32_390 = arith.constant 3 : i32
      %1058 = tpu.dynamic_rotate %1057 by %c3_i32_390 dim 1 : vector<8x128xf32>, i32 -> vector<8x128xf32>
      %1059 = arith.addf %1055, %1058 : vector<8x128xf32>
      %cst_391 = arith.constant 0.000000e+00 : f32
      %1060 = vector.broadcast %cst_391 : f32 to vector<8x128xf32>
      %1061 = arith.select %627, %1034, %1060 : vector<8x128xi1>, vector<8x128xf32>
      %c2_i32_392 = arith.constant 2 : i32
      %1062 = tpu.dynamic_rotate %1061 by %c2_i32_392 dim 1 : vector<8x128xf32>, i32 -> vector<8x128xf32>
      %1063 = arith.addf %1059, %1062 : vector<8x128xf32>
      %cst_393 = arith.constant 0.000000e+00 : f32
      %1064 = vector.broadcast %cst_393 : f32 to vector<8x128xf32>
      %1065 = arith.select %627, %1038, %1064 : vector<8x128xi1>, vector<8x128xf32>
      %c1_i32_394 = arith.constant 1 : i32
      %1066 = tpu.dynamic_rotate %1065 by %c1_i32_394 dim 1 : vector<8x128xf32>, i32 -> vector<8x128xf32>
      %1067 = arith.addf %1063, %1066 : vector<8x128xf32>
      %cst_395 = arith.constant 0.000000e+00 : f32
      %1068 = vector.broadcast %cst_395 : f32 to vector<8x128xf32>
      %1069 = arith.select %627, %1042, %1068 : vector<8x128xi1>, vector<8x128xf32>
      %1070 = arith.addf %1067, %1069 : vector<8x128xf32>
      %cst_396 = arith.constant 0.000000e+00 : f32
      %1071 = vector.broadcast %cst_396 : f32 to vector<8x128xf32>
      %1072 = arith.select %627, %1046, %1071 : vector<8x128xi1>, vector<8x128xf32>
      %c127_i32_397 = arith.constant 127 : i32
      %1073 = tpu.dynamic_rotate %1072 by %c127_i32_397 dim 1 : vector<8x128xf32>, i32 -> vector<8x128xf32>
      %1074 = arith.addf %1070, %1073 : vector<8x128xf32>
      %cst_398 = arith.constant 0.000000e+00 : f32
      %1075 = vector.broadcast %cst_398 : f32 to vector<8x128xf32>
      %1076 = arith.select %627, %1050, %1075 : vector<8x128xi1>, vector<8x128xf32>
      %c126_i32_399 = arith.constant 126 : i32
      %1077 = tpu.dynamic_rotate %1076 by %c126_i32_399 dim 1 : vector<8x128xf32>, i32 -> vector<8x128xf32>
      %1078 = arith.addf %1074, %1077 : vector<8x128xf32>
      %cst_400 = arith.constant 0.000000e+00 : f32
      %1079 = vector.broadcast %cst_400 : f32 to vector<8x128xf32>
      %1080 = arith.select %627, %1054, %1079 : vector<8x128xi1>, vector<8x128xf32>
      %c125_i32_401 = arith.constant 125 : i32
      %1081 = tpu.dynamic_rotate %1080 by %c125_i32_401 dim 1 : vector<8x128xf32>, i32 -> vector<8x128xf32>
      %1082 = arith.addf %1078, %1081 : vector<8x128xf32>
      %1083 = arith.negf %1082 : vector<8x128xf32>
      %1084 = math.exp %1083 : vector<8x128xf32>
      %cst_402 = arith.constant 1.000000e+00 : f32
      %1085 = vector.broadcast %cst_402 : f32 to vector<8x128xf32>
      %1086 = arith.addf %1085, %1084 : vector<8x128xf32>
      %1087 = arith.divf %1085, %1086 : vector<8x128xf32>
      %c0_403 = arith.constant 0 : index
      %c8_404 = arith.constant 8 : index
      %c0_405 = arith.constant 0 : index
      %1088 = vector.load %arg4[%c0_403, %c8_404, %c0_405] : memref<1x16x128xf32, #tpu.memory_space<vmem>>, vector<1x8x128xf32>
      %1089 = vector.shape_cast %1088 : vector<1x8x128xf32> to vector<8x128xf32>
      %1090 = vector.shape_cast %1087 : vector<8x128xf32> to vector<1x8x128xf32>
      tpu.vector_store %arg4[%c0_403, %c8_404, %c0_405], %1090 {strides = array<i32>} : memref<1x16x128xf32, #tpu.memory_space<vmem>>, vector<1x8x128xf32>,
    } else {
    }
    return
  }
  func.func @transform_0(%arg0: i32, %arg1: i32) -> (i32, i32, i32) {
    %c0_i32 = arith.constant 0 : i32
    %c0_i32_0 = arith.constant 0 : i32
    return %arg0, %arg1, %c0_i32 : i32, i32, i32
  }
  func.func @transform_1(%arg0: i32, %arg1: i32) -> i32 {
    %c0_i32 = arith.constant 0 : i32
    %c0_i32_0 = arith.constant 0 : i32
    return %c0_i32 : i32
  }
  func.func @transform_2(%arg0: i32, %arg1: i32) -> (i32, i32, i32) {
    %c0_i32 = arith.constant 0 : i32
    %c0_i32_0 = arith.constant 0 : i32
    %c0_i32_1 = arith.constant 0 : i32
    return %arg0, %c0_i32, %c0_i32_0 : i32, i32, i32
  }
}

</mosaic_0001>

<llo_original>
// kernel: tpu_custom_call.1
$region0: #{tpu_custom_call.1}
  #allocation0 [shape = 'u32[]', space=smem, size = 0x4, offset = 0x4, fixed_abs, tag = 'smem constant byte address 0x4 - core index']
  #allocation1 [shape = 'u32[144,128]{1,0:T(1,128)}', space=vmem, size = 0x12000, scoped, tag = 'internal scratch']
  #allocation2 [shape = 'f32[1,256]{1,0:T(1,128)}', space=vmem, size = 0x400, scoped, tag = 'scratch operand']
  #allocation3 [shape = 'f32[1,256]{1,0:T(1,128)}', space=vmem, size = 0x400, scoped, tag = 'scratch operand']
  #allocation4 [shape = 'f32[2,22,128]{2,1,0:T(8,128)}', space=vmem, size = 0x6000, scoped, tag = 'scratch operand']
  %s0 = inlined_call_operand.hbm [shape: f32[2,4,256], index: 0, kind: input, shape index: {}]
  %s1 = inlined_call_operand.vmem [shape: f32[98], index: 1, kind: input, shape index: {}]
  %s2 = inlined_call_operand.hbm [shape: f32[2,16,128], index: 2, kind: output, shape index: {}]
  %s3 = sld [smem:[#allocation0]]
  $region57: #{tpu_custom_call.1} parent=0
    _
  %s5 = ssub.s32 1, %s3
  %s6 = scalar_select 0, %s5, %s3
  $region1: #{tpu_custom_call.1} parent=0
    #allocation5 [shape = 'u8[8192]{0}', space=vmem, size = 0x2000, scoped, tag = 'input window, operand 0']
    #allocation6 [shape = 's32[2]{0}', space=sflag, size = 0x8, scoped, tag = 'scoped memory for tpu_custom_call.1']
    #allocation7 [shape = 's32[2]{0}', space=sflag, size = 0x8, scoped, tag = 'scoped memory for tpu_custom_call.1']
    #allocation8 [shape = 's32[2]{0}', space=sflag, size = 0x8, scoped, tag = 'scoped memory for tpu_custom_call.1']
    #allocation9 [shape = 'u8[512]{0}', space=smem, size = 0x200, scoped, tag = 'input window, operand 1, single buffered']
    #allocation10 [shape = 'u8[16384]{0}', space=vmem, size = 0x4000, scoped, tag = 'output window, operand 0']
    %7 = vsyncpa [#allocation6], 0
    %s8 = scalar_lea.sflag [#allocation6], 1
    %9 = vsyncpa %s8, 0
    %10 = vsyncpa [#allocation8], 0
    %11 = vsyncpa [#allocation7], 0
    %s12 = scalar_lea.sflag [#allocation7], 1
    %13 = vsyncpa %s12, 0
    loop: start=0, step=1, limit=4
    $region2: #{tpu_custom_call.1} parent=1 // loop_pre_header
      _
    $region3: #{tpu_custom_call.1} parent=1 // loop_header
      %s15 = sphi 0, %s19
      %p16 = scmp.ge.s32.totalorder %s15, 4
      %s22 = sphi 0, %s34
      %s23 = sphi 0, %s30
      %s24 = sphi 0, %s22
      %s25 = sphi 0, %s23
      %s26 = sphi 0, %s24
      %s27 = sphi 0, %s25
      %s39 = sphi 0, %s41
      %s42 = sphi 0, %s39
      %s43 = sphi 0, %s42
      %s59 = sphi 0, %s43
      %s63 = sphi 0, %s63
      %s65 = sphi 0, %s63
      %s66 = sphi 0, %s65
      %s80 = sphi 0, %s66
      %s86 = sphi 0, %s88
      %s89 = sphi 0, %s86
      %s90 = sphi 0, %s89
      %s106 = sphi 0, %s90
    $region4: #{tpu_custom_call.1} parent=1 // loop_header_branch
      %18 = sbr.rel (%p16) target = $region8
    $region5: #{tpu_custom_call.1} parent=1 // loop_body
      %s20 = ssub.s32 %s15, 1
      %s21 = ssub.s32 %s15, 2
      %s28 = sadd.s32 1, %s23
      %p29 = scmp.ge.s32.totalorder %s28, 1
      %s30 = scalar_select %p29, 0, %s28
      %s31 = sadd.s32 1, %s22
      %s32 = scalar_select %p29, %s31, %s22
      %p33 = scmp.ge.s32.totalorder %s32, 2
      %s34 = scalar_select %p33, 0, %s32
      %s35 = ssub.s32 %s22, %s34
      %s36 = ssub.s32 %s23, %s30
      %s37 = sor.u32 %s35, %s36
      %p38 = scmp.eq.s32.totalorder %s37, 0
      %s40 = sadd.s32 %s39, 1
      %s41 = scalar_select %p38, %s39, %s40
      %p44 = pneg %p38
      %p45 = scmp.eq.s32.totalorder %s15, 1
      %p46 = por %p44, %p45
      %p47 = scmp.ne.s32.totalorder %s39, %s42
      %p48 = scmp.eq.s32.totalorder %s15, 0
      %p49 = por %p47, %p48
      %p50 = scmp.ne.s32.totalorder %s39, %s42
      %p51 = scmp.eq.s32.totalorder %s20, 1
      %p52 = por %p50, %p51
      %p53 = scmp.ne.s32.totalorder %s42, %s43
      %p54 = scmp.eq.s32.totalorder %s20, 0
      %p55 = por %p53, %p54
      %p56 = scmp.ne.s32.totalorder %s42, %s43
      %p57 = scmp.eq.s32.totalorder %s21, 1
      %p58 = por %p56, %p57
      %p60 = scmp.ne.s32.totalorder %s43, %s59
      %p61 = scmp.eq.s32.totalorder %s21, 0
      %p62 = por %p60, %p61
      %s64 = sadd.s32 %s63, 1
      %p67 = scmp.eq.s32.totalorder %s15, 1
      %p68 = scmp.ne.s32.totalorder %s63, %s65
      %p69 = scmp.eq.s32.totalorder %s15, 0
      %p70 = por %p68, %p69
      %p71 = scmp.ne.s32.totalorder %s63, %s65
      %p72 = scmp.eq.s32.totalorder %s20, 1
      %p73 = por %p71, %p72
      %p74 = scmp.ne.s32.totalorder %s65, %s66
      %p75 = scmp.eq.s32.totalorder %s20, 0
      %p76 = por %p74, %p75
      %p77 = scmp.ne.s32.totalorder %s65, %s66
      %p78 = scmp.eq.s32.totalorder %s21, 1
      %p79 = por %p77, %p78
      %p81 = scmp.ne.s32.totalorder %s66, %s80
      %p82 = scmp.eq.s32.totalorder %s21, 0
      %p83 = por %p81, %p82
      %s84 = ssub.s32 %s22, %s34
      %p85 = scmp.eq.s32.totalorder %s84, 0
      %s87 = sadd.s32 %s86, 1
      %s88 = scalar_select %p85, %s86, %s87
      %p91 = pneg %p85
      %p92 = scmp.eq.s32.totalorder %s15, 1
      %p93 = por %p91, %p92
      %p94 = scmp.ne.s32.totalorder %s86, %s89
      %p95 = scmp.eq.s32.totalorder %s15, 0
      %p96 = por %p94, %p95
      %p97 = scmp.ne.s32.totalorder %s86, %s89
      %p98 = scmp.eq.s32.totalorder %s20, 1
      %p99 = por %p97, %p98
      %p100 = scmp.ne.s32.totalorder %s89, %s90
      %p101 = scmp.eq.s32.totalorder %s20, 0
      %p102 = por %p100, %p101
      %p103 = scmp.ne.s32.totalorder %s89, %s90
      %p104 = scmp.eq.s32.totalorder %s21, 1
      %p105 = por %p103, %p104
      %p107 = scmp.ne.s32.totalorder %s90, %s106
      %p108 = scmp.eq.s32.totalorder %s21, 0
      %p109 = por %p107, %p108
      %p110 = scmp.le.s32.totalorder 1, %s15
      %p111 = scmp.lt.s32.totalorder %s15, 3
      %p112 = pnand %p110, %p111
      %p113 = pneg %p112
      // Predicated region
      $region9: #{tpu_custom_call.1} parent=5 // pred_check
        _
      $region10: #{tpu_custom_call.1} parent=5 // pred_check_branch
        %115 = sbr.rel (%p112) target = $region12
      $region11: #{tpu_custom_call.1} parent=5 // pred_region
        %s116 = ssub.s32 %s15, 1
        // Predicated region
        $region13: #{tpu_custom_call.1} parent=11 // pred_check
          %p117 = pneg %p76
        $region14: #{tpu_custom_call.1} parent=11 // pred_check_branch
          %119 = sbr.rel (%p117) target = $region16
        $region15: #{tpu_custom_call.1} parent=11 // pred_region
          %s121 = ssub.s32 16, 16
          %122 = vsyncadd [#allocation8], %s121
          %s124 = sshll.u32 %s1, 4
          %s125 = int_to_ptr.vmem [resolvable:$true] %s124
          %127 = dma.vmem_to_smem %s125, 16, [#allocation9], [#allocation8]
        $region16: #{tpu_custom_call.1} parent=11 // pred_fallthru
          _
      $region12: #{tpu_custom_call.1} parent=5 // pred_fallthru
        _
      %p128 = scmp.lt.s32.totalorder %s15, 2
      // Predicated region
      $region17: #{tpu_custom_call.1} parent=5 // pred_check
        %p129 = pneg %p128
      $region18: #{tpu_custom_call.1} parent=5 // pred_check_branch
        %131 = sbr.rel (%p129) target = $region20
      $region19: #{tpu_custom_call.1} parent=5 // pred_region
        // Predicated region
        $region21: #{tpu_custom_call.1} parent=19 // pred_check
          %p132 = pneg %p49
        $region22: #{tpu_custom_call.1} parent=19 // pred_check_branch
          %134 = sbr.rel (%p132) target = $region24
        $region23: #{tpu_custom_call.1} parent=19 // pred_region
          %s135 = sand.u32 %s39, 1
          %s136 = scalar_lea.sflag [#allocation6], %s135
          %s137 = sand.u32 %s39, 1
          %s138 = smul.addr %s137, 8
          %s139 = scalar_lea.vmem [#allocation5], %s138
          %s141 = ssub.s32 128, 128
          %142 = vsyncadd %s136, %s141
          %s143 = smul.addr %s23, 2
          %s144 = smul.addr %s22, 2
          %s145 = sadd.s32 %s143, %s144
          %s146 = smul.addr %s145, 64
          %s147 = scalar_lea.hbm %s0, %s146
          %s149 = sshll.u32 %s139, 4
          %s150 = int_to_ptr.vmem [resolvable:$true] %s149
          %152 = dma.hbm_to_vmem [thread:$0]  %s147, 128, %s150, %s136
        $region24: #{tpu_custom_call.1} parent=19 // pred_fallthru
          _
      $region20: #{tpu_custom_call.1} parent=5 // pred_fallthru
        _
      %p153 = scmp.le.s32.totalorder 1, %s15
      %p154 = scmp.lt.s32.totalorder %s15, 3
      %p155 = pnand %p153, %p154
      %p156 = pneg %p155
      // Predicated region
      $region25: #{tpu_custom_call.1} parent=5 // pred_check
        _
      $region26: #{tpu_custom_call.1} parent=5 // pred_check_branch
        %158 = sbr.rel (%p155) target = $region28
      $region27: #{tpu_custom_call.1} parent=5 // pred_region
        %s159 = ssub.s32 %s15, 1
        %s160 = sand.u32 %s42, 1
        %s161 = scalar_lea.sflag [#allocation6], %s160
        %s162 = sand.u32 %s42, 1
        %s163 = smul.addr %s162, 8
        %s164 = scalar_lea.vmem [#allocation5], %s163
        // Predicated region
        $region29: #{tpu_custom_call.1} parent=27 // pred_check
          %p165 = pneg %p55
        $region30: #{tpu_custom_call.1} parent=27 // pred_check_branch
          %167 = sbr.rel (%p165) target = $region32
        $region31: #{tpu_custom_call.1} parent=27 // pred_region
          %168 = dma.done %s161, 128
        $region32: #{tpu_custom_call.1} parent=27 // pred_fallthru
          _
        // Predicated region
        $region33: #{tpu_custom_call.1} parent=27 // pred_check
          %p169 = pneg %p76
        $region34: #{tpu_custom_call.1} parent=27 // pred_check_branch
          %171 = sbr.rel (%p169) target = $region36
        $region35: #{tpu_custom_call.1} parent=27 // pred_region
          %172 = dma.done [#allocation8], 16
        $region36: #{tpu_custom_call.1} parent=27 // pred_fallthru
          _
        %173 = sfence
        %s174 = sand.u32 %s42, 1
        %s175 = scalar_lea.sflag [#allocation6], %s174
        %s176 = sand.u32 %s42, 1
        %s177 = smul.addr %s176, 8
        %s178 = scalar_lea.vmem [#allocation5], %s177
        %p179 = pneg %p55
        %p180 = pneg %p52
        %p181 = pneg %p76
        %p182 = pneg %p73
        %p183 = pneg %p102
        %p184 = pneg %p99
        %s185 = sand.u32 %s89, 1
        %s186 = scalar_lea.sflag [#allocation7], %s185
        %s187 = sand.u32 %s89, 1
        %s188 = smul.addr %s187, 16
        %s189 = scalar_lea.vmem [#allocation10], %s188
        %p190 = scmp.eq.s32.totalorder %s25, 0
        // Predicated region
        $region37: #{tpu_custom_call.1} parent=27 // pred_check
          %p191 = pneg %p190
        $region38: #{tpu_custom_call.1} parent=27 // pred_check_branch
          %193 = sbr.rel (%p191) target = $region40
        $region39: #{tpu_custom_call.1} parent=27 // pred_region
          %v194 = vlaneseq
          %vm195 = vcmp.ge.s32.totalorder %v194, 0
          %vm196 = vcmp.lt.s32.totalorder %v194, 256
          %vm197 = vmand %vm195, %vm196
          %198 = vst.msk [vmem:[#allocation2] sm:$0x3] %vm197, 0.0
          %199 = vst.msk [vmem:[#allocation3] sm:$0x3] %vm197, -inf
        $region40: #{tpu_custom_call.1} parent=27 // pred_fallthru
          _
        %v200 = vld [vmem:[%s164] sm:$0xff]
        %v201 = vld [vmem:[#allocation2] sm:$0x3]
        %v203 = vcombine.high %v200, %v200
        %vm205 = vcmask 1043456
        %v206 = vsel %vm205, %v200, 0.0
        %v207 = vrot.slane %v206, 4
        %v208 = vadd.f32 %v206, %v207
        %v209 = vrot.slane %v208, 2
        %v210 = vadd.f32 %v208, %v209
        %v211 = vrot.slane %v210, 1
        %v212 = vadd.f32 %v210, %v211
        %v213 = vsel %vm205, %v203, 0.0
        %v214 = vrot.slane %v213, 4
        %v215 = vadd.f32 %v213, %v214
        %v216 = vrot.slane %v215, 2
        %v217 = vadd.f32 %v215, %v216
        %v218 = vrot.slane %v217, 1
        %v219 = vadd.f32 %v217, %v218
        %v222 = vcombine.low %v212, %v219
        %v224 = vunpack.c.l.s4 1966171168
        %v225 = vunpack.c.0.s8 %v224
        %v226 = vlaneseq
        %v227 = vshrl.u32 %v226, 7
        %v228 = vsub.s32 %v225, %v227
        %v229 = vrot.slane %v222, %v228
        %v231 = vunpack.c.l.s4 1966171168
        %v232 = vunpack.c.0.s8 %v231
        %v233 = vlaneseq
        %v234 = vshrl.u32 %v233, 7
        %v235 = vsub.s32 %v232, %v234
        %v236 = vrot.slane %v229, %v235
        %v238 = vadd.f32 %v201, %v236
        %v239 = vlaneseq
        %vm240 = vcmp.ge.s32.totalorder %v239, 0
        %vm241 = vcmp.lt.s32.totalorder %v239, 256
        %vm242 = vmand %vm240, %vm241
        %243 = vst.msk [vmem:[#allocation2] sm:$0x3] %vm242, %v238
        %v244 = vld [vmem:[#allocation3] sm:$0x3]
        %v245 = vsel %vm205, %v200, -inf
        %v246 = vrot.slane %v245, 4
        %v247 = vmax.f32 %v245, %v246
        %v248 = vrot.slane %v247, 2
        %v249 = vmax.f32 %v247, %v248
        %v250 = vrot.slane %v249, 1
        %v251 = vmax.f32 %v249, %v250
        %v252 = vsel %vm205, %v203, -inf
        %v253 = vrot.slane %v252, 4
        %v254 = vmax.f32 %v252, %v253
        %v255 = vrot.slane %v254, 2
        %v256 = vmax.f32 %v254, %v255
        %v257 = vrot.slane %v256, 1
        %v258 = vmax.f32 %v256, %v257
        %v261 = vcombine.low %v251, %v258
        %v263 = vunpack.c.l.s4 1966171168
        %v264 = vunpack.c.0.s8 %v263
        %v265 = vlaneseq
        %v266 = vshrl.u32 %v265, 7
        %v267 = vsub.s32 %v264, %v266
        %v268 = vrot.slane %v261, %v267
        %v270 = vunpack.c.l.s4 1966171168
        %v271 = vunpack.c.0.s8 %v270
        %v272 = vlaneseq
        %v273 = vshrl.u32 %v272, 7
        %v274 = vsub.s32 %v271, %v273
        %v275 = vrot.slane %v268, %v274
        %v277 = vmax.f32 %v244, %v275
        %278 = vst.msk [vmem:[#allocation3] sm:$0x3] %vm242, %v277
        // Predicated region
        $region41: #{tpu_custom_call.1} parent=27 // pred_check
          %p279 = pneg %p190
        $region42: #{tpu_custom_call.1} parent=27 // pred_check_branch
          %281 = sbr.rel (%p279) target = $region44
        $region43: #{tpu_custom_call.1} parent=27 // pred_region
          %282 = vst [vmem:[#allocation4] sm:$0x7] 0.0
          %283 = vst [vmem:[#allocation4 + $0x13] sm:$0x7] 0.0
          %s284 = scalar_lea.vmem [#allocation4], 24
          %285 = vst [vmem:[%s284] sm:$0x7] 0.0
          %286 = vst [vmem:[%s284 + $0x13] sm:$0x7] 0.0
          %v287 = vld [vmem:[#allocation2] sm:$0x1]
          %vm288 = vcmask 122880
          %289 = vst.msk [vmem:[#allocation4 + $0x3] sm:$0x1] %vm288, %v287
          %v290 = vld [vmem:[#allocation3] sm:$0x1]
          %291 = vst.msk [vmem:[%s284 + $0x3] sm:$0x1] %vm288, %v290
          %v292 = vld [vmem:[#allocation2] sm:$0x1]
          %v294 = vlaneseq
          %v295 = vshrl.u32 %v294, 7
          %v296 = vsub.s32 0, %v295
          %v297 = vrot.slane %v292, %v296
          %298 = vrot.lane.b32.xlu0 %v297, 112
          %v299 = vpop.permute.xlu0 %298
          %301 = vst.msk [vmem:[#allocation4 + $0x4] sm:$0x1] %vm288, %v299
          %v302 = vld [vmem:[#allocation3] sm:$0x1]
          %v304 = vlaneseq
          %v305 = vshrl.u32 %v304, 7
          %v306 = vsub.s32 0, %v305
          %v307 = vrot.slane %v302, %v306
          %308 = vrot.lane.b32.xlu0 %v307, 112
          %v309 = vpop.permute.xlu0 %308
          %311 = vst.msk [vmem:[%s284 + $0x4] sm:$0x1] %vm288, %v309
          %v312 = vld [vmem:[#allocation2] sm:$0x1]
          %v314 = vlaneseq
          %v315 = vshrl.u32 %v314, 7
          %v316 = vsub.s32 0, %v315
          %v317 = vrot.slane %v312, %v316
          %318 = vrot.lane.b32.xlu0 %v317, 96
          %v319 = vpop.permute.xlu0 %318
          %321 = vst.msk [vmem:[#allocation4 + $0x5] sm:$0x1] %vm288, %v319
          %v322 = vld [vmem:[#allocation3] sm:$0x1]
          %v324 = vlaneseq
          %v325 = vshrl.u32 %v324, 7
          %v326 = vsub.s32 0, %v325
          %v327 = vrot.slane %v322, %v326
          %328 = vrot.lane.b32.xlu0 %v327, 96
          %v329 = vpop.permute.xlu0 %328
          %331 = vst.msk [vmem:[%s284 + $0x5] sm:$0x1] %vm288, %v329
          %v332 = vld [vmem:[#allocation2] sm:$0x1]
          %v334 = vlaneseq
          %v335 = vshrl.u32 %v334, 7
          %v336 = vsub.s32 0, %v335
          %v337 = vrot.slane %v332, %v336
          %338 = vrot.lane.b32.xlu0 %v337, 80
          %v339 = vpop.permute.xlu0 %338
          %341 = vst.msk [vmem:[#allocation4 + $0x6] sm:$0x1] %vm288, %v339
          %v342 = vld [vmem:[#allocation3] sm:$0x1]
          %v344 = vlaneseq
          %v345 = vshrl.u32 %v344, 7
          %v346 = vsub.s32 0, %v345
          %v347 = vrot.slane %v342, %v346
          %348 = vrot.lane.b32.xlu0 %v347, 80
          %v349 = vpop.permute.xlu0 %348
          %351 = vst.msk [vmem:[%s284 + $0x6] sm:$0x1] %vm288, %v349
          %v352 = vld [vmem:[#allocation2] sm:$0x1]
          %v354 = vlaneseq
          %v355 = vshrl.u32 %v354, 7
          %v356 = vsub.s32 0, %v355
          %v357 = vrot.slane %v352, %v356
          %358 = vrot.lane.b32.xlu0 %v357, 64
          %v359 = vpop.permute.xlu0 %358
          %361 = vst.msk [vmem:[#allocation4 + $0x7] sm:$0x1] %vm288, %v359
          %v362 = vld [vmem:[#allocation3] sm:$0x1]
          %v364 = vlaneseq
          %v365 = vshrl.u32 %v364, 7
          %v366 = vsub.s32 0, %v365
          %v367 = vrot.slane %v362, %v366
          %368 = vrot.lane.b32.xlu0 %v367, 64
          %v369 = vpop.permute.xlu0 %368
          %371 = vst.msk [vmem:[%s284 + $0x7] sm:$0x1] %vm288, %v369
          %v372 = vld [vmem:[#allocation2] sm:$0x1]
          %v374 = vlaneseq
          %v375 = vshrl.u32 %v374, 7
          %v376 = vsub.s32 0, %v375
          %v377 = vrot.slane %v372, %v376
          %378 = vrot.lane.b32.xlu0 %v377, 48
          %v379 = vpop.permute.xlu0 %378
          %381 = vst.msk [vmem:[#allocation4 + $0x8] sm:$0x1] %vm288, %v379
          %v382 = vld [vmem:[#allocation3] sm:$0x1]
          %v384 = vlaneseq
          %v385 = vshrl.u32 %v384, 7
          %v386 = vsub.s32 0, %v385
          %v387 = vrot.slane %v382, %v386
          %388 = vrot.lane.b32.xlu0 %v387, 48
          %v389 = vpop.permute.xlu0 %388
          %391 = vst.msk [vmem:[%s284 + $0x8] sm:$0x1] %vm288, %v389
          %v392 = vld [vmem:[#allocation2] sm:$0x1]
          %v394 = vlaneseq
          %v395 = vshrl.u32 %v394, 7
          %v396 = vsub.s32 0, %v395
          %v397 = vrot.slane %v392, %v396
          %398 = vrot.lane.b32.xlu0 %v397, 32
          %v399 = vpop.permute.xlu0 %398
          %401 = vst.msk [vmem:[#allocation4 + $0x9] sm:$0x1] %vm288, %v399
          %v402 = vld [vmem:[#allocation3] sm:$0x1]
          %v404 = vlaneseq
          %v405 = vshrl.u32 %v404, 7
          %v406 = vsub.s32 0, %v405
          %v407 = vrot.slane %v402, %v406
          %408 = vrot.lane.b32.xlu0 %v407, 32
          %v409 = vpop.permute.xlu0 %408
          %411 = vst.msk [vmem:[%s284 + $0x9] sm:$0x1] %vm288, %v409
          %v412 = vld [vmem:[#allocation2] sm:$0x1]
          %v414 = vlaneseq
          %v415 = vshrl.u32 %v414, 7
          %v416 = vsub.s32 0, %v415
          %v417 = vrot.slane %v412, %v416
          %418 = vrot.lane.b32.xlu0 %v417, 16
          %v419 = vpop.permute.xlu0 %418
          %421 = vst.msk [vmem:[#allocation4 + $0xa] sm:$0x1] %vm288, %v419
          %v422 = vld [vmem:[#allocation3] sm:$0x1]
          %v424 = vlaneseq
          %v425 = vshrl.u32 %v424, 7
          %v426 = vsub.s32 0, %v425
          %v427 = vrot.slane %v422, %v426
          %428 = vrot.lane.b32.xlu0 %v427, 16
          %v429 = vpop.permute.xlu0 %428
          %431 = vst.msk [vmem:[%s284 + $0xa] sm:$0x1] %vm288, %v429
          %v432 = vld [vmem:[#allocation2 + $0x1] sm:$0x1]
          %433 = vst.msk [vmem:[#allocation4 + $0xb] sm:$0x1] %vm288, %v432
          %v434 = vld [vmem:[#allocation3 + $0x1] sm:$0x1]
          %435 = vst.msk [vmem:[%s284 + $0xb] sm:$0x1] %vm288, %v434
          %v436 = vld [vmem:[#allocation2 + $0x1] sm:$0x1]
          %v438 = vlaneseq
          %v439 = vshrl.u32 %v438, 7
          %v440 = vsub.s32 0, %v439
          %v441 = vrot.slane %v436, %v440
          %442 = vrot.lane.b32.xlu0 %v441, 112
          %v443 = vpop.permute.xlu0 %442
          %445 = vst.msk [vmem:[#allocation4 + $0xc] sm:$0x1] %vm288, %v443
          %v446 = vld [vmem:[#allocation3 + $0x1] sm:$0x1]
          %v448 = vlaneseq
          %v449 = vshrl.u32 %v448, 7
          %v450 = vsub.s32 0, %v449
          %v451 = vrot.slane %v446, %v450
          %452 = vrot.lane.b32.xlu0 %v451, 112
          %v453 = vpop.permute.xlu0 %452
          %455 = vst.msk [vmem:[%s284 + $0xc] sm:$0x1] %vm288, %v453
          %v456 = vld [vmem:[#allocation2 + $0x1] sm:$0x1]
          %v458 = vlaneseq
          %v459 = vshrl.u32 %v458, 7
          %v460 = vsub.s32 0, %v459
          %v461 = vrot.slane %v456, %v460
          %462 = vrot.lane.b32.xlu0 %v461, 96
          %v463 = vpop.permute.xlu0 %462
          %465 = vst.msk [vmem:[#allocation4 + $0xd] sm:$0x1] %vm288, %v463
          %v466 = vld [vmem:[#allocation3 + $0x1] sm:$0x1]
          %v468 = vlaneseq
          %v469 = vshrl.u32 %v468, 7
          %v470 = vsub.s32 0, %v469
          %v471 = vrot.slane %v466, %v470
          %472 = vrot.lane.b32.xlu0 %v471, 96
          %v473 = vpop.permute.xlu0 %472
          %475 = vst.msk [vmem:[%s284 + $0xd] sm:$0x1] %vm288, %v473
          %v476 = vld [vmem:[#allocation2 + $0x1] sm:$0x1]
          %v478 = vlaneseq
          %v479 = vshrl.u32 %v478, 7
          %v480 = vsub.s32 0, %v479
          %v481 = vrot.slane %v476, %v480
          %482 = vrot.lane.b32.xlu0 %v481, 80
          %v483 = vpop.permute.xlu0 %482
          %485 = vst.msk [vmem:[#allocation4 + $0xe] sm:$0x1] %vm288, %v483
          %v486 = vld [vmem:[#allocation3 + $0x1] sm:$0x1]
          %v488 = vlaneseq
          %v489 = vshrl.u32 %v488, 7
          %v490 = vsub.s32 0, %v489
          %v491 = vrot.slane %v486, %v490
          %492 = vrot.lane.b32.xlu0 %v491, 80
          %v493 = vpop.permute.xlu0 %492
          %495 = vst.msk [vmem:[%s284 + $0xe] sm:$0x1] %vm288, %v493
          %v496 = vld [vmem:[#allocation2 + $0x1] sm:$0x1]
          %v498 = vlaneseq
          %v499 = vshrl.u32 %v498, 7
          %v500 = vsub.s32 0, %v499
          %v501 = vrot.slane %v496, %v500
          %502 = vrot.lane.b32.xlu0 %v501, 64
          %v503 = vpop.permute.xlu0 %502
          %505 = vst.msk [vmem:[#allocation4 + $0xf] sm:$0x1] %vm288, %v503
          %v506 = vld [vmem:[#allocation3 + $0x1] sm:$0x1]
          %v508 = vlaneseq
          %v509 = vshrl.u32 %v508, 7
          %v510 = vsub.s32 0, %v509
          %v511 = vrot.slane %v506, %v510
          %512 = vrot.lane.b32.xlu0 %v511, 64
          %v513 = vpop.permute.xlu0 %512
          %515 = vst.msk [vmem:[%s284 + $0xf] sm:$0x1] %vm288, %v513
          %v516 = vld [vmem:[#allocation2 + $0x1] sm:$0x1]
          %v518 = vlaneseq
          %v519 = vshrl.u32 %v518, 7
          %v520 = vsub.s32 0, %v519
          %v521 = vrot.slane %v516, %v520
          %522 = vrot.lane.b32.xlu0 %v521, 48
          %v523 = vpop.permute.xlu0 %522
          %525 = vst.msk [vmem:[#allocation4 + $0x10] sm:$0x1] %vm288, %v523
          %v526 = vld [vmem:[#allocation3 + $0x1] sm:$0x1]
          %v528 = vlaneseq
          %v529 = vshrl.u32 %v528, 7
          %v530 = vsub.s32 0, %v529
          %v531 = vrot.slane %v526, %v530
          %532 = vrot.lane.b32.xlu0 %v531, 48
          %v533 = vpop.permute.xlu0 %532
          %535 = vst.msk [vmem:[%s284 + $0x10] sm:$0x1] %vm288, %v533
          %v536 = vld [vmem:[#allocation2 + $0x1] sm:$0x1]
          %v538 = vlaneseq
          %v539 = vshrl.u32 %v538, 7
          %v540 = vsub.s32 0, %v539
          %v541 = vrot.slane %v536, %v540
          %542 = vrot.lane.b32.xlu0 %v541, 32
          %v543 = vpop.permute.xlu0 %542
          %545 = vst.msk [vmem:[#allocation4 + $0x11] sm:$0x1] %vm288, %v543
          %v546 = vld [vmem:[#allocation3 + $0x1] sm:$0x1]
          %v548 = vlaneseq
          %v549 = vshrl.u32 %v548, 7
          %v550 = vsub.s32 0, %v549
          %v551 = vrot.slane %v546, %v550
          %552 = vrot.lane.b32.xlu0 %v551, 32
          %v553 = vpop.permute.xlu0 %552
          %555 = vst.msk [vmem:[%s284 + $0x11] sm:$0x1] %vm288, %v553
          %v556 = vld [vmem:[#allocation2 + $0x1] sm:$0x1]
          %v558 = vlaneseq
          %v559 = vshrl.u32 %v558, 7
          %v560 = vsub.s32 0, %v559
          %v561 = vrot.slane %v556, %v560
          %562 = vrot.lane.b32.xlu0 %v561, 16
          %v563 = vpop.permute.xlu0 %562
          %565 = vst.msk [vmem:[#allocation4 + $0x12] sm:$0x1] %vm288, %v563
          %v566 = vld [vmem:[#allocation3 + $0x1] sm:$0x1]
          %v568 = vlaneseq
          %v569 = vshrl.u32 %v568, 7
          %v570 = vsub.s32 0, %v569
          %v571 = vrot.slane %v566, %v570
          %572 = vrot.lane.b32.xlu0 %v571, 16
          %v573 = vpop.permute.xlu0 %572
          %575 = vst.msk [vmem:[%s284 + $0x12] sm:$0x1] %vm288, %v573
          %v576 = vlaneseq
          %v577 = vand.u32 %v576, 127
          %vm578 = vcmp.lt.s32.totalorder %v577, 16
          %v579 = vld [vmem:[#allocation4] sm:$0xff]
          %s580 = sld [smem:[#allocation9]]
          %v581 = vstv %s580
          %v582 = vmul.f32 %v581, %v579
          %v583 = vadd.f32 %v582, 0.0
          %s584 = sld [smem:[#allocation9 + $0x1]]
          %v585 = vstv %s584
          %v586 = vmul.f32 %v585, %v579
          %v587 = vadd.f32 %v586, 0.0
          %s588 = sld [smem:[#allocation9 + $0x2]]
          %v589 = vstv %s588
          %v590 = vmul.f32 %v589, %v579
          %v591 = vadd.f32 %v590, 0.0
          %s592 = sld [smem:[#allocation9 + $0x3]]
          %v593 = vstv %s592
          %v594 = vmul.f32 %v593, %v579
          %v595 = vadd.f32 %v594, 0.0
          %s596 = sld [smem:[#allocation9 + $0x4]]
          %v597 = vstv %s596
          %v598 = vmul.f32 %v597, %v579
          %v599 = vadd.f32 %v598, 0.0
          %s600 = sld [smem:[#allocation9 + $0x5]]
          %v601 = vstv %s600
          %v602 = vmul.f32 %v601, %v579
          %v603 = vadd.f32 %v602, 0.0
          %s604 = sld [smem:[#allocation9 + $0x6]]
          %v605 = vstv %s604
          %v606 = vmul.f32 %v605, %v579
          %v607 = vadd.f32 %v606, 0.0
          %v608 = vld [vmem:[#allocation4 + $0x1] sm:$0xff]
          %s609 = sld [smem:[#allocation9 + $0x7]]
          %v610 = vstv %s609
          %v611 = vmul.f32 %v610, %v608
          %v612 = vadd.f32 %v583, %v611
          %s613 = sld [smem:[#allocation9 + $0x8]]
          %v614 = vstv %s613
          %v615 = vmul.f32 %v614, %v608
          %v616 = vadd.f32 %v587, %v615
          %s617 = sld [smem:[#allocation9 + $0x9]]
          %v618 = vstv %s617
          %v619 = vmul.f32 %v618, %v608
          %v620 = vadd.f32 %v591, %v619
          %s621 = sld [smem:[#allocation9 + $0xa]]
          %v622 = vstv %s621
          %v623 = vmul.f32 %v622, %v608
          %v624 = vadd.f32 %v595, %v623
          %s625 = sld [smem:[#allocation9 + $0xb]]
          %v626 = vstv %s625
          %v627 = vmul.f32 %v626, %v608
          %v628 = vadd.f32 %v599, %v627
          %s629 = sld [smem:[#allocation9 + $0xc]]
          %v630 = vstv %s629
          %v631 = vmul.f32 %v630, %v608
          %v632 = vadd.f32 %v603, %v631
          %s633 = sld [smem:[#allocation9 + $0xd]]
          %v634 = vstv %s633
          %v635 = vmul.f32 %v634, %v608
          %v636 = vadd.f32 %v607, %v635
          %v637 = vld [vmem:[#allocation4 + $0x2] sm:$0xff]
          %s638 = sld [smem:[#allocation9 + $0xe]]
          %v639 = vstv %s638
          %v640 = vmul.f32 %v639, %v637
          %v641 = vadd.f32 %v612, %v640
          %s642 = sld [smem:[#allocation9 + $0xf]]
          %v643 = vstv %s642
          %v644 = vmul.f32 %v643, %v637
          %v645 = vadd.f32 %v616, %v644
          %s646 = sld [smem:[#allocation9 + $0x10]]
          %v647 = vstv %s646
          %v648 = vmul.f32 %v647, %v637
          %v649 = vadd.f32 %v620, %v648
          %s650 = sld [smem:[#allocation9 + $0x11]]
          %v651 = vstv %s650
          %v652 = vmul.f32 %v651, %v637
          %v653 = vadd.f32 %v624, %v652
          %s654 = sld [smem:[#allocation9 + $0x12]]
          %v655 = vstv %s654
          %v656 = vmul.f32 %v655, %v637
          %v657 = vadd.f32 %v628, %v656
          %s658 = sld [smem:[#allocation9 + $0x13]]
          %v659 = vstv %s658
          %v660 = vmul.f32 %v659, %v637
          %v661 = vadd.f32 %v632, %v660
          %s662 = sld [smem:[#allocation9 + $0x14]]
          %v663 = vstv %s662
          %v664 = vmul.f32 %v663, %v637
          %v665 = vadd.f32 %v636, %v664
          %v666 = vld [vmem:[#allocation4 + $0x3] sm:$0xff]
          %s667 = sld [smem:[#allocation9 + $0x15]]
          %v668 = vstv %s667
          %v669 = vmul.f32 %v668, %v666
          %v670 = vadd.f32 %v641, %v669
          %s671 = sld [smem:[#allocation9 + $0x16]]
          %v672 = vstv %s671
          %v673 = vmul.f32 %v672, %v666
          %v674 = vadd.f32 %v645, %v673
          %s675 = sld [smem:[#allocation9 + $0x17]]
          %v676 = vstv %s675
          %v677 = vmul.f32 %v676, %v666
          %v678 = vadd.f32 %v649, %v677
          %s679 = sld [smem:[#allocation9 + $0x18]]
          %v680 = vstv %s679
          %v681 = vmul.f32 %v680, %v666
          %v682 = vadd.f32 %v653, %v681
          %s683 = sld [smem:[#allocation9 + $0x19]]
          %v684 = vstv %s683
          %v685 = vmul.f32 %v684, %v666
          %v686 = vadd.f32 %v657, %v685
          %s687 = sld [smem:[#allocation9 + $0x1a]]
          %v688 = vstv %s687
          %v689 = vmul.f32 %v688, %v666
          %v690 = vadd.f32 %v661, %v689
          %s691 = sld [smem:[#allocation9 + $0x1b]]
          %v692 = vstv %s691
          %v693 = vmul.f32 %v692, %v666
          %v694 = vadd.f32 %v665, %v693
          %v695 = vld [vmem:[#allocation4 + $0x4] sm:$0xff]
          %s696 = sld [smem:[#allocation9 + $0x1c]]
          %v697 = vstv %s696
          %v698 = vmul.f32 %v697, %v695
          %v699 = vadd.f32 %v670, %v698
          %s700 = sld [smem:[#allocation9 + $0x1d]]
          %v701 = vstv %s700
          %v702 = vmul.f32 %v701, %v695
          %v703 = vadd.f32 %v674, %v702
          %s704 = sld [smem:[#allocation9 + $0x1e]]
          %v705 = vstv %s704
          %v706 = vmul.f32 %v705, %v695
          %v707 = vadd.f32 %v678, %v706
          %s708 = sld [smem:[#allocation9 + $0x1f]]
          %v709 = vstv %s708
          %v710 = vmul.f32 %v709, %v695
          %v711 = vadd.f32 %v682, %v710
          %s712 = sld [smem:[#allocation9 + $0x20]]
          %v713 = vstv %s712
          %v714 = vmul.f32 %v713, %v695
          %v715 = vadd.f32 %v686, %v714
          %s716 = sld [smem:[#allocation9 + $0x21]]
          %v717 = vstv %s716
          %v718 = vmul.f32 %v717, %v695
          %v719 = vadd.f32 %v690, %v718
          %s720 = sld [smem:[#allocation9 + $0x22]]
          %v721 = vstv %s720
          %v722 = vmul.f32 %v721, %v695
          %v723 = vadd.f32 %v694, %v722
          %v724 = vld [vmem:[#allocation4 + $0x5] sm:$0xff]
          %s725 = sld [smem:[#allocation9 + $0x23]]
          %v726 = vstv %s725
          %v727 = vmul.f32 %v726, %v724
          %v728 = vadd.f32 %v699, %v727
          %s729 = sld [smem:[#allocation9 + $0x24]]
          %v730 = vstv %s729
          %v731 = vmul.f32 %v730, %v724
          %v732 = vadd.f32 %v703, %v731
          %s733 = sld [smem:[#allocation9 + $0x25]]
          %v734 = vstv %s733
          %v735 = vmul.f32 %v734, %v724
          %v736 = vadd.f32 %v707, %v735
          %s737 = sld [smem:[#allocation9 + $0x26]]
          %v738 = vstv %s737
          %v739 = vmul.f32 %v738, %v724
          %v740 = vadd.f32 %v711, %v739
          %s741 = sld [smem:[#allocation9 + $0x27]]
          %v742 = vstv %s741
          %v743 = vmul.f32 %v742, %v724
          %v744 = vadd.f32 %v715, %v743
          %s745 = sld [smem:[#allocation9 + $0x28]]
          %v746 = vstv %s745
          %v747 = vmul.f32 %v746, %v724
          %v748 = vadd.f32 %v719, %v747
          %s749 = sld [smem:[#allocation9 + $0x29]]
          %v750 = vstv %s749
          %v751 = vmul.f32 %v750, %v724
          %v752 = vadd.f32 %v723, %v751
          %v753 = vld [vmem:[#allocation4 + $0x6] sm:$0xff]
          %s754 = sld [smem:[#allocation9 + $0x2a]]
          %v755 = vstv %s754
          %v756 = vmul.f32 %v755, %v753
          %v757 = vadd.f32 %v728, %v756
          %s758 = sld [smem:[#allocation9 + $0x2b]]
          %v759 = vstv %s758
          %v760 = vmul.f32 %v759, %v753
          %v761 = vadd.f32 %v732, %v760
          %s762 = sld [smem:[#allocation9 + $0x2c]]
          %v763 = vstv %s762
          %v764 = vmul.f32 %v763, %v753
          %v765 = vadd.f32 %v736, %v764
          %s766 = sld [smem:[#allocation9 + $0x2d]]
          %v767 = vstv %s766
          %v768 = vmul.f32 %v767, %v753
          %v769 = vadd.f32 %v740, %v768
          %s770 = sld [smem:[#allocation9 + $0x2e]]
          %v771 = vstv %s770
          %v772 = vmul.f32 %v771, %v753
          %v773 = vadd.f32 %v744, %v772
          %s774 = sld [smem:[#allocation9 + $0x2f]]
          %v775 = vstv %s774
          %v776 = vmul.f32 %v775, %v753
          %v777 = vadd.f32 %v748, %v776
          %s778 = sld [smem:[#allocation9 + $0x30]]
          %v779 = vstv %s778
          %v780 = vmul.f32 %v779, %v753
          %v781 = vadd.f32 %v752, %v780
          %v782 = vld [vmem:[%s284] sm:$0xff]
          %s783 = sld [smem:[#allocation9 + $0x31]]
          %v784 = vstv %s783
          %v785 = vmul.f32 %v784, %v782
          %v786 = vadd.f32 %v757, %v785
          %s787 = sld [smem:[#allocation9 + $0x32]]
          %v788 = vstv %s787
          %v789 = vmul.f32 %v788, %v782
          %v790 = vadd.f32 %v761, %v789
          %s791 = sld [smem:[#allocation9 + $0x33]]
          %v792 = vstv %s791
          %v793 = vmul.f32 %v792, %v782
          %v794 = vadd.f32 %v765, %v793
          %s795 = sld [smem:[#allocation9 + $0x34]]
          %v796 = vstv %s795
          %v797 = vmul.f32 %v796, %v782
          %v798 = vadd.f32 %v769, %v797
          %s799 = sld [smem:[#allocation9 + $0x35]]
          %v800 = vstv %s799
          %v801 = vmul.f32 %v800, %v782
          %v802 = vadd.f32 %v773, %v801
          %s803 = sld [smem:[#allocation9 + $0x36]]
          %v804 = vstv %s803
          %v805 = vmul.f32 %v804, %v782
          %v806 = vadd.f32 %v777, %v805
          %s807 = sld [smem:[#allocation9 + $0x37]]
          %v808 = vstv %s807
          %v809 = vmul.f32 %v808, %v782
          %v810 = vadd.f32 %v781, %v809
          %v811 = vld [vmem:[%s284 + $0x1] sm:$0xff]
          %s812 = sld [smem:[#allocation9 + $0x38]]
          %v813 = vstv %s812
          %v814 = vmul.f32 %v813, %v811
          %v815 = vadd.f32 %v786, %v814
          %s816 = sld [smem:[#allocation9 + $0x39]]
          %v817 = vstv %s816
          %v818 = vmul.f32 %v817, %v811
          %v819 = vadd.f32 %v790, %v818
          %s820 = sld [smem:[#allocation9 + $0x3a]]
          %v821 = vstv %s820
          %v822 = vmul.f32 %v821, %v811
          %v823 = vadd.f32 %v794, %v822
          %s824 = sld [smem:[#allocation9 + $0x3b]]
          %v825 = vstv %s824
          %v826 = vmul.f32 %v825, %v811
          %v827 = vadd.f32 %v798, %v826
          %s828 = sld [smem:[#allocation9 + $0x3c]]
          %v829 = vstv %s828
          %v830 = vmul.f32 %v829, %v811
          %v831 = vadd.f32 %v802, %v830
          %s832 = sld [smem:[#allocation9 + $0x3d]]
          %v833 = vstv %s832
          %v834 = vmul.f32 %v833, %v811
          %v835 = vadd.f32 %v806, %v834
          %s836 = sld [smem:[#allocation9 + $0x3e]]
          %v837 = vstv %s836
          %v838 = vmul.f32 %v837, %v811
          %v839 = vadd.f32 %v810, %v838
          %v840 = vld [vmem:[%s284 + $0x2] sm:$0xff]
          %s841 = sld [smem:[#allocation9 + $0x3f]]
          %v842 = vstv %s841
          %v843 = vmul.f32 %v842, %v840
          %v844 = vadd.f32 %v815, %v843
          %s845 = sld [smem:[#allocation9 + $0x40]]
          %v846 = vstv %s845
          %v847 = vmul.f32 %v846, %v840
          %v848 = vadd.f32 %v819, %v847
          %s849 = sld [smem:[#allocation9 + $0x41]]
          %v850 = vstv %s849
          %v851 = vmul.f32 %v850, %v840
          %v852 = vadd.f32 %v823, %v851
          %s853 = sld [smem:[#allocation9 + $0x42]]
          %v854 = vstv %s853
          %v855 = vmul.f32 %v854, %v840
          %v856 = vadd.f32 %v827, %v855
          %s857 = sld [smem:[#allocation9 + $0x43]]
          %v858 = vstv %s857
          %v859 = vmul.f32 %v858, %v840
          %v860 = vadd.f32 %v831, %v859
          %s861 = sld [smem:[#allocation9 + $0x44]]
          %v862 = vstv %s861
          %v863 = vmul.f32 %v862, %v840
          %v864 = vadd.f32 %v835, %v863
          %s865 = sld [smem:[#allocation9 + $0x45]]
          %v866 = vstv %s865
          %v867 = vmul.f32 %v866, %v840
          %v868 = vadd.f32 %v839, %v867
          %v869 = vld [vmem:[%s284 + $0x3] sm:$0xff]
          %s870 = sld [smem:[#allocation9 + $0x46]]
          %v871 = vstv %s870
          %v872 = vmul.f32 %v871, %v869
          %v873 = vadd.f32 %v844, %v872
          %s874 = sld [smem:[#allocation9 + $0x47]]
          %v875 = vstv %s874
          %v876 = vmul.f32 %v875, %v869
          %v877 = vadd.f32 %v848, %v876
          %s878 = sld [smem:[#allocation9 + $0x48]]
          %v879 = vstv %s878
          %v880 = vmul.f32 %v879, %v869
          %v881 = vadd.f32 %v852, %v880
          %s882 = sld [smem:[#allocation9 + $0x49]]
          %v883 = vstv %s882
          %v884 = vmul.f32 %v883, %v869
          %v885 = vadd.f32 %v856, %v884
          %s886 = sld [smem:[#allocation9 + $0x4a]]
          %v887 = vstv %s886
          %v888 = vmul.f32 %v887, %v869
          %v889 = vadd.f32 %v860, %v888
          %s890 = sld [smem:[#allocation9 + $0x4b]]
          %v891 = vstv %s890
          %v892 = vmul.f32 %v891, %v869
          %v893 = vadd.f32 %v864, %v892
          %s894 = sld [smem:[#allocation9 + $0x4c]]
          %v895 = vstv %s894
          %v896 = vmul.f32 %v895, %v869
          %v897 = vadd.f32 %v868, %v896
          %v898 = vld [vmem:[%s284 + $0x4] sm:$0xff]
          %s899 = sld [smem:[#allocation9 + $0x4d]]
          %v900 = vstv %s899
          %v901 = vmul.f32 %v900, %v898
          %v902 = vadd.f32 %v873, %v901
          %s903 = sld [smem:[#allocation9 + $0x4e]]
          %v904 = vstv %s903
          %v905 = vmul.f32 %v904, %v898
          %v906 = vadd.f32 %v877, %v905
          %s907 = sld [smem:[#allocation9 + $0x4f]]
          %v908 = vstv %s907
          %v909 = vmul.f32 %v908, %v898
          %v910 = vadd.f32 %v881, %v909
          %s911 = sld [smem:[#allocation9 + $0x50]]
          %v912 = vstv %s911
          %v913 = vmul.f32 %v912, %v898
          %v914 = vadd.f32 %v885, %v913
          %s915 = sld [smem:[#allocation9 + $0x51]]
          %v916 = vstv %s915
          %v917 = vmul.f32 %v916, %v898
          %v918 = vadd.f32 %v889, %v917
          %s919 = sld [smem:[#allocation9 + $0x52]]
          %v920 = vstv %s919
          %v921 = vmul.f32 %v920, %v898
          %v922 = vadd.f32 %v893, %v921
          %s923 = sld [smem:[#allocation9 + $0x53]]
          %v924 = vstv %s923
          %v925 = vmul.f32 %v924, %v898
          %v926 = vadd.f32 %v897, %v925
          %v927 = vld [vmem:[%s284 + $0x5] sm:$0xff]
          %s928 = sld [smem:[#allocation9 + $0x54]]
          %v929 = vstv %s928
          %v930 = vmul.f32 %v929, %v927
          %v931 = vadd.f32 %v902, %v930
          %s932 = sld [smem:[#allocation9 + $0x55]]
          %v933 = vstv %s932
          %v934 = vmul.f32 %v933, %v927
          %v935 = vadd.f32 %v906, %v934
          %s936 = sld [smem:[#allocation9 + $0x56]]
          %v937 = vstv %s936
          %v938 = vmul.f32 %v937, %v927
          %v939 = vadd.f32 %v910, %v938
          %s940 = sld [smem:[#allocation9 + $0x57]]
          %v941 = vstv %s940
          %v942 = vmul.f32 %v941, %v927
          %v943 = vadd.f32 %v914, %v942
          %s944 = sld [smem:[#allocation9 + $0x58]]
          %v945 = vstv %s944
          %v946 = vmul.f32 %v945, %v927
          %v947 = vadd.f32 %v918, %v946
          %s948 = sld [smem:[#allocation9 + $0x59]]
          %v949 = vstv %s948
          %v950 = vmul.f32 %v949, %v927
          %v951 = vadd.f32 %v922, %v950
          %s952 = sld [smem:[#allocation9 + $0x5a]]
          %v953 = vstv %s952
          %v954 = vmul.f32 %v953, %v927
          %v955 = vadd.f32 %v926, %v954
          %v956 = vld [vmem:[%s284 + $0x6] sm:$0xff]
          %s957 = sld [smem:[#allocation9 + $0x5b]]
          %v958 = vstv %s957
          %v959 = vmul.f32 %v958, %v956
          %v960 = vadd.f32 %v931, %v959
          %s961 = sld [smem:[#allocation9 + $0x5c]]
          %v962 = vstv %s961
          %v963 = vmul.f32 %v962, %v956
          %v964 = vadd.f32 %v935, %v963
          %s965 = sld [smem:[#allocation9 + $0x5d]]
          %v966 = vstv %s965
          %v967 = vmul.f32 %v966, %v956
          %v968 = vadd.f32 %v939, %v967
          %s969 = sld [smem:[#allocation9 + $0x5e]]
          %v970 = vstv %s969
          %v971 = vmul.f32 %v970, %v956
          %v972 = vadd.f32 %v943, %v971
          %s973 = sld [smem:[#allocation9 + $0x5f]]
          %v974 = vstv %s973
          %v975 = vmul.f32 %v974, %v956
          %v976 = vadd.f32 %v947, %v975
          %s977 = sld [smem:[#allocation9 + $0x60]]
          %v978 = vstv %s977
          %v979 = vmul.f32 %v978, %v956
          %v980 = vadd.f32 %v951, %v979
          %s981 = sld [smem:[#allocation9 + $0x61]]
          %v982 = vstv %s981
          %v983 = vmul.f32 %v982, %v956
          %v984 = vadd.f32 %v955, %v983
          %v985 = vsel %vm578, %v960, 0.0
          %986 = vrot.lane.b32.xlu0 %v985, 3
          %v987 = vpop.permute.xlu0 %986
          %v988 = vadd.f32 %v987, 0.0
          %v989 = vsel %vm578, %v964, 0.0
          %990 = vrot.lane.b32.xlu0 %v989, 2
          %v991 = vpop.permute.xlu0 %990
          %v992 = vadd.f32 %v988, %v991
          %v993 = vsel %vm578, %v968, 0.0
          %994 = vrot.lane.b32.xlu0 %v993, 1
          %v995 = vpop.permute.xlu0 %994
          %v996 = vadd.f32 %v992, %v995
          %v997 = vsel %vm578, %v972, 0.0
          %v998 = vadd.f32 %v996, %v997
          %v999 = vsel %vm578, %v976, 0.0
          %1000 = vrot.lane.b32.xlu0 %v999, 127
          %v1001 = vpop.permute.xlu0 %1000
          %v1002 = vadd.f32 %v998, %v1001
          %v1003 = vsel %vm578, %v980, 0.0
          %1004 = vrot.lane.b32.xlu0 %v1003, 126
          %v1005 = vpop.permute.xlu0 %1004
          %v1006 = vadd.f32 %v1002, %v1005
          %v1007 = vsel %vm578, %v984, 0.0
          %1008 = vrot.lane.b32.xlu0 %v1007, 125
          %v1009 = vpop.permute.xlu0 %1008
          %v1010 = vadd.f32 %v1006, %v1009
          %v1011 = vxor.u32 %v1010, 2147483648
          %v1012 = vmul.f32 %v1011, 1.442695
          %v1013 = vpow.pop %v1012
          %v1014 = vadd.f32 %v1013, 1.0
          %v1015 = vrcp.pop %v1014
          %v1016 = vmul.f32 1.0, %v1015
          %1017 = vst [vmem:[%s189] sm:$0xff] %v1016
          %v1018 = vld [vmem:[#allocation4 + $0x8] sm:$0xff]
          %s1019 = sld [smem:[#allocation9]]
          %v1020 = vstv %s1019
          %v1021 = vmul.f32 %v1020, %v1018
          %v1022 = vadd.f32 %v1021, 0.0
          %s1023 = sld [smem:[#allocation9 + $0x1]]
          %v1024 = vstv %s1023
          %v1025 = vmul.f32 %v1024, %v1018
          %v1026 = vadd.f32 %v1025, 0.0
          %s1027 = sld [smem:[#allocation9 + $0x2]]
          %v1028 = vstv %s1027
          %v1029 = vmul.f32 %v1028, %v1018
          %v1030 = vadd.f32 %v1029, 0.0
          %s1031 = sld [smem:[#allocation9 + $0x3]]
          %v1032 = vstv %s1031
          %v1033 = vmul.f32 %v1032, %v1018
          %v1034 = vadd.f32 %v1033, 0.0
          %s1035 = sld [smem:[#allocation9 + $0x4]]
          %v1036 = vstv %s1035
          %v1037 = vmul.f32 %v1036, %v1018
          %v1038 = vadd.f32 %v1037, 0.0
          %s1039 = sld [smem:[#allocation9 + $0x5]]
          %v1040 = vstv %s1039
          %v1041 = vmul.f32 %v1040, %v1018
          %v1042 = vadd.f32 %v1041, 0.0
          %s1043 = sld [smem:[#allocation9 + $0x6]]
          %v1044 = vstv %s1043
          %v1045 = vmul.f32 %v1044, %v1018
          %v1046 = vadd.f32 %v1045, 0.0
          %v1047 = vld [vmem:[#allocation4 + $0x9] sm:$0xff]
          %s1048 = sld [smem:[#allocation9 + $0x7]]
          %v1049 = vstv %s1048
          %v1050 = vmul.f32 %v1049, %v1047
          %v1051 = vadd.f32 %v1022, %v1050
          %s1052 = sld [smem:[#allocation9 + $0x8]]
          %v1053 = vstv %s1052
          %v1054 = vmul.f32 %v1053, %v1047
          %v1055 = vadd.f32 %v1026, %v1054
          %s1056 = sld [smem:[#allocation9 + $0x9]]
          %v1057 = vstv %s1056
          %v1058 = vmul.f32 %v1057, %v1047
          %v1059 = vadd.f32 %v1030, %v1058
          %s1060 = sld [smem:[#allocation9 + $0xa]]
          %v1061 = vstv %s1060
          %v1062 = vmul.f32 %v1061, %v1047
          %v1063 = vadd.f32 %v1034, %v1062
          %s1064 = sld [smem:[#allocation9 + $0xb]]
          %v1065 = vstv %s1064
          %v1066 = vmul.f32 %v1065, %v1047
          %v1067 = vadd.f32 %v1038, %v1066
          %s1068 = sld [smem:[#allocation9 + $0xc]]
          %v1069 = vstv %s1068
          %v1070 = vmul.f32 %v1069, %v1047
          %v1071 = vadd.f32 %v1042, %v1070
          %s1072 = sld [smem:[#allocation9 + $0xd]]
          %v1073 = vstv %s1072
          %v1074 = vmul.f32 %v1073, %v1047
          %v1075 = vadd.f32 %v1046, %v1074
          %v1076 = vld [vmem:[#allocation4 + $0xa] sm:$0xff]
          %s1077 = sld [smem:[#allocation9 + $0xe]]
          %v1078 = vstv %s1077
          %v1079 = vmul.f32 %v1078, %v1076
          %v1080 = vadd.f32 %v1051, %v1079
          %s1081 = sld [smem:[#allocation9 + $0xf]]
          %v1082 = vstv %s1081
          %v1083 = vmul.f32 %v1082, %v1076
          %v1084 = vadd.f32 %v1055, %v1083
          %s1085 = sld [smem:[#allocation9 + $0x10]]
          %v1086 = vstv %s1085
          %v1087 = vmul.f32 %v1086, %v1076
          %v1088 = vadd.f32 %v1059, %v1087
          %s1089 = sld [smem:[#allocation9 + $0x11]]
          %v1090 = vstv %s1089
          %v1091 = vmul.f32 %v1090, %v1076
          %v1092 = vadd.f32 %v1063, %v1091
          %s1093 = sld [smem:[#allocation9 + $0x12]]
          %v1094 = vstv %s1093
          %v1095 = vmul.f32 %v1094, %v1076
          %v1096 = vadd.f32 %v1067, %v1095
          %s1097 = sld [smem:[#allocation9 + $0x13]]
          %v1098 = vstv %s1097
          %v1099 = vmul.f32 %v1098, %v1076
          %v1100 = vadd.f32 %v1071, %v1099
          %s1101 = sld [smem:[#allocation9 + $0x14]]
          %v1102 = vstv %s1101
          %v1103 = vmul.f32 %v1102, %v1076
          %v1104 = vadd.f32 %v1075, %v1103
          %v1105 = vld [vmem:[#allocation4 + $0xb] sm:$0xff]
          %s1106 = sld [smem:[#allocation9 + $0x15]]
          %v1107 = vstv %s1106
          %v1108 = vmul.f32 %v1107, %v1105
          %v1109 = vadd.f32 %v1080, %v1108
          %s1110 = sld [smem:[#allocation9 + $0x16]]
          %v1111 = vstv %s1110
          %v1112 = vmul.f32 %v1111, %v1105
          %v1113 = vadd.f32 %v1084, %v1112
          %s1114 = sld [smem:[#allocation9 + $0x17]]
          %v1115 = vstv %s1114
          %v1116 = vmul.f32 %v1115, %v1105
          %v1117 = vadd.f32 %v1088, %v1116
          %s1118 = sld [smem:[#allocation9 + $0x18]]
          %v1119 = vstv %s1118
          %v1120 = vmul.f32 %v1119, %v1105
          %v1121 = vadd.f32 %v1092, %v1120
          %s1122 = sld [smem:[#allocation9 + $0x19]]
          %v1123 = vstv %s1122
          %v1124 = vmul.f32 %v1123, %v1105
          %v1125 = vadd.f32 %v1096, %v1124
          %s1126 = sld [smem:[#allocation9 + $0x1a]]
          %v1127 = vstv %s1126
          %v1128 = vmul.f32 %v1127, %v1105
          %v1129 = vadd.f32 %v1100, %v1128
          %s1130 = sld [smem:[#allocation9 + $0x1b]]
          %v1131 = vstv %s1130
          %v1132 = vmul.f32 %v1131, %v1105
          %v1133 = vadd.f32 %v1104, %v1132
          %v1134 = vld [vmem:[#allocation4 + $0xc] sm:$0xff]
          %s1135 = sld [smem:[#allocation9 + $0x1c]]
          %v1136 = vstv %s1135
          %v1137 = vmul.f32 %v1136, %v1134
          %v1138 = vadd.f32 %v1109, %v1137
          %s1139 = sld [smem:[#allocation9 + $0x1d]]
          %v1140 = vstv %s1139
          %v1141 = vmul.f32 %v1140, %v1134
          %v1142 = vadd.f32 %v1113, %v1141
          %s1143 = sld [smem:[#allocation9 + $0x1e]]
          %v1144 = vstv %s1143
          %v1145 = vmul.f32 %v1144, %v1134
          %v1146 = vadd.f32 %v1117, %v1145
          %s1147 = sld [smem:[#allocation9 + $0x1f]]
          %v1148 = vstv %s1147
          %v1149 = vmul.f32 %v1148, %v1134
          %v1150 = vadd.f32 %v1121, %v1149
          %s1151 = sld [smem:[#allocation9 + $0x20]]
          %v1152 = vstv %s1151
          %v1153 = vmul.f32 %v1152, %v1134
          %v1154 = vadd.f32 %v1125, %v1153
          %s1155 = sld [smem:[#allocation9 + $0x21]]
          %v1156 = vstv %s1155
          %v1157 = vmul.f32 %v1156, %v1134
          %v1158 = vadd.f32 %v1129, %v1157
          %s1159 = sld [smem:[#allocation9 + $0x22]]
          %v1160 = vstv %s1159
          %v1161 = vmul.f32 %v1160, %v1134
          %v1162 = vadd.f32 %v1133, %v1161
          %v1163 = vld [vmem:[#allocation4 + $0xd] sm:$0xff]
          %s1164 = sld [smem:[#allocation9 + $0x23]]
          %v1165 = vstv %s1164
          %v1166 = vmul.f32 %v1165, %v1163
          %v1167 = vadd.f32 %v1138, %v1166
          %s1168 = sld [smem:[#allocation9 + $0x24]]
          %v1169 = vstv %s1168
          %v1170 = vmul.f32 %v1169, %v1163
          %v1171 = vadd.f32 %v1142, %v1170
          %s1172 = sld [smem:[#allocation9 + $0x25]]
          %v1173 = vstv %s1172
          %v1174 = vmul.f32 %v1173, %v1163
          %v1175 = vadd.f32 %v1146, %v1174
          %s1176 = sld [smem:[#allocation9 + $0x26]]
          %v1177 = vstv %s1176
          %v1178 = vmul.f32 %v1177, %v1163
          %v1179 = vadd.f32 %v1150, %v1178
          %s1180 = sld [smem:[#allocation9 + $0x27]]
          %v1181 = vstv %s1180
          %v1182 = vmul.f32 %v1181, %v1163
          %v1183 = vadd.f32 %v1154, %v1182
          %s1184 = sld [smem:[#allocation9 + $0x28]]
          %v1185 = vstv %s1184
          %v1186 = vmul.f32 %v1185, %v1163
          %v1187 = vadd.f32 %v1158, %v1186
          %s1188 = sld [smem:[#allocation9 + $0x29]]
          %v1189 = vstv %s1188
          %v1190 = vmul.f32 %v1189, %v1163
          %v1191 = vadd.f32 %v1162, %v1190
          %v1192 = vld [vmem:[#allocation4 + $0xe] sm:$0xff]
          %s1193 = sld [smem:[#allocation9 + $0x2a]]
          %v1194 = vstv %s1193
          %v1195 = vmul.f32 %v1194, %v1192
          %v1196 = vadd.f32 %v1167, %v1195
          %s1197 = sld [smem:[#allocation9 + $0x2b]]
          %v1198 = vstv %s1197
          %v1199 = vmul.f32 %v1198, %v1192
          %v1200 = vadd.f32 %v1171, %v1199
          %s1201 = sld [smem:[#allocation9 + $0x2c]]
          %v1202 = vstv %s1201
          %v1203 = vmul.f32 %v1202, %v1192
          %v1204 = vadd.f32 %v1175, %v1203
          %s1205 = sld [smem:[#allocation9 + $0x2d]]
          %v1206 = vstv %s1205
          %v1207 = vmul.f32 %v1206, %v1192
          %v1208 = vadd.f32 %v1179, %v1207
          %s1209 = sld [smem:[#allocation9 + $0x2e]]
          %v1210 = vstv %s1209
          %v1211 = vmul.f32 %v1210, %v1192
          %v1212 = vadd.f32 %v1183, %v1211
          %s1213 = sld [smem:[#allocation9 + $0x2f]]
          %v1214 = vstv %s1213
          %v1215 = vmul.f32 %v1214, %v1192
          %v1216 = vadd.f32 %v1187, %v1215
          %s1217 = sld [smem:[#allocation9 + $0x30]]
          %v1218 = vstv %s1217
          %v1219 = vmul.f32 %v1218, %v1192
          %v1220 = vadd.f32 %v1191, %v1219
          %v1221 = vld [vmem:[%s284 + $0x8] sm:$0xff]
          %s1222 = sld [smem:[#allocation9 + $0x31]]
          %v1223 = vstv %s1222
          %v1224 = vmul.f32 %v1223, %v1221
          %v1225 = vadd.f32 %v1196, %v1224
          %s1226 = sld [smem:[#allocation9 + $0x32]]
          %v1227 = vstv %s1226
          %v1228 = vmul.f32 %v1227, %v1221
          %v1229 = vadd.f32 %v1200, %v1228
          %s1230 = sld [smem:[#allocation9 + $0x33]]
          %v1231 = vstv %s1230
          %v1232 = vmul.f32 %v1231, %v1221
          %v1233 = vadd.f32 %v1204, %v1232
          %s1234 = sld [smem:[#allocation9 + $0x34]]
          %v1235 = vstv %s1234
          %v1236 = vmul.f32 %v1235, %v1221
          %v1237 = vadd.f32 %v1208, %v1236
          %s1238 = sld [smem:[#allocation9 + $0x35]]
          %v1239 = vstv %s1238
          %v1240 = vmul.f32 %v1239, %v1221
          %v1241 = vadd.f32 %v1212, %v1240
          %s1242 = sld [smem:[#allocation9 + $0x36]]
          %v1243 = vstv %s1242
          %v1244 = vmul.f32 %v1243, %v1221
          %v1245 = vadd.f32 %v1216, %v1244
          %s1246 = sld [smem:[#allocation9 + $0x37]]
          %v1247 = vstv %s1246
          %v1248 = vmul.f32 %v1247, %v1221
          %v1249 = vadd.f32 %v1220, %v1248
          %v1250 = vld [vmem:[%s284 + $0x9] sm:$0xff]
          %s1251 = sld [smem:[#allocation9 + $0x38]]
          %v1252 = vstv %s1251
          %v1253 = vmul.f32 %v1252, %v1250
          %v1254 = vadd.f32 %v1225, %v1253
          %s1255 = sld [smem:[#allocation9 + $0x39]]
          %v1256 = vstv %s1255
          %v1257 = vmul.f32 %v1256, %v1250
          %v1258 = vadd.f32 %v1229, %v1257
          %s1259 = sld [smem:[#allocation9 + $0x3a]]
          %v1260 = vstv %s1259
          %v1261 = vmul.f32 %v1260, %v1250
          %v1262 = vadd.f32 %v1233, %v1261
          %s1263 = sld [smem:[#allocation9 + $0x3b]]
          %v1264 = vstv %s1263
          %v1265 = vmul.f32 %v1264, %v1250
          %v1266 = vadd.f32 %v1237, %v1265
          %s1267 = sld [smem:[#allocation9 + $0x3c]]
          %v1268 = vstv %s1267
          %v1269 = vmul.f32 %v1268, %v1250
          %v1270 = vadd.f32 %v1241, %v1269
          %s1271 = sld [smem:[#allocation9 + $0x3d]]
          %v1272 = vstv %s1271
          %v1273 = vmul.f32 %v1272, %v1250
          %v1274 = vadd.f32 %v1245, %v1273
          %s1275 = sld [smem:[#allocation9 + $0x3e]]
          %v1276 = vstv %s1275
          %v1277 = vmul.f32 %v1276, %v1250
          %v1278 = vadd.f32 %v1249, %v1277
          %v1279 = vld [vmem:[%s284 + $0xa] sm:$0xff]
          %s1280 = sld [smem:[#allocation9 + $0x3f]]
          %v1281 = vstv %s1280
          %v1282 = vmul.f32 %v1281, %v1279
          %v1283 = vadd.f32 %v1254, %v1282
          %s1284 = sld [smem:[#allocation9 + $0x40]]
          %v1285 = vstv %s1284
          %v1286 = vmul.f32 %v1285, %v1279
          %v1287 = vadd.f32 %v1258, %v1286
          %s1288 = sld [smem:[#allocation9 + $0x41]]
          %v1289 = vstv %s1288
          %v1290 = vmul.f32 %v1289, %v1279
          %v1291 = vadd.f32 %v1262, %v1290
          %s1292 = sld [smem:[#allocation9 + $0x42]]
          %v1293 = vstv %s1292
          %v1294 = vmul.f32 %v1293, %v1279
          %v1295 = vadd.f32 %v1266, %v1294
          %s1296 = sld [smem:[#allocation9 + $0x43]]
          %v1297 = vstv %s1296
          %v1298 = vmul.f32 %v1297, %v1279
          %v1299 = vadd.f32 %v1270, %v1298
          %s1300 = sld [smem:[#allocation9 + $0x44]]
          %v1301 = vstv %s1300
          %v1302 = vmul.f32 %v1301, %v1279
          %v1303 = vadd.f32 %v1274, %v1302
          %s1304 = sld [smem:[#allocation9 + $0x45]]
          %v1305 = vstv %s1304
          %v1306 = vmul.f32 %v1305, %v1279
          %v1307 = vadd.f32 %v1278, %v1306
          %v1308 = vld [vmem:[%s284 + $0xb] sm:$0xff]
          %s1309 = sld [smem:[#allocation9 + $0x46]]
          %v1310 = vstv %s1309
          %v1311 = vmul.f32 %v1310, %v1308
          %v1312 = vadd.f32 %v1283, %v1311
          %s1313 = sld [smem:[#allocation9 + $0x47]]
          %v1314 = vstv %s1313
          %v1315 = vmul.f32 %v1314, %v1308
          %v1316 = vadd.f32 %v1287, %v1315
          %s1317 = sld [smem:[#allocation9 + $0x48]]
          %v1318 = vstv %s1317
          %v1319 = vmul.f32 %v1318, %v1308
          %v1320 = vadd.f32 %v1291, %v1319
          %s1321 = sld [smem:[#allocation9 + $0x49]]
          %v1322 = vstv %s1321
          %v1323 = vmul.f32 %v1322, %v1308
          %v1324 = vadd.f32 %v1295, %v1323
          %s1325 = sld [smem:[#allocation9 + $0x4a]]
          %v1326 = vstv %s1325
          %v1327 = vmul.f32 %v1326, %v1308
          %v1328 = vadd.f32 %v1299, %v1327
          %s1329 = sld [smem:[#allocation9 + $0x4b]]
          %v1330 = vstv %s1329
          %v1331 = vmul.f32 %v1330, %v1308
          %v1332 = vadd.f32 %v1303, %v1331
          %s1333 = sld [smem:[#allocation9 + $0x4c]]
          %v1334 = vstv %s1333
          %v1335 = vmul.f32 %v1334, %v1308
          %v1336 = vadd.f32 %v1307, %v1335
          %v1337 = vld [vmem:[%s284 + $0xc] sm:$0xff]
          %s1338 = sld [smem:[#allocation9 + $0x4d]]
          %v1339 = vstv %s1338
          %v1340 = vmul.f32 %v1339, %v1337
          %v1341 = vadd.f32 %v1312, %v1340
          %s1342 = sld [smem:[#allocation9 + $0x4e]]
          %v1343 = vstv %s1342
          %v1344 = vmul.f32 %v1343, %v1337
          %v1345 = vadd.f32 %v1316, %v1344
          %s1346 = sld [smem:[#allocation9 + $0x4f]]
          %v1347 = vstv %s1346
          %v1348 = vmul.f32 %v1347, %v1337
          %v1349 = vadd.f32 %v1320, %v1348
          %s1350 = sld [smem:[#allocation9 + $0x50]]
          %v1351 = vstv %s1350
          %v1352 = vmul.f32 %v1351, %v1337
          %v1353 = vadd.f32 %v1324, %v1352
          %s1354 = sld [smem:[#allocation9 + $0x51]]
          %v1355 = vstv %s1354
          %v1356 = vmul.f32 %v1355, %v1337
          %v1357 = vadd.f32 %v1328, %v1356
          %s1358 = sld [smem:[#allocation9 + $0x52]]
          %v1359 = vstv %s1358
          %v1360 = vmul.f32 %v1359, %v1337
          %v1361 = vadd.f32 %v1332, %v1360
          %s1362 = sld [smem:[#allocation9 + $0x53]]
          %v1363 = vstv %s1362
          %v1364 = vmul.f32 %v1363, %v1337
          %v1365 = vadd.f32 %v1336, %v1364
          %v1366 = vld [vmem:[%s284 + $0xd] sm:$0xff]
          %s1367 = sld [smem:[#allocation9 + $0x54]]
          %v1368 = vstv %s1367
          %v1369 = vmul.f32 %v1368, %v1366
          %v1370 = vadd.f32 %v1341, %v1369
          %s1371 = sld [smem:[#allocation9 + $0x55]]
          %v1372 = vstv %s1371
          %v1373 = vmul.f32 %v1372, %v1366
          %v1374 = vadd.f32 %v1345, %v1373
          %s1375 = sld [smem:[#allocation9 + $0x56]]
          %v1376 = vstv %s1375
          %v1377 = vmul.f32 %v1376, %v1366
          %v1378 = vadd.f32 %v1349, %v1377
          %s1379 = sld [smem:[#allocation9 + $0x57]]
          %v1380 = vstv %s1379
          %v1381 = vmul.f32 %v1380, %v1366
          %v1382 = vadd.f32 %v1353, %v1381
          %s1383 = sld [smem:[#allocation9 + $0x58]]
          %v1384 = vstv %s1383
          %v1385 = vmul.f32 %v1384, %v1366
          %v1386 = vadd.f32 %v1357, %v1385
          %s1387 = sld [smem:[#allocation9 + $0x59]]
          %v1388 = vstv %s1387
          %v1389 = vmul.f32 %v1388, %v1366
          %v1390 = vadd.f32 %v1361, %v1389
          %s1391 = sld [smem:[#allocation9 + $0x5a]]
          %v1392 = vstv %s1391
          %v1393 = vmul.f32 %v1392, %v1366
          %v1394 = vadd.f32 %v1365, %v1393
          %v1395 = vld [vmem:[%s284 + $0xe] sm:$0xff]
          %s1396 = sld [smem:[#allocation9 + $0x5b]]
          %v1397 = vstv %s1396
          %v1398 = vmul.f32 %v1397, %v1395
          %v1399 = vadd.f32 %v1370, %v1398
          %s1400 = sld [smem:[#allocation9 + $0x5c]]
          %v1401 = vstv %s1400
          %v1402 = vmul.f32 %v1401, %v1395
          %v1403 = vadd.f32 %v1374, %v1402
          %s1404 = sld [smem:[#allocation9 + $0x5d]]
          %v1405 = vstv %s1404
          %v1406 = vmul.f32 %v1405, %v1395
          %v1407 = vadd.f32 %v1378, %v1406
          %s1408 = sld [smem:[#allocation9 + $0x5e]]
          %v1409 = vstv %s1408
          %v1410 = vmul.f32 %v1409, %v1395
          %v1411 = vadd.f32 %v1382, %v1410
          %s1412 = sld [smem:[#allocation9 + $0x5f]]
          %v1413 = vstv %s1412
          %v1414 = vmul.f32 %v1413, %v1395
          %v1415 = vadd.f32 %v1386, %v1414
          %s1416 = sld [smem:[#allocation9 + $0x60]]
          %v1417 = vstv %s1416
          %v1418 = vmul.f32 %v1417, %v1395
          %v1419 = vadd.f32 %v1390, %v1418
          %s1420 = sld [smem:[#allocation9 + $0x61]]
          %v1421 = vstv %s1420
          %v1422 = vmul.f32 %v1421, %v1395
          %v1423 = vadd.f32 %v1394, %v1422
          %v1424 = vsel %vm578, %v1399, 0.0
          %1425 = vrot.lane.b32.xlu0 %v1424, 3
          %v1426 = vpop.permute.xlu0 %1425
          %v1427 = vadd.f32 %v1426, 0.0
          %v1428 = vsel %vm578, %v1403, 0.0
          %1429 = vrot.lane.b32.xlu0 %v1428, 2
          %v1430 = vpop.permute.xlu0 %1429
          %v1431 = vadd.f32 %v1427, %v1430
          %v1432 = vsel %vm578, %v1407, 0.0
          %1433 = vrot.lane.b32.xlu0 %v1432, 1
          %v1434 = vpop.permute.xlu0 %1433
          %v1435 = vadd.f32 %v1431, %v1434
          %v1436 = vsel %vm578, %v1411, 0.0
          %v1437 = vadd.f32 %v1435, %v1436
          %v1438 = vsel %vm578, %v1415, 0.0
          %1439 = vrot.lane.b32.xlu0 %v1438, 127
          %v1440 = vpop.permute.xlu0 %1439
          %v1441 = vadd.f32 %v1437, %v1440
          %v1442 = vsel %vm578, %v1419, 0.0
          %1443 = vrot.lane.b32.xlu0 %v1442, 126
          %v1444 = vpop.permute.xlu0 %1443
          %v1445 = vadd.f32 %v1441, %v1444
          %v1446 = vsel %vm578, %v1423, 0.0
          %1447 = vrot.lane.b32.xlu0 %v1446, 125
          %v1448 = vpop.permute.xlu0 %1447
          %v1449 = vadd.f32 %v1445, %v1448
          %v1450 = vxor.u32 %v1449, 2147483648
          %v1451 = vmul.f32 %v1450, 1.442695
          %v1452 = vpow.pop %v1451
          %v1453 = vadd.f32 %v1452, 1.0
          %v1454 = vrcp.pop %v1453
          %v1455 = vmul.f32 1.0, %v1454
          %1456 = vst [vmem:[%s189 + $0x8] sm:$0xff] %v1455
        $region44: #{tpu_custom_call.1} parent=27 // pred_fallthru
          _
        %s1457 = sand.u32 %s89, 1
        %s1458 = scalar_lea.sflag [#allocation7], %s1457
        %s1459 = sand.u32 %s89, 1
        %s1460 = smul.addr %s1459, 16
        %s1461 = scalar_lea.vmem [#allocation10], %s1460
        // Predicated region
        $region45: #{tpu_custom_call.1} parent=27 // pred_check
          %p1462 = pneg %p99
        $region46: #{tpu_custom_call.1} parent=27 // pred_check_branch
          %1464 = sbr.rel (%p1462) target = $region48
        $region47: #{tpu_custom_call.1} parent=27 // pred_region
          %s1466 = ssub.s32 256, 256
          %1467 = vsyncadd %s1458, %s1466
          %s1468 = smul.addr %s24, 2
          %s1469 = smul.addr %s1468, 128
          %s1470 = scalar_lea.hbm %s2, %s1469
          %s1471 = sshll.u32 %s1461, 4
          %s1472 = int_to_ptr.vmem [resolvable:$true] %s1471
          %1477 = dma.vmem_to_hbm [thread:$0]  %s1472, 256, %s1470, %s1458, 128, 128, 8
        $region48: #{tpu_custom_call.1} parent=27 // pred_fallthru
          _
      $region28: #{tpu_custom_call.1} parent=5 // pred_fallthru
        _
      %p1478 = scmp.le.s32.totalorder 2, %s15
      // Predicated region
      $region49: #{tpu_custom_call.1} parent=5 // pred_check
        %p1479 = pneg %p1478
      $region50: #{tpu_custom_call.1} parent=5 // pred_check_branch
        %1481 = sbr.rel (%p1479) target = $region52
      $region51: #{tpu_custom_call.1} parent=5 // pred_region
        %s1482 = ssub.s32 %s15, 2
        // Predicated region
        $region53: #{tpu_custom_call.1} parent=51 // pred_check
          %p1483 = pneg %p105
        $region54: #{tpu_custom_call.1} parent=51 // pred_check_branch
          %1485 = sbr.rel (%p1483) target = $region56
        $region55: #{tpu_custom_call.1} parent=51 // pred_region
          %s1486 = sand.u32 %s90, 1
          %s1487 = scalar_lea.sflag [#allocation7], %s1486
          %s1488 = sand.u32 %s90, 1
          %s1489 = smul.addr %s1488, 16
          %s1490 = scalar_lea.vmem [#allocation10], %s1489
          %1491 = dma.done %s1487, 256
        $region56: #{tpu_custom_call.1} parent=51 // pred_fallthru
          _
      $region52: #{tpu_custom_call.1} parent=5 // pred_fallthru
        _
    $region6: #{tpu_custom_call.1} parent=1 // loop_footer
      %s19 = sadd.s32 1, %s15
    $region7: #{tpu_custom_call.1} parent=1 // loop_footer_branch
      %14 = sbr.rel target = $region3
    $region8: #{tpu_custom_call.1} parent=1 // loop_exit
      _
    %1492 = vsyncpa [#allocation6], 1
    %s1493 = scalar_lea.sflag [#allocation6], 1
    %1494 = vsyncpa %s1493, 1
    %1495 = vsyncpa [#allocation7], 1
    %s1496 = scalar_lea.sflag [#allocation7], 1
    %1497 = vsyncpa %s1496, 1
    %1498 = vsyncpa [#allocation8], 1
    %s1499 = scalar_lea.sflag [#allocation8], 1
    %1500 = vsyncpa %s1499, 1

</llo_original>
